<compile_context>
chip_gen: v6e
topology: v6e:2x2x1
jax: 0.10.0
libtpu: 0.0.40
codegen_flags: <defaults>
</compile_context>

<pallas_src>
import jax
import jax.numpy as jnp
from jax.experimental import pallas as pl
from jax.experimental.pallas import tpu as pltpu

# ---- synthetic "config" constants -------------------------------------------
CELL_COUNT = 16          # spatial grid, H = W = CELL_COUNT (power of two)
N_SEC_FEATS = 8
TRAIN_BATCH_SIZE = 2
DROP_P = 0.3             # nn.Dropout(p): identity in inference mode

INPUT_DIM = 4
HIDDEN_DIM = 8
KERNEL_SIZE = 3
SEQ_LEN = 8

HW = CELL_COUNT * CELL_COUNT          # 256 (multiple of 128 -> lane-dense)
BN_EPS = 1e-5

# Fail loudly if a config change breaks the bitwise lane math / lane-dense stores.
assert CELL_COUNT & (CELL_COUNT - 1) == 0, "kernel mask math assumes W is a power of two"
assert HW & (HW - 1) == 0, "batch-folded lane masks assume H*W is a power of two"
assert HW % 128 == 0, "lane-dense layout requires H*W to be a multiple of 128"


# ------------------------------------------------------------------- kernel --
def hotspot_fused_kernel(x_ref, fcbias_ref, ws_ref, bs_ref, shift_ref,
                         cw_ref, cb_ref, fcw_ref, out_ref):
    """Entire forward pass for G batch elements folded into the lane axis.

      x_ref      (1, 8, G*256)  timestep-0 crime frames, channels zero-padded 4 -> 8
      fcbias_ref (1, G, 256)    fc bias + (sec @ fc_w[512:520]) folded per batch element
      ws_ref     (4, 24, 72)    bf16 gate weights, rows = [i|o|g] (f dropped), BN scale of
                                the previous layer folded into the input columns
      bs_ref     (4, 24, 1)     gate biases (f32)
      shift_ref  (4, 8, 1)      eval-BN shift/scale per channel (scale folded forward)
      cw_ref     (2, 72)        bf16 Conv3d(1,3,3) as a 2-D 3x3 conv, BN4 scale folded in
      cb_ref     (2, 1)
      fcw_ref    (512, 256)     bf16 Linear weight (conv part only, pre-transposed)
      out_ref    (1, G, 256)
    """
    H = W = CELL_COUNT
    Ch = HIDDEN_DIM
    lanes = x_ref.shape[2]                    # G * HW (static)
    G = lanes // HW

    lane = jax.lax.broadcasted_iota(jnp.int32, (Ch, lanes), 1)
    pix = jnp.bitwise_and(lane, HW - 1)       # pixel index within each image
    col = jnp.bitwise_and(pix, W - 1)         # x coordinate

    # Border masks hoisted: computed once, reused by all 5 patches_3x3 calls.
    m_up = pix >= W
    m_dn = pix < (H - 1) * W
    m_lf = col >= 1
    m_rt = col <= W - 2
    tap_masks = {
        (-1, -1): jnp.logical_and(m_up, m_lf), (-1, 0): m_up,
        (-1, 1): jnp.logical_and(m_up, m_rt),
        (0, -1): m_lf, (0, 0): None, (0, 1): m_rt,
        (1, -1): jnp.logical_and(m_dn, m_lf), (1, 0): m_dn,
        (1, 1): jnp.logical_and(m_dn, m_rt),
    }

    def patches_3x3(a):
        """im2col for zero-padded 3x3 conv on (Ch, G*HW): returns (9*Ch, G*HW) bf16.

        Each tap is a lane rotation (XLU) plus a border mask; every lane whose source
        would wrap across an image (or batch) boundary is masked to zero, so padding —
        and the batch folding — is exact.
        """
        pieces = []
        for dy in (-1, 0, 1):
            for dx in (-1, 0, 1):
                off = dy * W + dx                 # input pixel = output pixel + off
                shifted = a if off == 0 else pltpu.roll(a, shift=(-off) % lanes, axis=1)
                m = tap_masks[(dy, dx)]
                if m is not None:
                    shifted = jnp.where(m, shifted, 0.0)
                pieces.append(shifted.astype(jnp.bfloat16))   # bf16 MXU operand
        return jnp.concatenate(pieces, axis=0)                # (72, lanes)

    a = x_ref[0]                                              # (8, lanes) f32
    for l in range(4):                                        # ConvLSTM layers 1..4
        pt = patches_3x3(a)                                   # (72, lanes) bf16
        gates = jnp.dot(ws_ref[l], pt,
                        preferred_element_type=jnp.float32) + bs_ref[l]   # (24, lanes) f32
        i = jax.nn.sigmoid(gates[0:Ch])
        # forget gate multiplies c_{-1} = 0 -> its rows were dropped at pack time
        o = jax.nn.sigmoid(gates[Ch:2 * Ch])
        g = jnp.tanh(gates[2 * Ch:3 * Ch])
        c = i * g                                             # c_next = f*0 + i*g
        h = o * jnp.tanh(c)
        # eval-mode BatchNorm3d: the per-channel scale is folded into the *next* matmul's
        # weights (and into cw for l=3); only the shift/scale add remains here.
        a = h + shift_ref[l]
        # TODO(synk): Dropout(p=DROP_P) / training-mode BN (batch stats) not implemented;
        # inference semantics (identity dropout, running-stat BN) are used.

    # Conv3d(kernel=(1,3,3), pad=(0,1,1)) on the single remaining frame == 2-D 3x3 conv.
    pt = patches_3x3(a)                                       # (72, lanes) bf16
    conv = jnp.dot(cw_ref[...], pt,
                   preferred_element_type=jnp.float32) + cb_ref[...]      # (2, lanes) f32

    # Rebuild the per-batch PyTorch NCDHW flatten order ([ch0 pixels | ch1 pixels]) and
    # apply the FC as ONE (G, 512) @ (512, 256) dot; the sec term is already in fcbias.
    rows = []
    for lb in range(G):
        s = lb * HW
        rows.append(jnp.concatenate([conv[0:1, s:s + HW], conv[1:2, s:s + HW]], axis=1))
    fc_in = jnp.concatenate(rows, axis=0).astype(jnp.bfloat16)            # (G, 512)
    z = jnp.dot(fc_in, fcw_ref[...],
                preferred_element_type=jnp.float32) + fcbias_ref[0]       # (G, 256)
    out_ref[0] = jax.nn.sigmoid(z).astype(out_ref.dtype)


# ----------------------------------------------------------------- wrappers --
def _default_grid_splits(batch):
    """grid=(2,) ('parallel') on v7x-like chips (2 TensorCores); grid=(1,) elsewhere."""
    try:
        kind = jax.devices()[0].device_kind.lower()
    except Exception:
        return 1
    if batch % 2 == 0 and ("v7" in kind or "tpu7" in kind or "7x" in kind):
        return 2
    return 1


def _pack_params(params):
    """Repack PyTorch-layout parameters into the lane-dense, bf16-MXU kernel layout."""
    Ch = HIDDEN_DIM
    ws, bs, shifts = [], [], []
    prev_scale = None
    for l in range(4):
        w = params[f"lstm{l + 1}_w"]                    # (4*Ch, cin+Ch, 3, 3)
        b = params[f"lstm{l + 1}_b"]
        cin = INPUT_DIM if l == 0 else Ch
        # Keep only the i / o / g gate rows (forget gate multiplies c_{-1}=0 -> dead),
        # and only the input-channel taps (h_{-1}=0 -> hidden taps dead).
        keep_w = jnp.concatenate([w[0:Ch], w[2 * Ch:4 * Ch]], axis=0)     # (3Ch, cin+Ch,3,3)
        wx = jnp.transpose(keep_w[:, :cin], (0, 2, 3, 1))                 # (3Ch, 3, 3, cin)
        if prev_scale is not None:                      # fold previous BN scale (exact)
            wx = wx * prev_scale[None, None, None, :]
        if cin < Ch:                                    # zero-pad channels to Ch
            wx = jnp.pad(wx, ((0, 0), (0, 0), (0, 0), (0, Ch - cin)))
        ws.append(wx.reshape(3 * Ch, 9 * Ch))
        bs.append(jnp.concatenate([b[0:Ch], b[2 * Ch:4 * Ch]]).reshape(3 * Ch, 1))
        gamma, beta, mean, var = params[f"bn{l + 1}"]
        scale = gamma / jnp.sqrt(var + BN_EPS)
        shift = beta - mean * scale
        safe = jnp.where(scale == 0, 1.0, scale)        # degenerate gamma=0 guard
        shifts.append((shift / safe).reshape(Ch, 1))    # kernel adds shift/scale
        prev_scale = scale
    cw = jnp.transpose(params["conv3d_w"], (0, 2, 3, 1))                  # (2, 3, 3, Ch)
    cw = (cw * prev_scale[None, None, None, :]).reshape(2, 9 * Ch)        # fold BN4 scale
    cb = params["conv3d_b"].reshape(2, 1)
    fcw = params["fc_w"]                                # (2*HW + N_SEC_FEATS, HW)
    return (jnp.stack(ws).astype(jnp.bfloat16),         # (4, 24, 72) bf16
            jnp.stack(bs),                              # (4, 24, 1)  f32
            jnp.stack(shifts),                          # (4, 8, 1)   f32
            cw.astype(jnp.bfloat16), cb,                # (2, 72) bf16, (2,1) f32
            fcw[:2 * HW].astype(jnp.bfloat16),          # (512, 256) bf16
            fcw[2 * HW:],                               # (8, 256)   f32 (sec part)
            params["fc_b"])                             # (256,)     f32


def hotspot_predictor_forward(params, input_crime, input_sec, grid_splits=None):
    """input_crime: (B, T, Cin, H, W) (PyTorch layout); input_sec: (B, N_SEC_FEATS)."""
    B = input_crime.shape[0]
    Ch = HIDDEN_DIM
    NG = _default_grid_splits(B) if grid_splits is None else grid_splits
    assert B % NG == 0, "batch must divide evenly across grid splits"
    G = B // NG
    lanes = G * HW

    ws, bs, shifts, cw, cb, fcw_conv, fcw_sec, fc_b = _pack_params(params)

    # Exact dead-code elimination: only timestep 0 of the input reaches the output.
    x0 = input_crime[:, 0].astype(jnp.float32).reshape(B, INPUT_DIM, HW)
    x0 = jnp.pad(x0, ((0, 0), (0, Ch - INPUT_DIM), (0, 0)))      # channel-pad 4 -> 8
    x0 = x0.reshape(NG, G, Ch, HW).transpose(0, 2, 1, 3).reshape(NG, Ch, lanes)

    # Fold the K=8 sec-feature FC contribution + fc bias into a per-batch bias (XLA side).
    bias_fc = jnp.dot(input_sec.astype(jnp.float32), fcw_sec,
                      precision=jax.lax.Precision.HIGHEST) + fc_b[None, :]
    bias_fc = bias_fc.reshape(NG, G, HW)

    out = pl.pallas_call(
        hotspot_fused_kernel,
        out_shape=jax.ShapeDtypeStruct((NG, G, HW), jnp.float32),
        grid=(NG,),
        in_specs=[
            pl.BlockSpec((1, Ch, lanes), lambda g: (g, 0, 0)),          # x0 (batch-folded)
            pl.BlockSpec((1, G, HW), lambda g: (g, 0, 0)),              # fc bias (+sec)
            pl.BlockSpec((4, 3 * Ch, 9 * Ch), lambda g: (0, 0, 0)),     # gate weights bf16
            pl.BlockSpec((4, 3 * Ch, 1), lambda g: (0, 0, 0)),          # gate biases
            pl.BlockSpec((4, Ch, 1), lambda g: (0, 0, 0)),              # BN shift/scale
            pl.BlockSpec((2, 9 * Ch), lambda g: (0, 0)),                # conv3d weight bf16
            pl.BlockSpec((2, 1), lambda g: (0, 0)),                     # conv3d bias
            pl.BlockSpec((2 * HW, HW), lambda g: (0, 0)),               # fc weight bf16
        ],
        out_specs=pl.BlockSpec((1, G, HW), lambda g: (g, 0, 0)),
        compiler_params=pltpu.CompilerParams(
            dimension_semantics=("parallel",)),
    )(x0, bias_fc, ws, bs, shifts, cw, cb, fcw_conv)
    return out.reshape(B, 1, 1, CELL_COUNT, CELL_COUNT)


# -------------------------------------------------- pure-JAX full reference --
def _reference_forward(params, input_crime, input_sec):
    """Full-sequence reference mirroring the PyTorch module (eval BN, no dropout)."""
    hi = jax.lax.Precision.HIGHEST
    x = input_crime.astype(jnp.float32)               # (B, T, C, H, W)
    B, _, _, H, W = x.shape
    Ch = HIDDEN_DIM
    for l in range(4):
        w = params[f"lstm{l + 1}_w"]
        b = params[f"lstm{l + 1}_b"]
        h = jnp.zeros((B, Ch, H, W), jnp.float32)
        c = jnp.zeros((B, Ch, H, W), jnp.float32)
        outs = []
        for t in range(x.shape[1]):
            comb = jnp.concatenate([x[:, t], h], axis=1)
            z = jax.lax.conv_general_dilated(
                comb, w, (1, 1), ((1, 1), (1, 1)),
                dimension_numbers=("NCHW", "OIHW", "NCHW"),
                precision=hi) + b[None, :, None, None]
            ci, cf, co, cg = jnp.split(z, 4, axis=1)
            i, f = jax.nn.sigmoid(ci), jax.nn.sigmoid(cf)
            o, g = jax.nn.sigmoid(co), jnp.tanh(cg)
            c = f * c + i * g
            h = o * jnp.tanh(c)
            outs.append(h)
        seq = jnp.stack(outs, axis=1)                  # (B, T, Ch, H, W)
        gamma, beta, mean, var = params[f"bn{l + 1}"]
        inv = (gamma / jnp.sqrt(var + BN_EPS))[None, None, :, None, None]
        seq = (seq - mean[None, None, :, None, None]) * inv \
            + beta[None, None, :, None, None]
        x = seq[:, ::2]                                # MaxPool3d(kernel=1, stride=(2,1,1))
    frame = x[:, 0]                                    # (B, Ch, H, W); T == 1 here
    z = jax.lax.conv_general_dilated(
        frame, params["conv3d_w"], (1, 1), ((1, 1), (1, 1)),
        dimension_numbers=("NCHW", "OIHW", "NCHW"),
        precision=hi) + params["conv3d_b"][None, :, None, None]
    flat = z.reshape(B, -1)                            # NCDHW flatten order
    fc_in = jnp.concatenate([flat, input_sec.astype(jnp.float32)], axis=-1)
    out = jax.nn.sigmoid(jnp.dot(fc_in, params["fc_w"], precision=hi) + params["fc_b"])
    return out.reshape(B, 1, 1, H, W)


# ------------------------------------------------------------------- params --
def init_params(key):
    params = {}
    keys = iter(jax.random.split(key, 12))
    cin = INPUT_DIM
    for l in range(4):
        params[f"lstm{l + 1}_w"] = 0.1 * jax.random.normal(
            next(keys), (4 * HIDDEN_DIM, cin + HIDDEN_DIM, 3, 3), jnp.float32)
        params[f"lstm{l + 1}_b"] = 0.1 * jax.random.normal(
            next(keys), (4 * HIDDEN_DIM,), jnp.float32)
        params[f"bn{l + 1}"] = (jnp.ones((HIDDEN_DIM,), jnp.float32),   # gamma
                                jnp.zeros((HIDDEN_DIM,), jnp.float32),  # beta
                                jnp.zeros((HIDDEN_DIM,), jnp.float32),  # running mean
                                jnp.ones((HIDDEN_DIM,), jnp.float32))   # running var
        cin = HIDDEN_DIM
    params["conv3d_w"] = 0.1 * jax.random.normal(
        next(keys), (2, HIDDEN_DIM, 3, 3), jnp.float32)
    params["conv3d_b"] = 0.1 * jax.random.normal(next(keys), (2,), jnp.float32)
    fc_in = 2 * CELL_COUNT * CELL_COUNT + N_SEC_FEATS
    fc_out = CELL_COUNT * CELL_COUNT
    params["fc_w"] = 0.05 * jax.random.normal(next(keys), (fc_in, fc_out), jnp.float32)
    params["fc_b"] = 0.05 * jax.random.normal(next(keys), (fc_out,), jnp.float32)
    return params


if __name__ == "__main__":
    key = jax.random.PRNGKey(0)
    kp, kc, ks = jax.random.split(key, 3)
    params = init_params(kp)
    input_crime = jax.random.normal(
        kc, (TRAIN_BATCH_SIZE, SEQ_LEN, INPUT_DIM, CELL_COUNT, CELL_COUNT), jnp.float32)
    input_sec = jax.random.normal(ks, (TRAIN_BATCH_SIZE, N_SEC_FEATS), jnp.float32)

    out = jax.block_until_ready(
        jax.jit(hotspot_predictor_forward)(params, input_crime, input_sec))
    assert out.shape == (TRAIN_BATCH_SIZE, 1, 1, CELL_COUNT, CELL_COUNT)
    assert bool(jnp.all(jnp.isfinite(out)))

    # Validate the fused, batch-folded, t=0-only Pallas kernel against the full-sequence
    # f32 HIGHEST-precision reference.  Tolerance widened from 5e-3 (all-f32 kernel) to
    # 2e-2 purely to allow for bf16 MXU-operand rounding; structural bugs would blow past
    # this by orders of magnitude.
    ref = jax.block_until_ready(
        jax.jit(_reference_forward)(params, input_crime, input_sec))
    assert float(jnp.max(jnp.abs(out - ref))) < 2e-2

    print("KERNEL_OK")
</pallas_src>

<mosaic_0001>
module attributes {stable_mosaic.version = 11 : i64} {
  func.func @hotspot_fused_kernel(%arg0: i32, %arg1: memref<1x8x512xf32, #tpu.memory_space<vmem>>, %arg2: memref<1x2x256xf32, #tpu.memory_space<vmem>>, %arg3: memref<4x24x72xbf16, #tpu.memory_space<vmem>>, %arg4: memref<4x24x1xf32, #tpu.memory_space<vmem>>, %arg5: memref<4x8x1xf32, #tpu.memory_space<vmem>>, %arg6: memref<2x72xbf16, #tpu.memory_space<vmem>>, %arg7: memref<2x1xf32, #tpu.memory_space<vmem>>, %arg8: memref<512x256xbf16, #tpu.memory_space<vmem>>, %arg9: memref<1x2x256xf32, #tpu.memory_space<vmem>>) attributes {dimension_semantics = [#tpu.dimension_semantics<parallel>], iteration_bounds = array<i64: 1>, scalar_prefetch = 0 : i64, scratch_operands = 0 : i64, tpu.core_type = #tpu.core_type<tc>, window_params = [{transform_indices = @transform_0, window_bounds = array<i64: 1, 8, 512>}, {transform_indices = @transform_1, window_bounds = array<i64: 1, 2, 256>}, {pipeline_mode = #tpu.pipeline_mode<synchronous>, transform_indices = @transform_2, window_bounds = array<i64: 4, 24, 72>}, {pipeline_mode = #tpu.pipeline_mode<synchronous>, transform_indices = @transform_3, window_bounds = array<i64: 4, 24, 1>}, {pipeline_mode = #tpu.pipeline_mode<synchronous>, transform_indices = @transform_4, window_bounds = array<i64: 4, 8, 1>}, {pipeline_mode = #tpu.pipeline_mode<synchronous>, transform_indices = @transform_5, window_bounds = array<i64: 2, 72>}, {pipeline_mode = #tpu.pipeline_mode<synchronous>, transform_indices = @transform_6, window_bounds = array<i64: 2, 1>}, {pipeline_mode = #tpu.pipeline_mode<synchronous>, transform_indices = @transform_7, window_bounds = array<i64: 512, 256>}, {transform_indices = @transform_8, window_bounds = array<i64: 1, 2, 256>}]} {
    %0 = tpu.iota {dimensions = array<i32: 1>} : vector<8x512xi32>
    %c255_i32 = arith.constant 255 : i32
    %1 = vector.broadcast %c255_i32 : i32 to vector<8x512xi32>
    %2 = arith.andi %0, %1 : vector<8x512xi32>
    %c15_i32 = arith.constant 15 : i32
    %3 = vector.broadcast %c15_i32 : i32 to vector<8x512xi32>
    %4 = arith.andi %2, %3 : vector<8x512xi32>
    %c16_i32 = arith.constant 16 : i32
    %5 = vector.broadcast %c16_i32 : i32 to vector<8x512xi32>
    %6 = arith.cmpi sge, %2, %5 : vector<8x512xi32>
    %c240_i32 = arith.constant 240 : i32
    %7 = vector.broadcast %c240_i32 : i32 to vector<8x512xi32>
    %8 = arith.cmpi slt, %2, %7 : vector<8x512xi32>
    %c1_i32 = arith.constant 1 : i32
    %9 = vector.broadcast %c1_i32 : i32 to vector<8x512xi32>
    %10 = arith.cmpi sge, %4, %9 : vector<8x512xi32>
    %c14_i32 = arith.constant 14 : i32
    %11 = vector.broadcast %c14_i32 : i32 to vector<8x512xi32>
    %12 = arith.cmpi sle, %4, %11 : vector<8x512xi32>
    %13 = arith.andi %6, %10 : vector<8x512xi1>
    %14 = arith.andi %6, %12 : vector<8x512xi1>
    %15 = arith.andi %8, %10 : vector<8x512xi1>
    %16 = arith.andi %8, %12 : vector<8x512xi1>
    %c0 = arith.constant 0 : index
    %c0_0 = arith.constant 0 : index
    %c0_1 = arith.constant 0 : index
    %17 = vector.load %arg1[%c0, %c0_0, %c0_1] : memref<1x8x512xf32, #tpu.memory_space<vmem>>, vector<1x8x512xf32>
    %18 = vector.shape_cast %17 : vector<1x8x512xf32> to vector<8x512xf32>
    %c17_i32 = arith.constant 17 : i32
    %19 = tpu.dynamic_rotate %18 by %c17_i32 dim 1 : vector<8x512xf32>, i32 -> vector<8x512xf32>
    %cst = arith.constant 0.000000e+00 : f32
    %20 = vector.broadcast %cst : f32 to vector<8x512xf32>
    %21 = arith.select %13, %19, %20 : vector<8x512xi1>, vector<8x512xf32>
    %22 = arith.truncf %21 : vector<8x512xf32> to vector<8x512xbf16>
    %c16_i32_2 = arith.constant 16 : i32
    %23 = tpu.dynamic_rotate %18 by %c16_i32_2 dim 1 : vector<8x512xf32>, i32 -> vector<8x512xf32>
    %cst_3 = arith.constant 0.000000e+00 : f32
    %24 = vector.broadcast %cst_3 : f32 to vector<8x512xf32>
    %25 = arith.select %6, %23, %24 : vector<8x512xi1>, vector<8x512xf32>
    %26 = arith.truncf %25 : vector<8x512xf32> to vector<8x512xbf16>
    %c15_i32_4 = arith.constant 15 : i32
    %27 = tpu.dynamic_rotate %18 by %c15_i32_4 dim 1 : vector<8x512xf32>, i32 -> vector<8x512xf32>
    %cst_5 = arith.constant 0.000000e+00 : f32
    %28 = vector.broadcast %cst_5 : f32 to vector<8x512xf32>
    %29 = arith.select %14, %27, %28 : vector<8x512xi1>, vector<8x512xf32>
    %30 = arith.truncf %29 : vector<8x512xf32> to vector<8x512xbf16>
    %c1_i32_6 = arith.constant 1 : i32
    %31 = tpu.dynamic_rotate %18 by %c1_i32_6 dim 1 : vector<8x512xf32>, i32 -> vector<8x512xf32>
    %cst_7 = arith.constant 0.000000e+00 : f32
    %32 = vector.broadcast %cst_7 : f32 to vector<8x512xf32>
    %33 = arith.select %10, %31, %32 : vector<8x512xi1>, vector<8x512xf32>
    %34 = arith.truncf %33 : vector<8x512xf32> to vector<8x512xbf16>
    %35 = arith.truncf %18 : vector<8x512xf32> to vector<8x512xbf16>
    %c511_i32 = arith.constant 511 : i32
    %36 = tpu.dynamic_rotate %18 by %c511_i32 dim 1 : vector<8x512xf32>, i32 -> vector<8x512xf32>
    %cst_8 = arith.constant 0.000000e+00 : f32
    %37 = vector.broadcast %cst_8 : f32 to vector<8x512xf32>
    %38 = arith.select %12, %36, %37 : vector<8x512xi1>, vector<8x512xf32>
    %39 = arith.truncf %38 : vector<8x512xf32> to vector<8x512xbf16>
    %c497_i32 = arith.constant 497 : i32
    %40 = tpu.dynamic_rotate %18 by %c497_i32 dim 1 : vector<8x512xf32>, i32 -> vector<8x512xf32>
    %cst_9 = arith.constant 0.000000e+00 : f32
    %41 = vector.broadcast %cst_9 : f32 to vector<8x512xf32>
    %42 = arith.select %15, %40, %41 : vector<8x512xi1>, vector<8x512xf32>
    %43 = arith.truncf %42 : vector<8x512xf32> to vector<8x512xbf16>
    %c496_i32 = arith.constant 496 : i32
    %44 = tpu.dynamic_rotate %18 by %c496_i32 dim 1 : vector<8x512xf32>, i32 -> vector<8x512xf32>
    %cst_10 = arith.constant 0.000000e+00 : f32
    %45 = vector.broadcast %cst_10 : f32 to vector<8x512xf32>
    %46 = arith.select %8, %44, %45 : vector<8x512xi1>, vector<8x512xf32>
    %47 = arith.truncf %46 : vector<8x512xf32> to vector<8x512xbf16>
    %c495_i32 = arith.constant 495 : i32
    %48 = tpu.dynamic_rotate %18 by %c495_i32 dim 1 : vector<8x512xf32>, i32 -> vector<8x512xf32>
    %cst_11 = arith.constant 0.000000e+00 : f32
    %49 = vector.broadcast %cst_11 : f32 to vector<8x512xf32>
    %50 = arith.select %16, %48, %49 : vector<8x512xi1>, vector<8x512xf32>
    %51 = arith.truncf %50 : vector<8x512xf32> to vector<8x512xbf16>
    %52 = tpu.concatenate %22, %26, %30, %34, %35, %39, %43, %47, %51 in 0 : vector<8x512xbf16>, vector<8x512xbf16>, vector<8x512xbf16>, vector<8x512xbf16>, vector<8x512xbf16>, vector<8x512xbf16>, vector<8x512xbf16>, vector<8x512xbf16>, vector<8x512xbf16> -> vector<72x512xbf16>
    %c0_12 = arith.constant 0 : index
    %c0_13 = arith.constant 0 : index
    %c0_14 = arith.constant 0 : index
    %53 = vector.load %arg3[%c0_12, %c0_13, %c0_14] : memref<4x24x72xbf16, #tpu.memory_space<vmem>>, vector<1x24x72xbf16>
    %54 = vector.shape_cast %53 : vector<1x24x72xbf16> to vector<24x72xbf16>
    %cst_15 = arith.constant dense<0.000000e+00> : vector<24x512xf32>
    %55 = tpu.matmul %54, %52, %cst_15 {dimension_numbers = #tpu.dot_dimension_numbers<[1], [0], [0], [1], [0, 0, 1, 1], [], []>} : vector<24x72xbf16>, vector<72x512xbf16>, vector<24x512xf32> -> vector<24x512xf32>
    %c0_16 = arith.constant 0 : index
    %c0_17 = arith.constant 0 : index
    %c0_18 = arith.constant 0 : index
    %56 = vector.load %arg4[%c0_16, %c0_17, %c0_18] : memref<4x24x1xf32, #tpu.memory_space<vmem>>, vector<1x24x1xf32>
    %57 = vector.shape_cast %56 : vector<1x24x1xf32> to vector<24x1xf32>
    %58 = vector.broadcast %57 : vector<24x1xf32> to vector<24x512xf32>
    %59 = arith.addf %55, %58 : vector<24x512xf32>
    %60 = vector.extract_strided_slice %59 {offsets = [0, 0], sizes = [8, 512], strides = [1, 1]} : vector<24x512xf32> to vector<8x512xf32>
    %61 = arith.negf %60 : vector<8x512xf32>
    %62 = math.exp %61 : vector<8x512xf32>
    %cst_19 = arith.constant 1.000000e+00 : f32
    %63 = vector.broadcast %cst_19 : f32 to vector<8x512xf32>
    %64 = arith.addf %63, %62 : vector<8x512xf32>
    %65 = arith.divf %63, %64 : vector<8x512xf32>
    %66 = vector.extract_strided_slice %59 {offsets = [8, 0], sizes = [8, 512], strides = [1, 1]} : vector<24x512xf32> to vector<8x512xf32>
    %67 = arith.negf %66 : vector<8x512xf32>
    %68 = math.exp %67 : vector<8x512xf32>
    %cst_20 = arith.constant 1.000000e+00 : f32
    %69 = vector.broadcast %cst_20 : f32 to vector<8x512xf32>
    %70 = arith.addf %69, %68 : vector<8x512xf32>
    %71 = arith.divf %69, %70 : vector<8x512xf32>
    %72 = vector.extract_strided_slice %59 {offsets = [16, 0], sizes = [8, 512], strides = [1, 1]} : vector<24x512xf32> to vector<8x512xf32>
    %73 = math.tanh %72 : vector<8x512xf32>
    %74 = arith.mulf %65, %73 : vector<8x512xf32>
    %75 = math.tanh %74 : vector<8x512xf32>
    %76 = arith.mulf %71, %75 : vector<8x512xf32>
    %c0_21 = arith.constant 0 : index
    %c0_22 = arith.constant 0 : index
    %c0_23 = arith.constant 0 : index
    %77 = vector.load %arg5[%c0_21, %c0_22, %c0_23] : memref<4x8x1xf32, #tpu.memory_space<vmem>>, vector<1x8x1xf32>
    %78 = vector.shape_cast %77 : vector<1x8x1xf32> to vector<8x1xf32>
    %79 = vector.broadcast %78 : vector<8x1xf32> to vector<8x512xf32>
    %80 = arith.addf %76, %79 : vector<8x512xf32>
    %c17_i32_24 = arith.constant 17 : i32
    %81 = tpu.dynamic_rotate %80 by %c17_i32_24 dim 1 : vector<8x512xf32>, i32 -> vector<8x512xf32>
    %cst_25 = arith.constant 0.000000e+00 : f32
    %82 = vector.broadcast %cst_25 : f32 to vector<8x512xf32>
    %83 = arith.select %13, %81, %82 : vector<8x512xi1>, vector<8x512xf32>
    %84 = arith.truncf %83 : vector<8x512xf32> to vector<8x512xbf16>
    %c16_i32_26 = arith.constant 16 : i32
    %85 = tpu.dynamic_rotate %80 by %c16_i32_26 dim 1 : vector<8x512xf32>, i32 -> vector<8x512xf32>
    %cst_27 = arith.constant 0.000000e+00 : f32
    %86 = vector.broadcast %cst_27 : f32 to vector<8x512xf32>
    %87 = arith.select %6, %85, %86 : vector<8x512xi1>, vector<8x512xf32>
    %88 = arith.truncf %87 : vector<8x512xf32> to vector<8x512xbf16>
    %c15_i32_28 = arith.constant 15 : i32
    %89 = tpu.dynamic_rotate %80 by %c15_i32_28 dim 1 : vector<8x512xf32>, i32 -> vector<8x512xf32>
    %cst_29 = arith.constant 0.000000e+00 : f32
    %90 = vector.broadcast %cst_29 : f32 to vector<8x512xf32>
    %91 = arith.select %14, %89, %90 : vector<8x512xi1>, vector<8x512xf32>
    %92 = arith.truncf %91 : vector<8x512xf32> to vector<8x512xbf16>
    %c1_i32_30 = arith.constant 1 : i32
    %93 = tpu.dynamic_rotate %80 by %c1_i32_30 dim 1 : vector<8x512xf32>, i32 -> vector<8x512xf32>
    %cst_31 = arith.constant 0.000000e+00 : f32
    %94 = vector.broadcast %cst_31 : f32 to vector<8x512xf32>
    %95 = arith.select %10, %93, %94 : vector<8x512xi1>, vector<8x512xf32>
    %96 = arith.truncf %95 : vector<8x512xf32> to vector<8x512xbf16>
    %97 = arith.truncf %80 : vector<8x512xf32> to vector<8x512xbf16>
    %c511_i32_32 = arith.constant 511 : i32
    %98 = tpu.dynamic_rotate %80 by %c511_i32_32 dim 1 : vector<8x512xf32>, i32 -> vector<8x512xf32>
    %cst_33 = arith.constant 0.000000e+00 : f32
    %99 = vector.broadcast %cst_33 : f32 to vector<8x512xf32>
    %100 = arith.select %12, %98, %99 : vector<8x512xi1>, vector<8x512xf32>
    %101 = arith.truncf %100 : vector<8x512xf32> to vector<8x512xbf16>
    %c497_i32_34 = arith.constant 497 : i32
    %102 = tpu.dynamic_rotate %80 by %c497_i32_34 dim 1 : vector<8x512xf32>, i32 -> vector<8x512xf32>
    %cst_35 = arith.constant 0.000000e+00 : f32
    %103 = vector.broadcast %cst_35 : f32 to vector<8x512xf32>
    %104 = arith.select %15, %102, %103 : vector<8x512xi1>, vector<8x512xf32>
    %105 = arith.truncf %104 : vector<8x512xf32> to vector<8x512xbf16>
    %c496_i32_36 = arith.constant 496 : i32
    %106 = tpu.dynamic_rotate %80 by %c496_i32_36 dim 1 : vector<8x512xf32>, i32 -> vector<8x512xf32>
    %cst_37 = arith.constant 0.000000e+00 : f32
    %107 = vector.broadcast %cst_37 : f32 to vector<8x512xf32>
    %108 = arith.select %8, %106, %107 : vector<8x512xi1>, vector<8x512xf32>
    %109 = arith.truncf %108 : vector<8x512xf32> to vector<8x512xbf16>
    %c495_i32_38 = arith.constant 495 : i32
    %110 = tpu.dynamic_rotate %80 by %c495_i32_38 dim 1 : vector<8x512xf32>, i32 -> vector<8x512xf32>
    %cst_39 = arith.constant 0.000000e+00 : f32
    %111 = vector.broadcast %cst_39 : f32 to vector<8x512xf32>
    %112 = arith.select %16, %110, %111 : vector<8x512xi1>, vector<8x512xf32>
    %113 = arith.truncf %112 : vector<8x512xf32> to vector<8x512xbf16>
    %114 = tpu.concatenate %84, %88, %92, %96, %97, %101, %105, %109, %113 in 0 : vector<8x512xbf16>, vector<8x512xbf16>, vector<8x512xbf16>, vector<8x512xbf16>, vector<8x512xbf16>, vector<8x512xbf16>, vector<8x512xbf16>, vector<8x512xbf16>, vector<8x512xbf16> -> vector<72x512xbf16>
    %c1 = arith.constant 1 : index
    %c0_40 = arith.constant 0 : index
    %c0_41 = arith.constant 0 : index
    %115 = vector.load %arg3[%c1, %c0_40, %c0_41] : memref<4x24x72xbf16, #tpu.memory_space<vmem>>, vector<1x24x72xbf16>
    %116 = vector.shape_cast %115 : vector<1x24x72xbf16> to vector<24x72xbf16>
    %cst_42 = arith.constant dense<0.000000e+00> : vector<24x512xf32>
    %117 = tpu.matmul %116, %114, %cst_42 {dimension_numbers = #tpu.dot_dimension_numbers<[1], [0], [0], [1], [0, 0, 1, 1], [], []>} : vector<24x72xbf16>, vector<72x512xbf16>, vector<24x512xf32> -> vector<24x512xf32>
    %c1_43 = arith.constant 1 : index
    %c0_44 = arith.constant 0 : index
    %c0_45 = arith.constant 0 : index
    %118 = vector.load %arg4[%c1_43, %c0_44, %c0_45] : memref<4x24x1xf32, #tpu.memory_space<vmem>>, vector<1x24x1xf32>
    %119 = vector.shape_cast %118 : vector<1x24x1xf32> to vector<24x1xf32>
    %120 = vector.broadcast %119 : vector<24x1xf32> to vector<24x512xf32>
    %121 = arith.addf %117, %120 : vector<24x512xf32>
    %122 = vector.extract_strided_slice %121 {offsets = [0, 0], sizes = [8, 512], strides = [1, 1]} : vector<24x512xf32> to vector<8x512xf32>
    %123 = arith.negf %122 : vector<8x512xf32>
    %124 = math.exp %123 : vector<8x512xf32>
    %cst_46 = arith.constant 1.000000e+00 : f32
    %125 = vector.broadcast %cst_46 : f32 to vector<8x512xf32>
    %126 = arith.addf %125, %124 : vector<8x512xf32>
    %127 = arith.divf %125, %126 : vector<8x512xf32>
    %128 = vector.extract_strided_slice %121 {offsets = [8, 0], sizes = [8, 512], strides = [1, 1]} : vector<24x512xf32> to vector<8x512xf32>
    %129 = arith.negf %128 : vector<8x512xf32>
    %130 = math.exp %129 : vector<8x512xf32>
    %cst_47 = arith.constant 1.000000e+00 : f32
    %131 = vector.broadcast %cst_47 : f32 to vector<8x512xf32>
    %132 = arith.addf %131, %130 : vector<8x512xf32>
    %133 = arith.divf %131, %132 : vector<8x512xf32>
    %134 = vector.extract_strided_slice %121 {offsets = [16, 0], sizes = [8, 512], strides = [1, 1]} : vector<24x512xf32> to vector<8x512xf32>
    %135 = math.tanh %134 : vector<8x512xf32>
    %136 = arith.mulf %127, %135 : vector<8x512xf32>
    %137 = math.tanh %136 : vector<8x512xf32>
    %138 = arith.mulf %133, %137 : vector<8x512xf32>
    %c1_48 = arith.constant 1 : index
    %c0_49 = arith.constant 0 : index
    %c0_50 = arith.constant 0 : index
    %139 = vector.load %arg5[%c1_48, %c0_49, %c0_50] : memref<4x8x1xf32, #tpu.memory_space<vmem>>, vector<1x8x1xf32>
    %140 = vector.shape_cast %139 : vector<1x8x1xf32> to vector<8x1xf32>
    %141 = vector.broadcast %140 : vector<8x1xf32> to vector<8x512xf32>
    %142 = arith.addf %138, %141 : vector<8x512xf32>
    %c17_i32_51 = arith.constant 17 : i32
    %143 = tpu.dynamic_rotate %142 by %c17_i32_51 dim 1 : vector<8x512xf32>, i32 -> vector<8x512xf32>
    %cst_52 = arith.constant 0.000000e+00 : f32
    %144 = vector.broadcast %cst_52 : f32 to vector<8x512xf32>
    %145 = arith.select %13, %143, %144 : vector<8x512xi1>, vector<8x512xf32>
    %146 = arith.truncf %145 : vector<8x512xf32> to vector<8x512xbf16>
    %c16_i32_53 = arith.constant 16 : i32
    %147 = tpu.dynamic_rotate %142 by %c16_i32_53 dim 1 : vector<8x512xf32>, i32 -> vector<8x512xf32>
    %cst_54 = arith.constant 0.000000e+00 : f32
    %148 = vector.broadcast %cst_54 : f32 to vector<8x512xf32>
    %149 = arith.select %6, %147, %148 : vector<8x512xi1>, vector<8x512xf32>
    %150 = arith.truncf %149 : vector<8x512xf32> to vector<8x512xbf16>
    %c15_i32_55 = arith.constant 15 : i32
    %151 = tpu.dynamic_rotate %142 by %c15_i32_55 dim 1 : vector<8x512xf32>, i32 -> vector<8x512xf32>
    %cst_56 = arith.constant 0.000000e+00 : f32
    %152 = vector.broadcast %cst_56 : f32 to vector<8x512xf32>
    %153 = arith.select %14, %151, %152 : vector<8x512xi1>, vector<8x512xf32>
    %154 = arith.truncf %153 : vector<8x512xf32> to vector<8x512xbf16>
    %c1_i32_57 = arith.constant 1 : i32
    %155 = tpu.dynamic_rotate %142 by %c1_i32_57 dim 1 : vector<8x512xf32>, i32 -> vector<8x512xf32>
    %cst_58 = arith.constant 0.000000e+00 : f32
    %156 = vector.broadcast %cst_58 : f32 to vector<8x512xf32>
    %157 = arith.select %10, %155, %156 : vector<8x512xi1>, vector<8x512xf32>
    %158 = arith.truncf %157 : vector<8x512xf32> to vector<8x512xbf16>
    %159 = arith.truncf %142 : vector<8x512xf32> to vector<8x512xbf16>
    %c511_i32_59 = arith.constant 511 : i32
    %160 = tpu.dynamic_rotate %142 by %c511_i32_59 dim 1 : vector<8x512xf32>, i32 -> vector<8x512xf32>
    %cst_60 = arith.constant 0.000000e+00 : f32
    %161 = vector.broadcast %cst_60 : f32 to vector<8x512xf32>
    %162 = arith.select %12, %160, %161 : vector<8x512xi1>, vector<8x512xf32>
    %163 = arith.truncf %162 : vector<8x512xf32> to vector<8x512xbf16>
    %c497_i32_61 = arith.constant 497 : i32
    %164 = tpu.dynamic_rotate %142 by %c497_i32_61 dim 1 : vector<8x512xf32>, i32 -> vector<8x512xf32>
    %cst_62 = arith.constant 0.000000e+00 : f32
    %165 = vector.broadcast %cst_62 : f32 to vector<8x512xf32>
    %166 = arith.select %15, %164, %165 : vector<8x512xi1>, vector<8x512xf32>
    %167 = arith.truncf %166 : vector<8x512xf32> to vector<8x512xbf16>
    %c496_i32_63 = arith.constant 496 : i32
    %168 = tpu.dynamic_rotate %142 by %c496_i32_63 dim 1 : vector<8x512xf32>, i32 -> vector<8x512xf32>
    %cst_64 = arith.constant 0.000000e+00 : f32
    %169 = vector.broadcast %cst_64 : f32 to vector<8x512xf32>
    %170 = arith.select %8, %168, %169 : vector<8x512xi1>, vector<8x512xf32>
    %171 = arith.truncf %170 : vector<8x512xf32> to vector<8x512xbf16>
    %c495_i32_65 = arith.constant 495 : i32
    %172 = tpu.dynamic_rotate %142 by %c495_i32_65 dim 1 : vector<8x512xf32>, i32 -> vector<8x512xf32>
    %cst_66 = arith.constant 0.000000e+00 : f32
    %173 = vector.broadcast %cst_66 : f32 to vector<8x512xf32>
    %174 = arith.select %16, %172, %173 : vector<8x512xi1>, vector<8x512xf32>
    %175 = arith.truncf %174 : vector<8x512xf32> to vector<8x512xbf16>
    %176 = tpu.concatenate %146, %150, %154, %158, %159, %163, %167, %171, %175 in 0 : vector<8x512xbf16>, vector<8x512xbf16>, vector<8x512xbf16>, vector<8x512xbf16>, vector<8x512xbf16>, vector<8x512xbf16>, vector<8x512xbf16>, vector<8x512xbf16>, vector<8x512xbf16> -> vector<72x512xbf16>
    %c2 = arith.constant 2 : index
    %c0_67 = arith.constant 0 : index
    %c0_68 = arith.constant 0 : index
    %177 = vector.load %arg3[%c2, %c0_67, %c0_68] : memref<4x24x72xbf16, #tpu.memory_space<vmem>>, vector<1x24x72xbf16>
    %178 = vector.shape_cast %177 : vector<1x24x72xbf16> to vector<24x72xbf16>
    %cst_69 = arith.constant dense<0.000000e+00> : vector<24x512xf32>
    %179 = tpu.matmul %178, %176, %cst_69 {dimension_numbers = #tpu.dot_dimension_numbers<[1], [0], [0], [1], [0, 0, 1, 1], [], []>} : vector<24x72xbf16>, vector<72x512xbf16>, vector<24x512xf32> -> vector<24x512xf32>
    %c2_70 = arith.constant 2 : index
    %c0_71 = arith.constant 0 : index
    %c0_72 = arith.constant 0 : index
    %180 = vector.load %arg4[%c2_70, %c0_71, %c0_72] : memref<4x24x1xf32, #tpu.memory_space<vmem>>, vector<1x24x1xf32>
    %181 = vector.shape_cast %180 : vector<1x24x1xf32> to vector<24x1xf32>
    %182 = vector.broadcast %181 : vector<24x1xf32> to vector<24x512xf32>
    %183 = arith.addf %179, %182 : vector<24x512xf32>
    %184 = vector.extract_strided_slice %183 {offsets = [0, 0], sizes = [8, 512], strides = [1, 1]} : vector<24x512xf32> to vector<8x512xf32>
    %185 = arith.negf %184 : vector<8x512xf32>
    %186 = math.exp %185 : vector<8x512xf32>
    %cst_73 = arith.constant 1.000000e+00 : f32
    %187 = vector.broadcast %cst_73 : f32 to vector<8x512xf32>
    %188 = arith.addf %187, %186 : vector<8x512xf32>
    %189 = arith.divf %187, %188 : vector<8x512xf32>
    %190 = vector.extract_strided_slice %183 {offsets = [8, 0], sizes = [8, 512], strides = [1, 1]} : vector<24x512xf32> to vector<8x512xf32>
    %191 = arith.negf %190 : vector<8x512xf32>
    %192 = math.exp %191 : vector<8x512xf32>
    %cst_74 = arith.constant 1.000000e+00 : f32
    %193 = vector.broadcast %cst_74 : f32 to vector<8x512xf32>
    %194 = arith.addf %193, %192 : vector<8x512xf32>
    %195 = arith.divf %193, %194 : vector<8x512xf32>
    %196 = vector.extract_strided_slice %183 {offsets = [16, 0], sizes = [8, 512], strides = [1, 1]} : vector<24x512xf32> to vector<8x512xf32>
    %197 = math.tanh %196 : vector<8x512xf32>
    %198 = arith.mulf %189, %197 : vector<8x512xf32>
    %199 = math.tanh %198 : vector<8x512xf32>
    %200 = arith.mulf %195, %199 : vector<8x512xf32>
    %c2_75 = arith.constant 2 : index
    %c0_76 = arith.constant 0 : index
    %c0_77 = arith.constant 0 : index
    %201 = vector.load %arg5[%c2_75, %c0_76, %c0_77] : memref<4x8x1xf32, #tpu.memory_space<vmem>>, vector<1x8x1xf32>
    %202 = vector.shape_cast %201 : vector<1x8x1xf32> to vector<8x1xf32>
    %203 = vector.broadcast %202 : vector<8x1xf32> to vector<8x512xf32>
    %204 = arith.addf %200, %203 : vector<8x512xf32>
    %c17_i32_78 = arith.constant 17 : i32
    %205 = tpu.dynamic_rotate %204 by %c17_i32_78 dim 1 : vector<8x512xf32>, i32 -> vector<8x512xf32>
    %cst_79 = arith.constant 0.000000e+00 : f32
    %206 = vector.broadcast %cst_79 : f32 to vector<8x512xf32>
    %207 = arith.select %13, %205, %206 : vector<8x512xi1>, vector<8x512xf32>
    %208 = arith.truncf %207 : vector<8x512xf32> to vector<8x512xbf16>
    %c16_i32_80 = arith.constant 16 : i32
    %209 = tpu.dynamic_rotate %204 by %c16_i32_80 dim 1 : vector<8x512xf32>, i32 -> vector<8x512xf32>
    %cst_81 = arith.constant 0.000000e+00 : f32
    %210 = vector.broadcast %cst_81 : f32 to vector<8x512xf32>
    %211 = arith.select %6, %209, %210 : vector<8x512xi1>, vector<8x512xf32>
    %212 = arith.truncf %211 : vector<8x512xf32> to vector<8x512xbf16>
    %c15_i32_82 = arith.constant 15 : i32
    %213 = tpu.dynamic_rotate %204 by %c15_i32_82 dim 1 : vector<8x512xf32>, i32 -> vector<8x512xf32>
    %cst_83 = arith.constant 0.000000e+00 : f32
    %214 = vector.broadcast %cst_83 : f32 to vector<8x512xf32>
    %215 = arith.select %14, %213, %214 : vector<8x512xi1>, vector<8x512xf32>
    %216 = arith.truncf %215 : vector<8x512xf32> to vector<8x512xbf16>
    %c1_i32_84 = arith.constant 1 : i32
    %217 = tpu.dynamic_rotate %204 by %c1_i32_84 dim 1 : vector<8x512xf32>, i32 -> vector<8x512xf32>
    %cst_85 = arith.constant 0.000000e+00 : f32
    %218 = vector.broadcast %cst_85 : f32 to vector<8x512xf32>
    %219 = arith.select %10, %217, %218 : vector<8x512xi1>, vector<8x512xf32>
    %220 = arith.truncf %219 : vector<8x512xf32> to vector<8x512xbf16>
    %221 = arith.truncf %204 : vector<8x512xf32> to vector<8x512xbf16>
    %c511_i32_86 = arith.constant 511 : i32
    %222 = tpu.dynamic_rotate %204 by %c511_i32_86 dim 1 : vector<8x512xf32>, i32 -> vector<8x512xf32>
    %cst_87 = arith.constant 0.000000e+00 : f32
    %223 = vector.broadcast %cst_87 : f32 to vector<8x512xf32>
    %224 = arith.select %12, %222, %223 : vector<8x512xi1>, vector<8x512xf32>
    %225 = arith.truncf %224 : vector<8x512xf32> to vector<8x512xbf16>
    %c497_i32_88 = arith.constant 497 : i32
    %226 = tpu.dynamic_rotate %204 by %c497_i32_88 dim 1 : vector<8x512xf32>, i32 -> vector<8x512xf32>
    %cst_89 = arith.constant 0.000000e+00 : f32
    %227 = vector.broadcast %cst_89 : f32 to vector<8x512xf32>
    %228 = arith.select %15, %226, %227 : vector<8x512xi1>, vector<8x512xf32>
    %229 = arith.truncf %228 : vector<8x512xf32> to vector<8x512xbf16>
    %c496_i32_90 = arith.constant 496 : i32
    %230 = tpu.dynamic_rotate %204 by %c496_i32_90 dim 1 : vector<8x512xf32>, i32 -> vector<8x512xf32>
    %cst_91 = arith.constant 0.000000e+00 : f32
    %231 = vector.broadcast %cst_91 : f32 to vector<8x512xf32>
    %232 = arith.select %8, %230, %231 : vector<8x512xi1>, vector<8x512xf32>
    %233 = arith.truncf %232 : vector<8x512xf32> to vector<8x512xbf16>
    %c495_i32_92 = arith.constant 495 : i32
    %234 = tpu.dynamic_rotate %204 by %c495_i32_92 dim 1 : vector<8x512xf32>, i32 -> vector<8x512xf32>
    %cst_93 = arith.constant 0.000000e+00 : f32
    %235 = vector.broadcast %cst_93 : f32 to vector<8x512xf32>
    %236 = arith.select %16, %234, %235 : vector<8x512xi1>, vector<8x512xf32>
    %237 = arith.truncf %236 : vector<8x512xf32> to vector<8x512xbf16>
    %238 = tpu.concatenate %208, %212, %216, %220, %221, %225, %229, %233, %237 in 0 : vector<8x512xbf16>, vector<8x512xbf16>, vector<8x512xbf16>, vector<8x512xbf16>, vector<8x512xbf16>, vector<8x512xbf16>, vector<8x512xbf16>, vector<8x512xbf16>, vector<8x512xbf16> -> vector<72x512xbf16>
    %c3 = arith.constant 3 : index
    %c0_94 = arith.constant 0 : index
    %c0_95 = arith.constant 0 : index
    %239 = vector.load %arg3[%c3, %c0_94, %c0_95] : memref<4x24x72xbf16, #tpu.memory_space<vmem>>, vector<1x24x72xbf16>
    %240 = vector.shape_cast %239 : vector<1x24x72xbf16> to vector<24x72xbf16>
    %cst_96 = arith.constant dense<0.000000e+00> : vector<24x512xf32>
    %241 = tpu.matmul %240, %238, %cst_96 {dimension_numbers = #tpu.dot_dimension_numbers<[1], [0], [0], [1], [0, 0, 1, 1], [], []>} : vector<24x72xbf16>, vector<72x512xbf16>, vector<24x512xf32> -> vector<24x512xf32>
    %c3_97 = arith.constant 3 : index
    %c0_98 = arith.constant 0 : index
    %c0_99 = arith.constant 0 : index
    %242 = vector.load %arg4[%c3_97, %c0_98, %c0_99] : memref<4x24x1xf32, #tpu.memory_space<vmem>>, vector<1x24x1xf32>
    %243 = vector.shape_cast %242 : vector<1x24x1xf32> to vector<24x1xf32>
    %244 = vector.broadcast %243 : vector<24x1xf32> to vector<24x512xf32>
    %245 = arith.addf %241, %244 : vector<24x512xf32>
    %246 = vector.extract_strided_slice %245 {offsets = [0, 0], sizes = [8, 512], strides = [1, 1]} : vector<24x512xf32> to vector<8x512xf32>
    %247 = arith.negf %246 : vector<8x512xf32>
    %248 = math.exp %247 : vector<8x512xf32>
    %cst_100 = arith.constant 1.000000e+00 : f32
    %249 = vector.broadcast %cst_100 : f32 to vector<8x512xf32>
    %250 = arith.addf %249, %248 : vector<8x512xf32>
    %251 = arith.divf %249, %250 : vector<8x512xf32>
    %252 = vector.extract_strided_slice %245 {offsets = [8, 0], sizes = [8, 512], strides = [1, 1]} : vector<24x512xf32> to vector<8x512xf32>
    %253 = arith.negf %252 : vector<8x512xf32>
    %254 = math.exp %253 : vector<8x512xf32>
    %cst_101 = arith.constant 1.000000e+00 : f32
    %255 = vector.broadcast %cst_101 : f32 to vector<8x512xf32>
    %256 = arith.addf %255, %254 : vector<8x512xf32>
    %257 = arith.divf %255, %256 : vector<8x512xf32>
    %258 = vector.extract_strided_slice %245 {offsets = [16, 0], sizes = [8, 512], strides = [1, 1]} : vector<24x512xf32> to vector<8x512xf32>
    %259 = math.tanh %258 : vector<8x512xf32>
    %260 = arith.mulf %251, %259 : vector<8x512xf32>
    %261 = math.tanh %260 : vector<8x512xf32>
    %262 = arith.mulf %257, %261 : vector<8x512xf32>
    %c3_102 = arith.constant 3 : index
    %c0_103 = arith.constant 0 : index
    %c0_104 = arith.constant 0 : index
    %263 = vector.load %arg5[%c3_102, %c0_103, %c0_104] : memref<4x8x1xf32, #tpu.memory_space<vmem>>, vector<1x8x1xf32>
    %264 = vector.shape_cast %263 : vector<1x8x1xf32> to vector<8x1xf32>
    %265 = vector.broadcast %264 : vector<8x1xf32> to vector<8x512xf32>
    %266 = arith.addf %262, %265 : vector<8x512xf32>
    %c17_i32_105 = arith.constant 17 : i32
    %267 = tpu.dynamic_rotate %266 by %c17_i32_105 dim 1 : vector<8x512xf32>, i32 -> vector<8x512xf32>
    %cst_106 = arith.constant 0.000000e+00 : f32
    %268 = vector.broadcast %cst_106 : f32 to vector<8x512xf32>
    %269 = arith.select %13, %267, %268 : vector<8x512xi1>, vector<8x512xf32>
    %270 = arith.truncf %269 : vector<8x512xf32> to vector<8x512xbf16>
    %c16_i32_107 = arith.constant 16 : i32
    %271 = tpu.dynamic_rotate %266 by %c16_i32_107 dim 1 : vector<8x512xf32>, i32 -> vector<8x512xf32>
    %cst_108 = arith.constant 0.000000e+00 : f32
    %272 = vector.broadcast %cst_108 : f32 to vector<8x512xf32>
    %273 = arith.select %6, %271, %272 : vector<8x512xi1>, vector<8x512xf32>
    %274 = arith.truncf %273 : vector<8x512xf32> to vector<8x512xbf16>
    %c15_i32_109 = arith.constant 15 : i32
    %275 = tpu.dynamic_rotate %266 by %c15_i32_109 dim 1 : vector<8x512xf32>, i32 -> vector<8x512xf32>
    %cst_110 = arith.constant 0.000000e+00 : f32
    %276 = vector.broadcast %cst_110 : f32 to vector<8x512xf32>
    %277 = arith.select %14, %275, %276 : vector<8x512xi1>, vector<8x512xf32>
    %278 = arith.truncf %277 : vector<8x512xf32> to vector<8x512xbf16>
    %c1_i32_111 = arith.constant 1 : i32
    %279 = tpu.dynamic_rotate %266 by %c1_i32_111 dim 1 : vector<8x512xf32>, i32 -> vector<8x512xf32>
    %cst_112 = arith.constant 0.000000e+00 : f32
    %280 = vector.broadcast %cst_112 : f32 to vector<8x512xf32>
    %281 = arith.select %10, %279, %280 : vector<8x512xi1>, vector<8x512xf32>
    %282 = arith.truncf %281 : vector<8x512xf32> to vector<8x512xbf16>
    %283 = arith.truncf %266 : vector<8x512xf32> to vector<8x512xbf16>
    %c511_i32_113 = arith.constant 511 : i32
    %284 = tpu.dynamic_rotate %266 by %c511_i32_113 dim 1 : vector<8x512xf32>, i32 -> vector<8x512xf32>
    %cst_114 = arith.constant 0.000000e+00 : f32
    %285 = vector.broadcast %cst_114 : f32 to vector<8x512xf32>
    %286 = arith.select %12, %284, %285 : vector<8x512xi1>, vector<8x512xf32>
    %287 = arith.truncf %286 : vector<8x512xf32> to vector<8x512xbf16>
    %c497_i32_115 = arith.constant 497 : i32
    %288 = tpu.dynamic_rotate %266 by %c497_i32_115 dim 1 : vector<8x512xf32>, i32 -> vector<8x512xf32>
    %cst_116 = arith.constant 0.000000e+00 : f32
    %289 = vector.broadcast %cst_116 : f32 to vector<8x512xf32>
    %290 = arith.select %15, %288, %289 : vector<8x512xi1>, vector<8x512xf32>
    %291 = arith.truncf %290 : vector<8x512xf32> to vector<8x512xbf16>
    %c496_i32_117 = arith.constant 496 : i32
    %292 = tpu.dynamic_rotate %266 by %c496_i32_117 dim 1 : vector<8x512xf32>, i32 -> vector<8x512xf32>
    %cst_118 = arith.constant 0.000000e+00 : f32
    %293 = vector.broadcast %cst_118 : f32 to vector<8x512xf32>
    %294 = arith.select %8, %292, %293 : vector<8x512xi1>, vector<8x512xf32>
    %295 = arith.truncf %294 : vector<8x512xf32> to vector<8x512xbf16>
    %c495_i32_119 = arith.constant 495 : i32
    %296 = tpu.dynamic_rotate %266 by %c495_i32_119 dim 1 : vector<8x512xf32>, i32 -> vector<8x512xf32>
    %cst_120 = arith.constant 0.000000e+00 : f32
    %297 = vector.broadcast %cst_120 : f32 to vector<8x512xf32>
    %298 = arith.select %16, %296, %297 : vector<8x512xi1>, vector<8x512xf32>
    %299 = arith.truncf %298 : vector<8x512xf32> to vector<8x512xbf16>
    %300 = tpu.concatenate %270, %274, %278, %282, %283, %287, %291, %295, %299 in 0 : vector<8x512xbf16>, vector<8x512xbf16>, vector<8x512xbf16>, vector<8x512xbf16>, vector<8x512xbf16>, vector<8x512xbf16>, vector<8x512xbf16>, vector<8x512xbf16>, vector<8x512xbf16> -> vector<72x512xbf16>
    %c0_121 = arith.constant 0 : index
    %c0_122 = arith.constant 0 : index
    %301 = vector.load %arg6[%c0_121, %c0_122] : memref<2x72xbf16, #tpu.memory_space<vmem>>, vector<2x72xbf16>
    %cst_123 = arith.constant dense<0.000000e+00> : vector<2x512xf32>
    %302 = tpu.matmul %301, %300, %cst_123 {dimension_numbers = #tpu.dot_dimension_numbers<[1], [0], [0], [1], [0, 0, 1, 1], [], []>} : vector<2x72xbf16>, vector<72x512xbf16>, vector<2x512xf32> -> vector<2x512xf32>
    %c0_124 = arith.constant 0 : index
    %c0_125 = arith.constant 0 : index
    %303 = vector.load %arg7[%c0_124, %c0_125] : memref<2x1xf32, #tpu.memory_space<vmem>>, vector<2x1xf32>
    %304 = vector.broadcast %303 : vector<2x1xf32> to vector<2x512xf32>
    %305 = arith.addf %302, %304 : vector<2x512xf32>
    %306 = vector.extract_strided_slice %305 {offsets = [0, 0], sizes = [1, 256], strides = [1, 1]} : vector<2x512xf32> to vector<1x256xf32>
    %307 = vector.extract_strided_slice %305 {offsets = [1, 0], sizes = [1, 256], strides = [1, 1]} : vector<2x512xf32> to vector<1x256xf32>
    %308 = tpu.concatenate %306, %307 in 1 : vector<1x256xf32>, vector<1x256xf32> -> vector<1x512xf32>
    %309 = vector.extract_strided_slice %305 {offsets = [0, 256], sizes = [1, 256], strides = [1, 1]} : vector<2x512xf32> to vector<1x256xf32>
    %310 = vector.extract_strided_slice %305 {offsets = [1, 256], sizes = [1, 256], strides = [1, 1]} : vector<2x512xf32> to vector<1x256xf32>
    %311 = tpu.concatenate %309, %310 in 1 : vector<1x256xf32>, vector<1x256xf32> -> vector<1x512xf32>
    %312 = tpu.concatenate %308, %311 in 0 : vector<1x512xf32>, vector<1x512xf32> -> vector<2x512xf32>
    %313 = arith.truncf %312 : vector<2x512xf32> to vector<2x512xbf16>
    %c0_126 = arith.constant 0 : index
    %c0_127 = arith.constant 0 : index
    %314 = vector.load %arg8[%c0_126, %c0_127] : memref<512x256xbf16, #tpu.memory_space<vmem>>, vector<512x256xbf16>
    %cst_128 = arith.constant dense<0.000000e+00> : vector<2x256xf32>
    %315 = tpu.matmul %313, %314, %cst_128 {dimension_numbers = #tpu.dot_dimension_numbers<[1], [0], [0], [1], [0, 0, 1, 1], [], []>} : vector<2x512xbf16>, vector<512x256xbf16>, vector<2x256xf32> -> vector<2x256xf32>
    %c0_129 = arith.constant 0 : index
    %c0_130 = arith.constant 0 : index
    %c0_131 = arith.constant 0 : index
    %316 = vector.load %arg2[%c0_129, %c0_130, %c0_131] : memref<1x2x256xf32, #tpu.memory_space<vmem>>, vector<1x2x256xf32>
    %317 = vector.shape_cast %316 : vector<1x2x256xf32> to vector<2x256xf32>
    %318 = arith.addf %315, %317 : vector<2x256xf32>
    %319 = arith.negf %318 : vector<2x256xf32>
    %320 = math.exp %319 : vector<2x256xf32>
    %cst_132 = arith.constant 1.000000e+00 : f32
    %321 = vector.broadcast %cst_132 : f32 to vector<2x256xf32>
    %322 = arith.addf %321, %320 : vector<2x256xf32>
    %323 = arith.divf %321, %322 : vector<2x256xf32>
    %c0_133 = arith.constant 0 : index
    %c0_134 = arith.constant 0 : index
    %c0_135 = arith.constant 0 : index
    %324 = vector.load %arg9[%c0_133, %c0_134, %c0_135] : memref<1x2x256xf32, #tpu.memory_space<vmem>>, vector<1x2x256xf32>
    %325 = vector.shape_cast %324 : vector<1x2x256xf32> to vector<2x256xf32>
    %326 = vector.shape_cast %323 : vector<2x256xf32> to vector<1x2x256xf32>
    tpu.vector_store %arg9[%c0_133, %c0_134, %c0_135], %326 {strides = array<i32>} : memref<1x2x256xf32, #tpu.memory_space<vmem>>, vector<1x2x256xf32>,
    return
  }
  func.func @transform_0(%arg0: i32) -> (i32, i32, i32) {
    %c0_i32 = arith.constant 0 : i32
    %c0_i32_0 = arith.constant 0 : i32
    %c0_i32_1 = arith.constant 0 : i32
    return %arg0, %c0_i32, %c0_i32_0 : i32, i32, i32
  }
  func.func @transform_1(%arg0: i32) -> (i32, i32, i32) {
    %c0_i32 = arith.constant 0 : i32
    %c0_i32_0 = arith.constant 0 : i32
    %c0_i32_1 = arith.constant 0 : i32
    return %arg0, %c0_i32, %c0_i32_0 : i32, i32, i32
  }
  func.func @transform_2(%arg0: i32) -> (i32, i32, i32) {
    %c0_i32 = arith.constant 0 : i32
    %c0_i32_0 = arith.constant 0 : i32
    %c0_i32_1 = arith.constant 0 : i32
    %c0_i32_2 = arith.constant 0 : i32
    return %c0_i32, %c0_i32_0, %c0_i32_1 : i32, i32, i32
  }
  func.func @transform_3(%arg0: i32) -> (i32, i32, i32) {
    %c0_i32 = arith.constant 0 : i32
    %c0_i32_0 = arith.constant 0 : i32
    %c0_i32_1 = arith.constant 0 : i32
    %c0_i32_2 = arith.constant 0 : i32
    return %c0_i32, %c0_i32_0, %c0_i32_1 : i32, i32, i32
  }
  func.func @transform_4(%arg0: i32) -> (i32, i32, i32) {
    %c0_i32 = arith.constant 0 : i32
    %c0_i32_0 = arith.constant 0 : i32
    %c0_i32_1 = arith.constant 0 : i32
    %c0_i32_2 = arith.constant 0 : i32
    return %c0_i32, %c0_i32_0, %c0_i32_1 : i32, i32, i32
  }
  func.func @transform_5(%arg0: i32) -> (i32, i32) {
    %c0_i32 = arith.constant 0 : i32
    %c0_i32_0 = arith.constant 0 : i32
    %c0_i32_1 = arith.constant 0 : i32
    return %c0_i32, %c0_i32_0 : i32, i32
  }
  func.func @transform_6(%arg0: i32) -> (i32, i32) {
    %c0_i32 = arith.constant 0 : i32
    %c0_i32_0 = arith.constant 0 : i32
    %c0_i32_1 = arith.constant 0 : i32
    return %c0_i32, %c0_i32_0 : i32, i32
  }
  func.func @transform_7(%arg0: i32) -> (i32, i32) {
    %c0_i32 = arith.constant 0 : i32
    %c0_i32_0 = arith.constant 0 : i32
    %c0_i32_1 = arith.constant 0 : i32
    return %c0_i32, %c0_i32_0 : i32, i32
  }
  func.func @transform_8(%arg0: i32) -> (i32, i32, i32) {
    %c0_i32 = arith.constant 0 : i32
    %c0_i32_0 = arith.constant 0 : i32
    %c0_i32_1 = arith.constant 0 : i32
    return %arg0, %c0_i32, %c0_i32_0 : i32, i32, i32
  }
}

</mosaic_0001>

<llo_original>
// kernel: squeeze.1
$region0: #{squeeze.1}
  %s0 = inlined_call_operand.vmem [shape: f32[2,1,4,16,16], index: 0, kind: input, shape index: {}]
  %s1 = inlined_call_operand.vmem [shape: f32[2,4,256], index: 1, kind: output, shape index: {}]
  $region1: #{squeeze.1} parent=0
    #allocation0 [shape = 'u8[16384]{0}', space=vmem, size = 0x4000, scoped, tag = 'scoped mem for output reshape']
    %v2 = vld [vmem:[%s0] ss:$8 sm:$0xf]
    %v3 = vld [vmem:[%s0] ss:$8 sm:$0xf0]
    %vm4 = vcmask 1047556
    %v5 = vsel %vm4, %v3, %v2
    %vm6 = vcmask 130048
    %7 = vst.msk [vmem:[#allocation0] ss:$8 sm:$0x3] %vm6, %v5
    %s8 = scalar_lea.vmem [#allocation0], 4294967281
    %9 = vst.msk [vmem:[%s8] ss:$8 sm:$0xc] %vm6, %v5
    %s10 = scalar_lea.vmem [#allocation0], 4294967266
    %11 = vst.msk [vmem:[%s10] ss:$8 sm:$0x30] %vm6, %v5
    %s12 = scalar_lea.vmem [#allocation0], 4294967251
    %13 = vst.msk [vmem:[%s12] ss:$8 sm:$0xc0] %vm6, %v5
    %s14 = scalar_lea.vmem %s0, 64
    %v15 = vld [vmem:[%s14] ss:$8 sm:$0xf]
    %s16 = scalar_lea.vmem %s0, 64
    %v17 = vld [vmem:[%s16] ss:$8 sm:$0xf0]
    %vm18 = vcmask 1047556
    %v19 = vsel %vm18, %v17, %v15
    %vm20 = vcmask 130048
    %s21 = scalar_lea.vmem [#allocation0], 16
    %22 = vst.msk [vmem:[%s21] ss:$8 sm:$0x3] %vm20, %v19
    %s23 = scalar_lea.vmem [#allocation0], 1
    %24 = vst.msk [vmem:[%s23] ss:$8 sm:$0xc] %vm20, %v19
    %s25 = scalar_lea.vmem [#allocation0], 4294967282
    %26 = vst.msk [vmem:[%s25] ss:$8 sm:$0x30] %vm20, %v19
    %s27 = scalar_lea.vmem [#allocation0], 4294967267
    %28 = vst.msk [vmem:[%s27] ss:$8 sm:$0xc0] %vm20, %v19
    %s29 = scalar_lea.vmem %s0, 7
    %s30 = smov 3
    %v31 = vld [vmem:[%s29] ss:$16 sm:%s30]
    %s32 = scalar_lea.vmem %s0, 7
    %s33 = smov 12
    %v34 = vld [vmem:[%s32] ss:$16 sm:%s33]
    %vm35 = vcmask 1043458
    %v36 = vsel %vm35, %v34, %v31
    %s37 = scalar_lea.vmem %s0, 4294967247
    %s38 = smov 48
    %v39 = vld [vmem:[%s37] ss:$16 sm:%s38]
    %vm40 = vcmask 1045508
    %v41 = vsel %vm40, %v39, %v36
    %s42 = scalar_lea.vmem %s0, 4294967247
    %s43 = smov 192
    %v44 = vld [vmem:[%s42] ss:$16 sm:%s43]
    %vm45 = vcmask 1047558
    %v46 = vsel %vm45, %v44, %v41
    %47 = vrot.lane.b32.xlu0 %v46, 112
    %v48 = vpop.permute.xlu0 %47
    %vm49 = vcmask 1048448
    %50 = vst.msk [vmem:[#allocation0] sm:$0xf] %vm49, %v48
    %s51 = scalar_lea.vmem [#allocation0], 4
    %52 = vst.msk [vmem:[%s51] sm:$0xf0] %vm49, %v48
    %s53 = scalar_lea.vmem %s0, 71
    %s54 = smov 3
    %v55 = vld [vmem:[%s53] ss:$16 sm:%s54]
    %s56 = scalar_lea.vmem %s0, 71
    %s57 = smov 12
    %v58 = vld [vmem:[%s56] ss:$16 sm:%s57]
    %vm59 = vcmask 1043458
    %v60 = vsel %vm59, %v58, %v55
    %s61 = scalar_lea.vmem %s0, 15
    %s62 = smov 48
    %v63 = vld [vmem:[%s61] ss:$16 sm:%s62]
    %vm64 = vcmask 1045508
    %v65 = vsel %vm64, %v63, %v60
    %s66 = scalar_lea.vmem %s0, 15
    %s67 = smov 192
    %v68 = vld [vmem:[%s66] ss:$16 sm:%s67]
    %vm69 = vcmask 1047558
    %v70 = vsel %vm69, %v68, %v65
    %71 = vrot.lane.b32.xlu0 %v70, 112
    %v72 = vpop.permute.xlu0 %71
    %vm73 = vcmask 1048448
    %s74 = scalar_lea.vmem [#allocation0], 16
    %75 = vst.msk [vmem:[%s74] sm:$0xf] %vm73, %v72
    %s76 = scalar_lea.vmem [#allocation0], 20
    %77 = vst.msk [vmem:[%s76] sm:$0xf0] %vm73, %v72
    %s78 = scalar_lea.vmem %s0, 6
    %s79 = smov 3
    %v80 = vld [vmem:[%s78] ss:$16 sm:%s79]
    %s81 = scalar_lea.vmem %s0, 6
    %s82 = smov 12
    %v83 = vld [vmem:[%s81] ss:$16 sm:%s82]
    %vm84 = vcmask 1043458
    %v85 = vsel %vm84, %v83, %v80
    %s86 = scalar_lea.vmem %s0, 4294967246
    %s87 = smov 48
    %v88 = vld [vmem:[%s86] ss:$16 sm:%s87]
    %vm89 = vcmask 1045508
    %v90 = vsel %vm89, %v88, %v85
    %s91 = scalar_lea.vmem %s0, 4294967246
    %s92 = smov 192
    %v93 = vld [vmem:[%s91] ss:$16 sm:%s92]
    %vm94 = vcmask 1047558
    %v95 = vsel %vm94, %v93, %v90
    %96 = vrot.lane.b32.xlu0 %v95, 96
    %v97 = vpop.permute.xlu0 %96
    %vm98 = vcmask 917248
    %99 = vst.msk [vmem:[#allocation0] sm:$0xf] %vm98, %v97
    %s100 = scalar_lea.vmem [#allocation0], 4
    %101 = vst.msk [vmem:[%s100] sm:$0xf0] %vm98, %v97
    %s102 = scalar_lea.vmem %s0, 70
    %s103 = smov 3
    %v104 = vld [vmem:[%s102] ss:$16 sm:%s103]
    %s105 = scalar_lea.vmem %s0, 70
    %s106 = smov 12
    %v107 = vld [vmem:[%s105] ss:$16 sm:%s106]
    %vm108 = vcmask 1043458
    %v109 = vsel %vm108, %v107, %v104
    %s110 = scalar_lea.vmem %s0, 14
    %s111 = smov 48
    %v112 = vld [vmem:[%s110] ss:$16 sm:%s111]
    %vm113 = vcmask 1045508
    %v114 = vsel %vm113, %v112, %v109
    %s115 = scalar_lea.vmem %s0, 14
    %s116 = smov 192
    %v117 = vld [vmem:[%s115] ss:$16 sm:%s116]
    %vm118 = vcmask 1047558
    %v119 = vsel %vm118, %v117, %v114
    %120 = vrot.lane.b32.xlu0 %v119, 96
    %v121 = vpop.permute.xlu0 %120
    %vm122 = vcmask 917248
    %s123 = scalar_lea.vmem [#allocation0], 16
    %124 = vst.msk [vmem:[%s123] sm:$0xf] %vm122, %v121
    %s125 = scalar_lea.vmem [#allocation0], 20
    %126 = vst.msk [vmem:[%s125] sm:$0xf0] %vm122, %v121
    %s127 = scalar_lea.vmem %s0, 5
    %s128 = smov 3
    %v129 = vld [vmem:[%s127] ss:$16 sm:%s128]
    %s130 = scalar_lea.vmem %s0, 5
    %s131 = smov 12
    %v132 = vld [vmem:[%s130] ss:$16 sm:%s131]
    %vm133 = vcmask 1043458
    %v134 = vsel %vm133, %v132, %v129
    %s135 = scalar_lea.vmem %s0, 4294967245
    %s136 = smov 48
    %v137 = vld [vmem:[%s135] ss:$16 sm:%s136]
    %vm138 = vcmask 1045508
    %v139 = vsel %vm138, %v137, %v134
    %s140 = scalar_lea.vmem %s0, 4294967245
    %s141 = smov 192
    %v142 = vld [vmem:[%s140] ss:$16 sm:%s141]
    %vm143 = vcmask 1047558
    %v144 = vsel %vm143, %v142, %v139
    %145 = vrot.lane.b32.xlu0 %v144, 80
    %v146 = vpop.permute.xlu0 %145
    %vm147 = vcmask 786048
    %148 = vst.msk [vmem:[#allocation0] sm:$0xf] %vm147, %v146
    %s149 = scalar_lea.vmem [#allocation0], 4
    %150 = vst.msk [vmem:[%s149] sm:$0xf0] %vm147, %v146
    %s151 = scalar_lea.vmem %s0, 69
    %s152 = smov 3
    %v153 = vld [vmem:[%s151] ss:$16 sm:%s152]
    %s154 = scalar_lea.vmem %s0, 69
    %s155 = smov 12
    %v156 = vld [vmem:[%s154] ss:$16 sm:%s155]
    %vm157 = vcmask 1043458
    %v158 = vsel %vm157, %v156, %v153
    %s159 = scalar_lea.vmem %s0, 13
    %s160 = smov 48
    %v161 = vld [vmem:[%s159] ss:$16 sm:%s160]
    %vm162 = vcmask 1045508
    %v163 = vsel %vm162, %v161, %v158
    %s164 = scalar_lea.vmem %s0, 13
    %s165 = smov 192
    %v166 = vld [vmem:[%s164] ss:$16 sm:%s165]
    %vm167 = vcmask 1047558
    %v168 = vsel %vm167, %v166, %v163
    %169 = vrot.lane.b32.xlu0 %v168, 80
    %v170 = vpop.permute.xlu0 %169
    %vm171 = vcmask 786048
    %s172 = scalar_lea.vmem [#allocation0], 16
    %173 = vst.msk [vmem:[%s172] sm:$0xf] %vm171, %v170
    %s174 = scalar_lea.vmem [#allocation0], 20
    %175 = vst.msk [vmem:[%s174] sm:$0xf0] %vm171, %v170
    %s176 = scalar_lea.vmem %s0, 4
    %s177 = smov 3
    %v178 = vld [vmem:[%s176] ss:$16 sm:%s177]
    %s179 = scalar_lea.vmem %s0, 4
    %s180 = smov 12
    %v181 = vld [vmem:[%s179] ss:$16 sm:%s180]
    %vm182 = vcmask 1043458
    %v183 = vsel %vm182, %v181, %v178
    %s184 = scalar_lea.vmem %s0, 4294967244
    %s185 = smov 48
    %v186 = vld [vmem:[%s184] ss:$16 sm:%s185]
    %vm187 = vcmask 1045508
    %v188 = vsel %vm187, %v186, %v183
    %s189 = scalar_lea.vmem %s0, 4294967244
    %s190 = smov 192
    %v191 = vld [vmem:[%s189] ss:$16 sm:%s190]
    %vm192 = vcmask 1047558
    %v193 = vsel %vm192, %v191, %v188
    %194 = vrot.lane.b32.xlu0 %v193, 64
    %v195 = vpop.permute.xlu0 %194
    %vm196 = vcmask 654848
    %197 = vst.msk [vmem:[#allocation0] sm:$0xf] %vm196, %v195
    %s198 = scalar_lea.vmem [#allocation0], 4
    %199 = vst.msk [vmem:[%s198] sm:$0xf0] %vm196, %v195
    %s200 = scalar_lea.vmem %s0, 68
    %s201 = smov 3
    %v202 = vld [vmem:[%s200] ss:$16 sm:%s201]
    %s203 = scalar_lea.vmem %s0, 68
    %s204 = smov 12
    %v205 = vld [vmem:[%s203] ss:$16 sm:%s204]
    %vm206 = vcmask 1043458
    %v207 = vsel %vm206, %v205, %v202
    %s208 = scalar_lea.vmem %s0, 12
    %s209 = smov 48
    %v210 = vld [vmem:[%s208] ss:$16 sm:%s209]
    %vm211 = vcmask 1045508
    %v212 = vsel %vm211, %v210, %v207
    %s213 = scalar_lea.vmem %s0, 12
    %s214 = smov 192
    %v215 = vld [vmem:[%s213] ss:$16 sm:%s214]
    %vm216 = vcmask 1047558
    %v217 = vsel %vm216, %v215, %v212
    %218 = vrot.lane.b32.xlu0 %v217, 64
    %v219 = vpop.permute.xlu0 %218
    %vm220 = vcmask 654848
    %s221 = scalar_lea.vmem [#allocation0], 16
    %222 = vst.msk [vmem:[%s221] sm:$0xf] %vm220, %v219
    %s223 = scalar_lea.vmem [#allocation0], 20
    %224 = vst.msk [vmem:[%s223] sm:$0xf0] %vm220, %v219
    %s225 = scalar_lea.vmem %s0, 3
    %s226 = smov 3
    %v227 = vld [vmem:[%s225] ss:$16 sm:%s226]
    %s228 = scalar_lea.vmem %s0, 3
    %s229 = smov 12
    %v230 = vld [vmem:[%s228] ss:$16 sm:%s229]
    %vm231 = vcmask 1043458
    %v232 = vsel %vm231, %v230, %v227
    %s233 = scalar_lea.vmem %s0, 4294967243
    %s234 = smov 48
    %v235 = vld [vmem:[%s233] ss:$16 sm:%s234]
    %vm236 = vcmask 1045508
    %v237 = vsel %vm236, %v235, %v232
    %s238 = scalar_lea.vmem %s0, 4294967243
    %s239 = smov 192
    %v240 = vld [vmem:[%s238] ss:$16 sm:%s239]
    %vm241 = vcmask 1047558
    %v242 = vsel %vm241, %v240, %v237
    %243 = vrot.lane.b32.xlu0 %v242, 48
    %v244 = vpop.permute.xlu0 %243
    %vm245 = vcmask 523648
    %246 = vst.msk [vmem:[#allocation0] sm:$0xf] %vm245, %v244
    %s247 = scalar_lea.vmem [#allocation0], 4
    %248 = vst.msk [vmem:[%s247] sm:$0xf0] %vm245, %v244
    %s249 = scalar_lea.vmem %s0, 67
    %s250 = smov 3
    %v251 = vld [vmem:[%s249] ss:$16 sm:%s250]
    %s252 = scalar_lea.vmem %s0, 67
    %s253 = smov 12
    %v254 = vld [vmem:[%s252] ss:$16 sm:%s253]
    %vm255 = vcmask 1043458
    %v256 = vsel %vm255, %v254, %v251
    %s257 = scalar_lea.vmem %s0, 11
    %s258 = smov 48
    %v259 = vld [vmem:[%s257] ss:$16 sm:%s258]
    %vm260 = vcmask 1045508
    %v261 = vsel %vm260, %v259, %v256
    %s262 = scalar_lea.vmem %s0, 11
    %s263 = smov 192
    %v264 = vld [vmem:[%s262] ss:$16 sm:%s263]
    %vm265 = vcmask 1047558
    %v266 = vsel %vm265, %v264, %v261
    %267 = vrot.lane.b32.xlu0 %v266, 48
    %v268 = vpop.permute.xlu0 %267
    %vm269 = vcmask 523648
    %s270 = scalar_lea.vmem [#allocation0], 16
    %271 = vst.msk [vmem:[%s270] sm:$0xf] %vm269, %v268
    %s272 = scalar_lea.vmem [#allocation0], 20
    %273 = vst.msk [vmem:[%s272] sm:$0xf0] %vm269, %v268
    %s274 = scalar_lea.vmem %s0, 2
    %s275 = smov 3
    %v276 = vld [vmem:[%s274] ss:$16 sm:%s275]
    %s277 = scalar_lea.vmem %s0, 2
    %s278 = smov 12
    %v279 = vld [vmem:[%s277] ss:$16 sm:%s278]
    %vm280 = vcmask 1043458
    %v281 = vsel %vm280, %v279, %v276
    %s282 = scalar_lea.vmem %s0, 4294967242
    %s283 = smov 48
    %v284 = vld [vmem:[%s282] ss:$16 sm:%s283]
    %vm285 = vcmask 1045508
    %v286 = vsel %vm285, %v284, %v281
    %s287 = scalar_lea.vmem %s0, 4294967242
    %s288 = smov 192
    %v289 = vld [vmem:[%s287] ss:$16 sm:%s288]
    %vm290 = vcmask 1047558
    %v291 = vsel %vm290, %v289, %v286
    %292 = vrot.lane.b32.xlu0 %v291, 32
    %v293 = vpop.permute.xlu0 %292
    %vm294 = vcmask 392448
    %295 = vst.msk [vmem:[#allocation0] sm:$0xf] %vm294, %v293
    %s296 = scalar_lea.vmem [#allocation0], 4
    %297 = vst.msk [vmem:[%s296] sm:$0xf0] %vm294, %v293
    %s298 = scalar_lea.vmem %s0, 66
    %s299 = smov 3
    %v300 = vld [vmem:[%s298] ss:$16 sm:%s299]
    %s301 = scalar_lea.vmem %s0, 66
    %s302 = smov 12
    %v303 = vld [vmem:[%s301] ss:$16 sm:%s302]
    %vm304 = vcmask 1043458
    %v305 = vsel %vm304, %v303, %v300
    %s306 = scalar_lea.vmem %s0, 10
    %s307 = smov 48
    %v308 = vld [vmem:[%s306] ss:$16 sm:%s307]
    %vm309 = vcmask 1045508
    %v310 = vsel %vm309, %v308, %v305
    %s311 = scalar_lea.vmem %s0, 10
    %s312 = smov 192
    %v313 = vld [vmem:[%s311] ss:$16 sm:%s312]
    %vm314 = vcmask 1047558
    %v315 = vsel %vm314, %v313, %v310
    %316 = vrot.lane.b32.xlu0 %v315, 32
    %v317 = vpop.permute.xlu0 %316
    %vm318 = vcmask 392448
    %s319 = scalar_lea.vmem [#allocation0], 16
    %320 = vst.msk [vmem:[%s319] sm:$0xf] %vm318, %v317
    %s321 = scalar_lea.vmem [#allocation0], 20
    %322 = vst.msk [vmem:[%s321] sm:$0xf0] %vm318, %v317
    %s323 = scalar_lea.vmem %s0, 1
    %s324 = smov 3
    %v325 = vld [vmem:[%s323] ss:$16 sm:%s324]
    %s326 = scalar_lea.vmem %s0, 1
    %s327 = smov 12
    %v328 = vld [vmem:[%s326] ss:$16 sm:%s327]
    %vm329 = vcmask 1043458
    %v330 = vsel %vm329, %v328, %v325
    %s331 = scalar_lea.vmem %s0, 4294967241
    %s332 = smov 48
    %v333 = vld [vmem:[%s331] ss:$16 sm:%s332]
    %vm334 = vcmask 1045508
    %v335 = vsel %vm334, %v333, %v330
    %s336 = scalar_lea.vmem %s0, 4294967241
    %s337 = smov 192
    %v338 = vld [vmem:[%s336] ss:$16 sm:%s337]
    %vm339 = vcmask 1047558
    %v340 = vsel %vm339, %v338, %v335
    %341 = vrot.lane.b32.xlu0 %v340, 16
    %v342 = vpop.permute.xlu0 %341
    %vm343 = vcmask 261248
    %344 = vst.msk [vmem:[#allocation0] sm:$0xf] %vm343, %v342
    %s345 = scalar_lea.vmem [#allocation0], 4
    %346 = vst.msk [vmem:[%s345] sm:$0xf0] %vm343, %v342
    %s347 = scalar_lea.vmem %s0, 65
    %s348 = smov 3
    %v349 = vld [vmem:[%s347] ss:$16 sm:%s348]
    %s350 = scalar_lea.vmem %s0, 65
    %s351 = smov 12
    %v352 = vld [vmem:[%s350] ss:$16 sm:%s351]
    %vm353 = vcmask 1043458
    %v354 = vsel %vm353, %v352, %v349
    %s355 = scalar_lea.vmem %s0, 9
    %s356 = smov 48
    %v357 = vld [vmem:[%s355] ss:$16 sm:%s356]
    %vm358 = vcmask 1045508
    %v359 = vsel %vm358, %v357, %v354
    %s360 = scalar_lea.vmem %s0, 9
    %s361 = smov 192
    %v362 = vld [vmem:[%s360] ss:$16 sm:%s361]
    %vm363 = vcmask 1047558
    %v364 = vsel %vm363, %v362, %v359
    %365 = vrot.lane.b32.xlu0 %v364, 16
    %v366 = vpop.permute.xlu0 %365
    %vm367 = vcmask 261248
    %s368 = scalar_lea.vmem [#allocation0], 16
    %369 = vst.msk [vmem:[%s368] sm:$0xf] %vm367, %v366
    %s370 = scalar_lea.vmem [#allocation0], 20
    %371 = vst.msk [vmem:[%s370] sm:$0xf0] %vm367, %v366
    %s373 = sshll.u32 1, 4
    %s374 = ssub.s32 %s373, 1
    %v376 = vld [vmem:[#allocation0] sm:%s374]
    %s377 = sshll.u32 1, 4
    %s378 = ssub.s32 %s377, 1
    %379 = vst [vmem:[%s1] sm:%s378] %v376
    %s380 = scalar_lea.vmem [#allocation0], 8
    %v381 = vld [vmem:[%s380] sm:%s374]
    %s382 = sshll.u32 1, 4
    %s383 = ssub.s32 %s382, 1
    %s384 = scalar_lea.vmem %s1, 4
    %385 = vst [vmem:[%s384] sm:%s383] %v381
    %s386 = scalar_lea.vmem [#allocation0], 16
    %v387 = vld [vmem:[%s386] sm:%s374]
    %s388 = sshll.u32 1, 4
    %s389 = ssub.s32 %s388, 1
    %s390 = smul.addr 4, 2
    %s391 = scalar_lea.vmem %s1, %s390
    %392 = vst [vmem:[%s391] sm:%s389] %v387
    %s393 = scalar_lea.vmem [#allocation0], 24
    %v394 = vld [vmem:[%s393] sm:%s374]
    %s395 = sshll.u32 1, 4
    %s396 = ssub.s32 %s395, 1
    %s397 = smul.addr 4, 3
    %s398 = scalar_lea.vmem %s1, %s397
    %399 = vst [vmem:[%s398] sm:%s396] %v394

// kernel: hotspot_predictor_forward.1
$region0: #{hotspot_predictor_forward.1}
  #allocation0 [shape = 'u32[]', space=smem, size = 0x4, offset = 0x4, fixed_abs, tag = 'smem constant byte address 0x4 - core index']
  #allocation1 [shape = 'u32[144,128]{1,0:T(1,128)}', space=vmem, size = 0x12000, scoped, tag = 'internal scratch']
  %s0 = inlined_call_operand.vmem [shape: f32[1,8,512], index: 0, kind: input, shape index: {}]
  %s1 = inlined_call_operand.vmem [shape: f32[1,2,256], index: 1, kind: input, shape index: {}]
  %s2 = inlined_call_operand.vmem [shape: bf16[4,24,72], index: 2, kind: input, shape index: {}]
  %s3 = inlined_call_operand.vmem [shape: f32[4,24,1], index: 3, kind: input, shape index: {}]
  %s4 = inlined_call_operand.vmem [shape: f32[4,8,1], index: 4, kind: input, shape index: {}]
  %s5 = inlined_call_operand.vmem [shape: bf16[2,72], index: 5, kind: input, shape index: {}]
  %s6 = inlined_call_operand.vmem [shape: f32[2,1], index: 6, kind: input, shape index: {}]
  %s7 = inlined_call_operand.vmem [shape: bf16[512,256], index: 7, kind: input, shape index: {}]
  %s8 = inlined_call_operand.vmem [shape: f32[1,2,256], index: 8, kind: output, shape index: {}]
  %s9 = sld [smem:[#allocation0]]
  $region42: #{hotspot_predictor_forward.1} parent=0
    _
  %s11 = ssub.s32 1, %s9
  %s12 = scalar_select 0, %s11, %s9
  // Predicated region
  $region2: #{hotspot_predictor_forward.1} parent=0 // pred_check
    _
  $region3: #{hotspot_predictor_forward.1} parent=0 // pred_check_branch
    %14 = sbr.rel (0) target = $region5
  $region4: #{hotspot_predictor_forward.1} parent=0 // pred_region
    _
  $region5: #{hotspot_predictor_forward.1} parent=0 // pred_fallthru
    _
  // Predicated region
  $region6: #{hotspot_predictor_forward.1} parent=0 // pred_check
    _
  $region7: #{hotspot_predictor_forward.1} parent=0 // pred_check_branch
    %16 = sbr.rel (0) target = $region9
  $region8: #{hotspot_predictor_forward.1} parent=0 // pred_region
    _
  $region9: #{hotspot_predictor_forward.1} parent=0 // pred_fallthru
    _
  // Predicated region
  $region10: #{hotspot_predictor_forward.1} parent=0 // pred_check
    _
  $region11: #{hotspot_predictor_forward.1} parent=0 // pred_check_branch
    %18 = sbr.rel (0) target = $region13
  $region12: #{hotspot_predictor_forward.1} parent=0 // pred_region
    _
  $region13: #{hotspot_predictor_forward.1} parent=0 // pred_fallthru
    _
  // Predicated region
  $region14: #{hotspot_predictor_forward.1} parent=0 // pred_check
    _
  $region15: #{hotspot_predictor_forward.1} parent=0 // pred_check_branch
    %20 = sbr.rel (0) target = $region17
  $region16: #{hotspot_predictor_forward.1} parent=0 // pred_region
    _
  $region17: #{hotspot_predictor_forward.1} parent=0 // pred_fallthru
    _
  // Predicated region
  $region18: #{hotspot_predictor_forward.1} parent=0 // pred_check
    _
  $region19: #{hotspot_predictor_forward.1} parent=0 // pred_check_branch
    %22 = sbr.rel (0) target = $region21
  $region20: #{hotspot_predictor_forward.1} parent=0 // pred_region
    _
  $region21: #{hotspot_predictor_forward.1} parent=0 // pred_fallthru
    _
  // Predicated region
  $region22: #{hotspot_predictor_forward.1} parent=0 // pred_check
    _
  $region23: #{hotspot_predictor_forward.1} parent=0 // pred_check_branch
    %24 = sbr.rel (0) target = $region25
  $region24: #{hotspot_predictor_forward.1} parent=0 // pred_region
    _
  $region25: #{hotspot_predictor_forward.1} parent=0 // pred_fallthru
    _
  // Predicated region
  $region26: #{hotspot_predictor_forward.1} parent=0 // pred_check
    _
  $region27: #{hotspot_predictor_forward.1} parent=0 // pred_check_branch
    %26 = sbr.rel (0) target = $region29
  $region28: #{hotspot_predictor_forward.1} parent=0 // pred_region
    _
  $region29: #{hotspot_predictor_forward.1} parent=0 // pred_fallthru
    _
  // Predicated region
  $region30: #{hotspot_predictor_forward.1} parent=0 // pred_check
    _
  $region31: #{hotspot_predictor_forward.1} parent=0 // pred_check_branch
    %28 = sbr.rel (0) target = $region33
  $region32: #{hotspot_predictor_forward.1} parent=0 // pred_region
    _
  $region33: #{hotspot_predictor_forward.1} parent=0 // pred_fallthru
    _
  %v30 = vlaneseq
  %v31 = vand.u32 %v30, 127
  %v32 = vadd.s32 %v31, 128
  %v33 = vadd.s32 %v31, 256
  %v34 = vadd.s32 %v31, 384
  %v35 = vand.u32 %v31, 255
  %v36 = vand.u32 %v32, 255
  %v37 = vand.u32 %v33, 255
  %v38 = vand.u32 %v34, 255
  %v39 = vand.u32 %v35, 15
  %v40 = vand.u32 %v36, 15
  %v41 = vand.u32 %v37, 15
  %v42 = vand.u32 %v38, 15
  %vm43 = vcmp.ge.s32.totalorder %v35, 16
  %vm44 = vcmp.ge.s32.totalorder %v36, 16
  %vm45 = vcmp.ge.s32.totalorder %v37, 16
  %vm46 = vcmp.ge.s32.totalorder %v38, 16
  %vm47 = vcmp.lt.s32.totalorder %v35, 240
  %vm48 = vcmp.lt.s32.totalorder %v36, 240
  %vm49 = vcmp.lt.s32.totalorder %v37, 240
  %vm50 = vcmp.lt.s32.totalorder %v38, 240
  %vm51 = vcmp.ge.s32.totalorder %v39, 1
  %vm52 = vcmp.ge.s32.totalorder %v40, 1
  %vm53 = vcmp.ge.s32.totalorder %v41, 1
  %vm54 = vcmp.ge.s32.totalorder %v42, 1
  %vm55 = vcmp.le.s32.totalorder %v39, 14
  %vm56 = vcmp.le.s32.totalorder %v40, 14
  %vm57 = vcmp.le.s32.totalorder %v41, 14
  %vm58 = vcmp.le.s32.totalorder %v42, 14
  %vm59 = vmand %vm43, %vm51
  %vm60 = vmand %vm44, %vm52
  %vm61 = vmand %vm45, %vm53
  %vm62 = vmand %vm46, %vm54
  %vm63 = vmand %vm43, %vm55
  %vm64 = vmand %vm44, %vm56
  %vm65 = vmand %vm45, %vm57
  %vm66 = vmand %vm46, %vm58
  %vm67 = vmand %vm47, %vm51
  %vm68 = vmand %vm48, %vm52
  %vm69 = vmand %vm49, %vm53
  %vm70 = vmand %vm50, %vm54
  %vm71 = vmand %vm47, %vm55
  %vm72 = vmand %vm48, %vm56
  %vm73 = vmand %vm49, %vm57
  %vm74 = vmand %vm50, %vm58
  %v75 = vld [vmem:[%s0] sm:$0xff]
  %v76 = vld [vmem:[%s0 + $0x8] sm:$0xff]
  %v77 = vld [vmem:[%s0 + $0x10] sm:$0xff]
  %v78 = vld [vmem:[%s0 + $0x18] sm:$0xff]
  %79 = vrot.lane.b32.xlu0 %v75, 17
  %v80 = vpop.permute.xlu0 %79
  %81 = vrot.lane.b32.xlu0 %v76, 17
  %v82 = vpop.permute.xlu0 %81
  %83 = vrot.lane.b32.xlu0 %v77, 17
  %v84 = vpop.permute.xlu0 %83
  %85 = vrot.lane.b32.xlu0 %v78, 17
  %v86 = vpop.permute.xlu0 %85
  %vm87 = vcmp.lt.s32.totalorder %v31, 17
  %v88 = vsel %vm87, %v84, %v86
  %v89 = vsel %vm87, %v82, %v84
  %v90 = vsel %vm87, %v80, %v82
  %v91 = vsel %vm87, %v86, %v80
  %v92 = vsel %vm59, %v91, 0.0
  %v93 = vsel %vm60, %v90, 0.0
  %v94 = vsel %vm61, %v89, 0.0
  %v95 = vsel %vm62, %v88, 0.0
  %v96 = vpack.c.bf16 %v92, %v92
  %v97 = vpack.c.bf16 %v93, %v93
  %v98 = vpack.c.bf16 %v94, %v94
  %v99 = vpack.c.bf16 %v95, %v95
  %100 = vrot.lane.b32.xlu0 %v75, 16
  %v101 = vpop.permute.xlu0 %100
  %102 = vrot.lane.b32.xlu0 %v76, 16
  %v103 = vpop.permute.xlu0 %102
  %104 = vrot.lane.b32.xlu0 %v77, 16
  %v105 = vpop.permute.xlu0 %104
  %106 = vrot.lane.b32.xlu0 %v78, 16
  %v107 = vpop.permute.xlu0 %106
  %vm108 = vcmp.lt.s32.totalorder %v31, 16
  %v109 = vsel %vm108, %v105, %v107
  %v110 = vsel %vm108, %v103, %v105
  %v111 = vsel %vm108, %v101, %v103
  %v112 = vsel %vm108, %v107, %v101
  %v113 = vsel %vm43, %v112, 0.0
  %v114 = vsel %vm44, %v111, 0.0
  %v115 = vsel %vm45, %v110, 0.0
  %v116 = vsel %vm46, %v109, 0.0
  %v117 = vpack.c.bf16 %v113, %v113
  %v118 = vpack.c.bf16 %v114, %v114
  %v119 = vpack.c.bf16 %v115, %v115
  %v120 = vpack.c.bf16 %v116, %v116
  %121 = vrot.lane.b32.xlu0 %v75, 15
  %v122 = vpop.permute.xlu0 %121
  %123 = vrot.lane.b32.xlu0 %v76, 15
  %v124 = vpop.permute.xlu0 %123
  %125 = vrot.lane.b32.xlu0 %v77, 15
  %v126 = vpop.permute.xlu0 %125
  %127 = vrot.lane.b32.xlu0 %v78, 15
  %v128 = vpop.permute.xlu0 %127
  %vm129 = vcmp.lt.s32.totalorder %v31, 15
  %v130 = vsel %vm129, %v126, %v128
  %v131 = vsel %vm129, %v124, %v126
  %v132 = vsel %vm129, %v122, %v124
  %v133 = vsel %vm129, %v128, %v122
  %v134 = vsel %vm63, %v133, 0.0
  %v135 = vsel %vm64, %v132, 0.0
  %v136 = vsel %vm65, %v131, 0.0
  %v137 = vsel %vm66, %v130, 0.0
  %v138 = vpack.c.bf16 %v134, %v134
  %v139 = vpack.c.bf16 %v135, %v135
  %v140 = vpack.c.bf16 %v136, %v136
  %v141 = vpack.c.bf16 %v137, %v137
  %142 = vrot.lane.b32.xlu0 %v75, 1
  %v143 = vpop.permute.xlu0 %142
  %144 = vrot.lane.b32.xlu0 %v76, 1
  %v145 = vpop.permute.xlu0 %144
  %146 = vrot.lane.b32.xlu0 %v77, 1
  %v147 = vpop.permute.xlu0 %146
  %148 = vrot.lane.b32.xlu0 %v78, 1
  %v149 = vpop.permute.xlu0 %148
  %vm150 = vcmp.lt.s32.totalorder %v31, 1
  %v151 = vsel %vm150, %v147, %v149
  %v152 = vsel %vm150, %v145, %v147
  %v153 = vsel %vm150, %v143, %v145
  %v154 = vsel %vm150, %v149, %v143
  %v155 = vsel %vm51, %v154, 0.0
  %v156 = vsel %vm52, %v153, 0.0
  %v157 = vsel %vm53, %v152, 0.0
  %v158 = vsel %vm54, %v151, 0.0
  %v159 = vpack.c.bf16 %v155, %v155
  %v160 = vpack.c.bf16 %v156, %v156
  %v161 = vpack.c.bf16 %v157, %v157
  %v162 = vpack.c.bf16 %v158, %v158
  %v163 = vpack.c.bf16 %v75, %v75
  %v164 = vpack.c.bf16 %v76, %v76
  %v165 = vpack.c.bf16 %v77, %v77
  %v166 = vpack.c.bf16 %v78, %v78
  %167 = vrot.lane.b32.xlu0 %v75, 127
  %v168 = vpop.permute.xlu0 %167
  %169 = vrot.lane.b32.xlu0 %v76, 127
  %v170 = vpop.permute.xlu0 %169
  %171 = vrot.lane.b32.xlu0 %v77, 127
  %v172 = vpop.permute.xlu0 %171
  %173 = vrot.lane.b32.xlu0 %v78, 127
  %v174 = vpop.permute.xlu0 %173
  %vm175 = vcmp.lt.s32.totalorder %v31, 127
  %v176 = vsel %vm175, %v172, %v174
  %v177 = vsel %vm175, %v170, %v172
  %v178 = vsel %vm175, %v168, %v170
  %v179 = vsel %vm175, %v174, %v168
  %v180 = vsel %vm55, %v178, 0.0
  %v181 = vsel %vm56, %v177, 0.0
  %v182 = vsel %vm57, %v176, 0.0
  %v183 = vsel %vm58, %v179, 0.0
  %v184 = vpack.c.bf16 %v180, %v180
  %v185 = vpack.c.bf16 %v181, %v181
  %v186 = vpack.c.bf16 %v182, %v182
  %v187 = vpack.c.bf16 %v183, %v183
  %188 = vrot.lane.b32.xlu0 %v75, 113
  %v189 = vpop.permute.xlu0 %188
  %190 = vrot.lane.b32.xlu0 %v76, 113
  %v191 = vpop.permute.xlu0 %190
  %192 = vrot.lane.b32.xlu0 %v77, 113
  %v193 = vpop.permute.xlu0 %192
  %194 = vrot.lane.b32.xlu0 %v78, 113
  %v195 = vpop.permute.xlu0 %194
  %vm196 = vcmp.lt.s32.totalorder %v31, 113
  %v197 = vsel %vm196, %v193, %v195
  %v198 = vsel %vm196, %v191, %v193
  %v199 = vsel %vm196, %v189, %v191
  %v200 = vsel %vm196, %v195, %v189
  %v201 = vsel %vm67, %v199, 0.0
  %v202 = vsel %vm68, %v198, 0.0
  %v203 = vsel %vm69, %v197, 0.0
  %v204 = vsel %vm70, %v200, 0.0
  %v205 = vpack.c.bf16 %v201, %v201
  %v206 = vpack.c.bf16 %v202, %v202
  %v207 = vpack.c.bf16 %v203, %v203
  %v208 = vpack.c.bf16 %v204, %v204
  %209 = vrot.lane.b32.xlu0 %v75, 112
  %v210 = vpop.permute.xlu0 %209
  %211 = vrot.lane.b32.xlu0 %v76, 112
  %v212 = vpop.permute.xlu0 %211
  %213 = vrot.lane.b32.xlu0 %v77, 112
  %v214 = vpop.permute.xlu0 %213
  %215 = vrot.lane.b32.xlu0 %v78, 112
  %v216 = vpop.permute.xlu0 %215
  %vm217 = vcmp.lt.s32.totalorder %v31, 112
  %v218 = vsel %vm217, %v214, %v216
  %v219 = vsel %vm217, %v212, %v214
  %v220 = vsel %vm217, %v210, %v212
  %v221 = vsel %vm217, %v216, %v210
  %v222 = vsel %vm47, %v220, 0.0
  %v223 = vsel %vm48, %v219, 0.0
  %v224 = vsel %vm49, %v218, 0.0
  %v225 = vsel %vm50, %v221, 0.0
  %v226 = vpack.c.bf16 %v222, %v222
  %v227 = vpack.c.bf16 %v223, %v223
  %v228 = vpack.c.bf16 %v224, %v224
  %v229 = vpack.c.bf16 %v225, %v225
  %230 = vrot.lane.b32.xlu0 %v75, 111
  %v231 = vpop.permute.xlu0 %230
  %232 = vrot.lane.b32.xlu0 %v76, 111
  %v233 = vpop.permute.xlu0 %232
  %234 = vrot.lane.b32.xlu0 %v77, 111
  %v235 = vpop.permute.xlu0 %234
  %236 = vrot.lane.b32.xlu0 %v78, 111
  %v237 = vpop.permute.xlu0 %236
  %vm238 = vcmp.lt.s32.totalorder %v31, 111
  %v239 = vsel %vm238, %v235, %v237
  %v240 = vsel %vm238, %v233, %v235
  %v241 = vsel %vm238, %v231, %v233
  %v242 = vsel %vm238, %v237, %v231
  %v243 = vsel %vm71, %v241, 0.0
  %v244 = vsel %vm72, %v240, 0.0
  %v245 = vsel %vm73, %v239, 0.0
  %v246 = vsel %vm74, %v242, 0.0
  %v247 = vpack.c.bf16 %v243, %v243
  %v248 = vpack.c.bf16 %v244, %v244
  %v249 = vpack.c.bf16 %v245, %v245
  %v250 = vpack.c.bf16 %v246, %v246
  %v255 = vrot.slane %v117, 4
  %v256 = vrot.slane %v118, 4
  %v257 = vrot.slane %v119, 4
  %v258 = vrot.slane %v120, 4
  %v263 = vrot.slane %v159, 4
  %v264 = vrot.slane %v160, 4
  %v265 = vrot.slane %v161, 4
  %v266 = vrot.slane %v162, 4
  %v271 = vrot.slane %v184, 4
  %v272 = vrot.slane %v185, 4
  %v273 = vrot.slane %v186, 4
  %v274 = vrot.slane %v187, 4
  %v279 = vrot.slane %v226, 4
  %v280 = vrot.slane %v227, 4
  %v281 = vrot.slane %v228, 4
  %v282 = vrot.slane %v229, 4
  %vm283 = vcmask 1043456
  %v286 = vsel %vm283, %v96, %v255
  %v290 = vsel %vm283, %v97, %v256
  %v294 = vsel %vm283, %v98, %v257
  %v298 = vsel %vm283, %v99, %v258
  %v302 = vsel %vm283, %v138, %v263
  %v306 = vsel %vm283, %v139, %v264
  %v310 = vsel %vm283, %v140, %v265
  %v314 = vsel %vm283, %v141, %v266
  %v318 = vsel %vm283, %v163, %v271
  %v322 = vsel %vm283, %v164, %v272
  %v326 = vsel %vm283, %v165, %v273
  %v330 = vsel %vm283, %v166, %v274
  %v334 = vsel %vm283, %v205, %v279
  %v338 = vsel %vm283, %v206, %v280
  %v342 = vsel %vm283, %v207, %v281
  %v346 = vsel %vm283, %v208, %v282
  %v348 = vld [vmem:[%s2] sm:$0xf]
  %v349 = vld [vmem:[%s2 + $0x4] sm:$0xf]
  %v350 = vld [vmem:[%s2 + $0x8] sm:$0xf]
  %v351 = vld [vmem:[%s3] sm:$0xff]
  %v352 = vld [vmem:[%s3 + $0x8] sm:$0xff]
  %v353 = vld [vmem:[%s3 + $0x10] sm:$0xff]
  %355 = vset.pattern.permute.xlu0 0
  %356 = vperm.xlu0 %355, %v351
  %v357 = vpop.permute.xlu0 %356
  %360 = vset.pattern.permute.xlu0 0
  %361 = vperm.xlu0 %360, %v352
  %v362 = vpop.permute.xlu0 %361
  %365 = vset.pattern.permute.xlu0 0
  %366 = vperm.xlu0 %365, %v353
  %v367 = vpop.permute.xlu0 %366
  %v372 = vunpack.c.l.b16 %v348
  %v373 = vunpack.c.l.b16 %v349
  %v374 = vunpack.c.l.b16 %v350
  %v375 = vpack.c.b16 %v373, %v372
  %v376 = vpack.c.b16 %v374, %v374
  %vm377 = vcmask 588800
  %v379 = vsel %vm377, %v375, 0
  %v382 = vsel %vm377, %v376, 0
  %v385 = vsel %vm283, %v247, 0
  %v388 = vsel %vm283, %v248, 0
  %v391 = vsel %vm283, %v249, 0
  %v394 = vsel %vm283, %v250, 0
  %396 = vmatprep.subr.bf16.mxu0 0
  %397 = vmatpush1.bf16.msra.mxu0 0
  %398 = vmatprep.subr.bf16.mxu0 0
  %399 = vmatpush1.bf16.msra.mxu0 0
  %400 = vmatprep.subr.bf16.mxu0 0
  %401 = vmatpush1.bf16.msra.mxu0 0
  %402 = vmatprep.subr.bf16.mxu0 %v388
  %403 = vmatpush1.bf16.msra.mxu0 %v385
  %404 = vmatprep.subr.bf16.mxu0 %v338
  %405 = vmatpush1.bf16.msra.mxu0 %v334
  %406 = vmatprep.subr.bf16.mxu0 %v322
  %407 = vmatpush1.bf16.msra.mxu0 %v318
  %408 = vmatprep.subr.bf16.mxu0 %v306
  %409 = vmatpush1.bf16.msra.mxu0 %v302
  %410 = vmatprep.subr.bf16.mxu0 %v290
  %411 = vmatpush1.bf16.msra.mxu0 %v286
  %412 = vmatprep.subr.bf16.mxu0 0
  %413 = vmatpush2.bf16.msra.mxu0 0
  %414 = vmatprep.subr.bf16.mxu0 0
  %415 = vmatpush2.bf16.msra.mxu0 0
  %416 = vmatprep.subr.bf16.mxu0 0
  %417 = vmatpush2.bf16.msra.mxu0 0
  %418 = vmatprep.subr.bf16.mxu0 0
  %419 = vmatpush2.bf16.msra.mxu0 0
  %420 = vmatprep.subr.bf16.mxu0 0
  %421 = vmatpush2.bf16.msra.mxu0 0
  %422 = vmatprep.subr.bf16.mxu0 0
  %423 = vmatpush2.bf16.msra.mxu0 0
  %424 = vmatprep.subr.bf16.mxu0 0
  %425 = vmatpush2.bf16.msra.mxu0 0
  %426 = vmatprep.subr.bf16.mxu0 0
  %427 = vmatpush2.bf16.msra.mxu0 0
  %428 = vmatprep.mubr.bf16.mxu0 0
  %429 = vmatmul.mubr.bf16.gmra.mxu0 %v379
  %v430 = vpop.f32.mrf.mxu0
  %v431 = vadd.f32 %v357, %v430
  %v432 = vpop.f32.mrf.mxu0
  %v433 = vadd.f32 %v357, %v432
  %v434 = vpop.f32.mrf.mxu0
  %v435 = vadd.f32 %v362, %v434
  %v436 = vpop.f32.mrf.mxu0
  %v437 = vadd.f32 %v362, %v436
  %438 = vmatprep.mubr.bf16.mxu0 0
  %439 = vmatmul.mubr.bf16.gmra.mxu0 %v382
  %v440 = vpop.f32.mrf.mxu0
  %v441 = vadd.f32 %v367, %v440
  %v442 = vpop.f32.mrf.mxu0
  %v443 = vadd.f32 %v367, %v442
  %v444 = vpop.f32.mrf.mxu0
  %v445 = vpop.f32.mrf.mxu0
  %446 = vdwg.mxu0
  %447 = vmatprep.subr.bf16.mxu0 0
  %448 = vmatpush1.bf16.msra.mxu0 0
  %449 = vmatprep.subr.bf16.mxu0 0
  %450 = vmatpush1.bf16.msra.mxu0 0
  %451 = vmatprep.subr.bf16.mxu0 0
  %452 = vmatpush1.bf16.msra.mxu0 0
  %453 = vmatprep.subr.bf16.mxu0 %v394
  %454 = vmatpush1.bf16.msra.mxu0 %v391
  %455 = vmatprep.subr.bf16.mxu0 %v346
  %456 = vmatpush1.bf16.msra.mxu0 %v342
  %457 = vmatprep.subr.bf16.mxu0 %v330
  %458 = vmatpush1.bf16.msra.mxu0 %v326
  %459 = vmatprep.subr.bf16.mxu0 %v314
  %460 = vmatpush1.bf16.msra.mxu0 %v310
  %461 = vmatprep.subr.bf16.mxu0 %v298
  %462 = vmatpush1.bf16.msra.mxu0 %v294
  %463 = vmatprep.subr.bf16.mxu0 0
  %464 = vmatpush2.bf16.msra.mxu0 0
  %465 = vmatprep.subr.bf16.mxu0 0
  %466 = vmatpush2.bf16.msra.mxu0 0
  %467 = vmatprep.subr.bf16.mxu0 0
  %468 = vmatpush2.bf16.msra.mxu0 0
  %469 = vmatprep.subr.bf16.mxu0 0
  %470 = vmatpush2.bf16.msra.mxu0 0
  %471 = vmatprep.subr.bf16.mxu0 0
  %472 = vmatpush2.bf16.msra.mxu0 0
  %473 = vmatprep.subr.bf16.mxu0 0
  %474 = vmatpush2.bf16.msra.mxu0 0
  %475 = vmatprep.subr.bf16.mxu0 0
  %476 = vmatpush2.bf16.msra.mxu0 0
  %477 = vmatprep.subr.bf16.mxu0 0
  %478 = vmatpush2.bf16.msra.mxu0 0
  %479 = vmatprep.mubr.bf16.mxu0 0
  %480 = vmatmul.mubr.bf16.gmra.mxu0 %v379
  %v481 = vpop.f32.mrf.mxu0
  %v482 = vadd.f32 %v357, %v481
  %v483 = vpop.f32.mrf.mxu0
  %v484 = vadd.f32 %v357, %v483
  %v485 = vpop.f32.mrf.mxu0
  %v486 = vadd.f32 %v362, %v485
  %v487 = vpop.f32.mrf.mxu0
  %v488 = vadd.f32 %v362, %v487
  %489 = vmatprep.mubr.bf16.mxu0 0
  %490 = vmatmul.mubr.bf16.gmra.mxu0 %v382
  %v491 = vpop.f32.mrf.mxu0
  %v492 = vadd.f32 %v367, %v491
  %v493 = vpop.f32.mrf.mxu0
  %v494 = vadd.f32 %v367, %v493
  %v495 = vpop.f32.mrf.mxu0
  %v496 = vpop.f32.mrf.mxu0
  %497 = vdwg.mxu0
  %v498 = vxor.u32 %v431, 2147483648
  %v499 = vxor.u32 %v433, 2147483648
  %v500 = vxor.u32 %v482, 2147483648
  %v501 = vxor.u32 %v484, 2147483648
  %v502 = vmul.f32 %v498, 1.442695
  %v503 = vpow.pop %v502
  %v504 = vmul.f32 %v499, 1.442695
  %v505 = vpow.pop %v504
  %v506 = vmul.f32 %v500, 1.442695
  %v507 = vpow.pop %v506
  %v508 = vmul.f32 %v501, 1.442695
  %v509 = vpow.pop %v508
  %v510 = vadd.f32 %v503, 1.0
  %v511 = vadd.f32 %v505, 1.0
  %v512 = vadd.f32 %v507, 1.0
  %v513 = vadd.f32 %v509, 1.0
  %v514 = vrcp.pop %v510
  %v515 = vmul.f32 1.0, %v514
  %v516 = vrcp.pop %v511
  %v517 = vmul.f32 1.0, %v516
  %v518 = vrcp.pop %v512
  %v519 = vmul.f32 1.0, %v518
  %v520 = vrcp.pop %v513
  %v521 = vmul.f32 1.0, %v520
  %v522 = vxor.u32 %v435, 2147483648
  %v523 = vxor.u32 %v437, 2147483648
  %v524 = vxor.u32 %v486, 2147483648
  %v525 = vxor.u32 %v488, 2147483648
  %v526 = vmul.f32 %v522, 1.442695
  %v527 = vpow.pop %v526
  %v528 = vmul.f32 %v523, 1.442695
  %v529 = vpow.pop %v528
  %v530 = vmul.f32 %v524, 1.442695
  %v531 = vpow.pop %v530
  %v532 = vmul.f32 %v525, 1.442695
  %v533 = vpow.pop %v532
  %v534 = vadd.f32 %v527, 1.0
  %v535 = vadd.f32 %v529, 1.0
  %v536 = vadd.f32 %v531, 1.0
  %v537 = vadd.f32 %v533, 1.0
  %v538 = vrcp.pop %v534
  %v539 = vmul.f32 1.0, %v538
  %v540 = vrcp.pop %v535
  %v541 = vmul.f32 1.0, %v540
  %v542 = vrcp.pop %v536
  %v543 = vmul.f32 1.0, %v542
  %v544 = vrcp.pop %v537
  %v545 = vmul.f32 1.0, %v544
  %v546 = vtanh.pop %v441
  %v547 = vtanh.pop %v443
  %v548 = vtanh.pop %v492
  %v549 = vtanh.pop %v494
  %v550 = vmul.f32 %v515, %v546
  %v551 = vmul.f32 %v517, %v547
  %v552 = vmul.f32 %v519, %v548
  %v553 = vmul.f32 %v521, %v549
  %v554 = vtanh.pop %v550
  %v555 = vtanh.pop %v551
  %v556 = vtanh.pop %v552
  %v557 = vtanh.pop %v553
  %v558 = vmul.f32 %v539, %v554
  %v559 = vmul.f32 %v541, %v555
  %v560 = vmul.f32 %v543, %v556
  %v561 = vmul.f32 %v545, %v557
  %v562 = vld [vmem:[%s4] sm:$0xff]
  %564 = vset.pattern.permute.xlu0 0
  %565 = vperm.xlu0 %564, %v562
  %v566 = vpop.permute.xlu0 %565
  %v568 = vadd.f32 %v558, %v566
  %v569 = vadd.f32 %v559, %v566
  %v570 = vadd.f32 %v560, %v566
  %v571 = vadd.f32 %v561, %v566
  %572 = vrot.lane.b32.xlu0 %v568, 17
  %v573 = vpop.permute.xlu0 %572
  %574 = vrot.lane.b32.xlu0 %v569, 17
  %v575 = vpop.permute.xlu0 %574
  %576 = vrot.lane.b32.xlu0 %v570, 17
  %v577 = vpop.permute.xlu0 %576
  %578 = vrot.lane.b32.xlu0 %v571, 17
  %v579 = vpop.permute.xlu0 %578
  %v580 = vsel %vm87, %v577, %v579
  %v581 = vsel %vm87, %v575, %v577
  %v582 = vsel %vm87, %v573, %v575
  %v583 = vsel %vm87, %v579, %v573
  %v584 = vsel %vm59, %v583, 0.0
  %v585 = vsel %vm60, %v582, 0.0
  %v586 = vsel %vm61, %v581, 0.0
  %v587 = vsel %vm62, %v580, 0.0
  %v588 = vpack.c.bf16 %v584, %v584
  %v589 = vpack.c.bf16 %v585, %v585
  %v590 = vpack.c.bf16 %v586, %v586
  %v591 = vpack.c.bf16 %v587, %v587
  %592 = vrot.lane.b32.xlu0 %v568, 16
  %v593 = vpop.permute.xlu0 %592
  %594 = vrot.lane.b32.xlu0 %v569, 16
  %v595 = vpop.permute.xlu0 %594
  %596 = vrot.lane.b32.xlu0 %v570, 16
  %v597 = vpop.permute.xlu0 %596
  %598 = vrot.lane.b32.xlu0 %v571, 16
  %v599 = vpop.permute.xlu0 %598
  %v600 = vsel %vm108, %v597, %v599
  %v601 = vsel %vm108, %v595, %v597
  %v602 = vsel %vm108, %v593, %v595
  %v603 = vsel %vm108, %v599, %v593
  %v604 = vsel %vm43, %v603, 0.0
  %v605 = vsel %vm44, %v602, 0.0
  %v606 = vsel %vm45, %v601, 0.0
  %v607 = vsel %vm46, %v600, 0.0
  %v608 = vpack.c.bf16 %v604, %v604
  %v609 = vpack.c.bf16 %v605, %v605
  %v610 = vpack.c.bf16 %v606, %v606
  %v611 = vpack.c.bf16 %v607, %v607
  %612 = vrot.lane.b32.xlu0 %v568, 15
  %v613 = vpop.permute.xlu0 %612
  %614 = vrot.lane.b32.xlu0 %v569, 15
  %v615 = vpop.permute.xlu0 %614
  %616 = vrot.lane.b32.xlu0 %v570, 15
  %v617 = vpop.permute.xlu0 %616
  %618 = vrot.lane.b32.xlu0 %v571, 15
  %v619 = vpop.permute.xlu0 %618
  %v620 = vsel %vm129, %v617, %v619
  %v621 = vsel %vm129, %v615, %v617
  %v622 = vsel %vm129, %v613, %v615
  %v623 = vsel %vm129, %v619, %v613
  %v624 = vsel %vm63, %v623, 0.0
  %v625 = vsel %vm64, %v622, 0.0
  %v626 = vsel %vm65, %v621, 0.0
  %v627 = vsel %vm66, %v620, 0.0
  %v628 = vpack.c.bf16 %v624, %v624
  %v629 = vpack.c.bf16 %v625, %v625
  %v630 = vpack.c.bf16 %v626, %v626
  %v631 = vpack.c.bf16 %v627, %v627
  %632 = vrot.lane.b32.xlu0 %v568, 1
  %v633 = vpop.permute.xlu0 %632
  %634 = vrot.lane.b32.xlu0 %v569, 1
  %v635 = vpop.permute.xlu0 %634
  %636 = vrot.lane.b32.xlu0 %v570, 1
  %v637 = vpop.permute.xlu0 %636
  %638 = vrot.lane.b32.xlu0 %v571, 1
  %v639 = vpop.permute.xlu0 %638
  %v640 = vsel %vm150, %v637, %v639
  %v641 = vsel %vm150, %v635, %v637
  %v642 = vsel %vm150, %v633, %v635
  %v643 = vsel %vm150, %v639, %v633
  %v644 = vsel %vm51, %v643, 0.0
  %v645 = vsel %vm52, %v642, 0.0
  %v646 = vsel %vm53, %v641, 0.0
  %v647 = vsel %vm54, %v640, 0.0
  %v648 = vpack.c.bf16 %v644, %v644
  %v649 = vpack.c.bf16 %v645, %v645
  %v650 = vpack.c.bf16 %v646, %v646
  %v651 = vpack.c.bf16 %v647, %v647
  %v652 = vpack.c.bf16 %v568, %v568
  %v653 = vpack.c.bf16 %v569, %v569
  %v654 = vpack.c.bf16 %v570, %v570
  %v655 = vpack.c.bf16 %v571, %v571
  %656 = vrot.lane.b32.xlu0 %v568, 127
  %v657 = vpop.permute.xlu0 %656
  %658 = vrot.lane.b32.xlu0 %v569, 127
  %v659 = vpop.permute.xlu0 %658
  %660 = vrot.lane.b32.xlu0 %v570, 127
  %v661 = vpop.permute.xlu0 %660
  %662 = vrot.lane.b32.xlu0 %v571, 127
  %v663 = vpop.permute.xlu0 %662
  %v664 = vsel %vm175, %v661, %v663
  %v665 = vsel %vm175, %v659, %v661
  %v666 = vsel %vm175, %v657, %v659
  %v667 = vsel %vm175, %v663, %v657
  %v668 = vsel %vm55, %v666, 0.0
  %v669 = vsel %vm56, %v665, 0.0
  %v670 = vsel %vm57, %v664, 0.0
  %v671 = vsel %vm58, %v667, 0.0
  %v672 = vpack.c.bf16 %v668, %v668
  %v673 = vpack.c.bf16 %v669, %v669
  %v674 = vpack.c.bf16 %v670, %v670
  %v675 = vpack.c.bf16 %v671, %v671
  %676 = vrot.lane.b32.xlu0 %v568, 113
  %v677 = vpop.permute.xlu0 %676
  %678 = vrot.lane.b32.xlu0 %v569, 113
  %v679 = vpop.permute.xlu0 %678
  %680 = vrot.lane.b32.xlu0 %v570, 113
  %v681 = vpop.permute.xlu0 %680
  %682 = vrot.lane.b32.xlu0 %v571, 113
  %v683 = vpop.permute.xlu0 %682
  %v684 = vsel %vm196, %v681, %v683
  %v685 = vsel %vm196, %v679, %v681
  %v686 = vsel %vm196, %v677, %v679
  %v687 = vsel %vm196, %v683, %v677
  %v688 = vsel %vm67, %v686, 0.0
  %v689 = vsel %vm68, %v685, 0.0
  %v690 = vsel %vm69, %v684, 0.0
  %v691 = vsel %vm70, %v687, 0.0
  %v692 = vpack.c.bf16 %v688, %v688
  %v693 = vpack.c.bf16 %v689, %v689
  %v694 = vpack.c.bf16 %v690, %v690
  %v695 = vpack.c.bf16 %v691, %v691
  %696 = vrot.lane.b32.xlu0 %v568, 112
  %v697 = vpop.permute.xlu0 %696
  %698 = vrot.lane.b32.xlu0 %v569, 112
  %v699 = vpop.permute.xlu0 %698
  %700 = vrot.lane.b32.xlu0 %v570, 112
  %v701 = vpop.permute.xlu0 %700
  %702 = vrot.lane.b32.xlu0 %v571, 112
  %v703 = vpop.permute.xlu0 %702
  %v704 = vsel %vm217, %v701, %v703
  %v705 = vsel %vm217, %v699, %v701
  %v706 = vsel %vm217, %v697, %v699
  %v707 = vsel %vm217, %v703, %v697
  %v708 = vsel %vm47, %v706, 0.0
  %v709 = vsel %vm48, %v705, 0.0
  %v710 = vsel %vm49, %v704, 0.0
  %v711 = vsel %vm50, %v707, 0.0
  %v712 = vpack.c.bf16 %v708, %v708
  %v713 = vpack.c.bf16 %v709, %v709
  %v714 = vpack.c.bf16 %v710, %v710
  %v715 = vpack.c.bf16 %v711, %v711
  %716 = vrot.lane.b32.xlu0 %v568, 111
  %v717 = vpop.permute.xlu0 %716
  %718 = vrot.lane.b32.xlu0 %v569, 111
  %v719 = vpop.permute.xlu0 %718
  %720 = vrot.lane.b32.xlu0 %v570, 111
  %v721 = vpop.permute.xlu0 %720
  %722 = vrot.lane.b32.xlu0 %v571, 111
  %v723 = vpop.permute.xlu0 %722
  %v724 = vsel %vm238, %v721, %v723
  %v725 = vsel %vm238, %v719, %v721
  %v726 = vsel %vm238, %v717, %v719
  %v727 = vsel %vm238, %v723, %v717
  %v728 = vsel %vm71, %v726, 0.0
  %v729 = vsel %vm72, %v725, 0.0
  %v730 = vsel %vm73, %v724, 0.0
  %v731 = vsel %vm74, %v727, 0.0
  %v732 = vpack.c.bf16 %v728, %v728
  %v733 = vpack.c.bf16 %v729, %v729
  %v734 = vpack.c.bf16 %v730, %v730
  %v735 = vpack.c.bf16 %v731, %v731
  %v740 = vrot.slane %v608, 4
  %v741 = vrot.slane %v609, 4
  %v742 = vrot.slane %v610, 4
  %v743 = vrot.slane %v611, 4
  %v748 = vrot.slane %v648, 4
  %v749 = vrot.slane %v649, 4
  %v750 = vrot.slane %v650, 4
  %v751 = vrot.slane %v651, 4
  %v756 = vrot.slane %v672, 4
  %v757 = vrot.slane %v673, 4
  %v758 = vrot.slane %v674, 4
  %v759 = vrot.slane %v675, 4
  %v764 = vrot.slane %v712, 4
  %v765 = vrot.slane %v713, 4
  %v766 = vrot.slane %v714, 4
  %v767 = vrot.slane %v715, 4
  %v770 = vsel %vm283, %v588, %v740
  %v774 = vsel %vm283, %v589, %v741
  %v778 = vsel %vm283, %v590, %v742
  %v782 = vsel %vm283, %v591, %v743
  %v786 = vsel %vm283, %v628, %v748
  %v790 = vsel %vm283, %v629, %v749
  %v794 = vsel %vm283, %v630, %v750
  %v798 = vsel %vm283, %v631, %v751
  %v802 = vsel %vm283, %v652, %v756
  %v806 = vsel %vm283, %v653, %v757
  %v810 = vsel %vm283, %v654, %v758
  %v814 = vsel %vm283, %v655, %v759
  %v818 = vsel %vm283, %v692, %v764
  %v822 = vsel %vm283, %v693, %v765
  %v826 = vsel %vm283, %v694, %v766
  %v830 = vsel %vm283, %v695, %v767
  %s832 = scalar_lea.vmem %s2, 12
  %v833 = vld [vmem:[%s832] sm:$0xf]
  %v834 = vld [vmem:[%s832 + $0x4] sm:$0xf]
  %v835 = vld [vmem:[%s832 + $0x8] sm:$0xf]
  %s836 = scalar_lea.vmem %s3, 24
  %v837 = vld [vmem:[%s836] sm:$0xff]
  %v838 = vld [vmem:[%s836 + $0x8] sm:$0xff]
  %v839 = vld [vmem:[%s836 + $0x10] sm:$0xff]
  %841 = vset.pattern.permute.xlu0 0
  %842 = vperm.xlu0 %841, %v837
  %v843 = vpop.permute.xlu0 %842
  %846 = vset.pattern.permute.xlu0 0
  %847 = vperm.xlu0 %846, %v838
  %v848 = vpop.permute.xlu0 %847
  %851 = vset.pattern.permute.xlu0 0
  %852 = vperm.xlu0 %851, %v839
  %v853 = vpop.permute.xlu0 %852
  %v858 = vunpack.c.l.b16 %v833
  %v859 = vunpack.c.l.b16 %v834
  %v860 = vunpack.c.l.b16 %v835
  %v861 = vpack.c.b16 %v859, %v858
  %v862 = vpack.c.b16 %v860, %v860
  %v864 = vsel %vm377, %v861, 0
  %v867 = vsel %vm377, %v862, 0
  %v870 = vsel %vm283, %v732, 0
  %v873 = vsel %vm283, %v733, 0
  %v876 = vsel %vm283, %v734, 0
  %v879 = vsel %vm283, %v735, 0
  %881 = vmatprep.subr.bf16.mxu0 0
  %882 = vmatpush1.bf16.msra.mxu0 0
  %883 = vmatprep.subr.bf16.mxu0 0
  %884 = vmatpush1.bf16.msra.mxu0 0
  %885 = vmatprep.subr.bf16.mxu0 0
  %886 = vmatpush1.bf16.msra.mxu0 0
  %887 = vmatprep.subr.bf16.mxu0 %v873
  %888 = vmatpush1.bf16.msra.mxu0 %v870
  %889 = vmatprep.subr.bf16.mxu0 %v822
  %890 = vmatpush1.bf16.msra.mxu0 %v818
  %891 = vmatprep.subr.bf16.mxu0 %v806
  %892 = vmatpush1.bf16.msra.mxu0 %v802
  %893 = vmatprep.subr.bf16.mxu0 %v790
  %894 = vmatpush1.bf16.msra.mxu0 %v786
  %895 = vmatprep.subr.bf16.mxu0 %v774
  %896 = vmatpush1.bf16.msra.mxu0 %v770
  %897 = vmatprep.subr.bf16.mxu0 0
  %898 = vmatpush2.bf16.msra.mxu0 0
  %899 = vmatprep.subr.bf16.mxu0 0
  %900 = vmatpush2.bf16.msra.mxu0 0
  %901 = vmatprep.subr.bf16.mxu0 0
  %902 = vmatpush2.bf16.msra.mxu0 0
  %903 = vmatprep.subr.bf16.mxu0 0
  %904 = vmatpush2.bf16.msra.mxu0 0
  %905 = vmatprep.subr.bf16.mxu0 0
  %906 = vmatpush2.bf16.msra.mxu0 0
  %907 = vmatprep.subr.bf16.mxu0 0
  %908 = vmatpush2.bf16.msra.mxu0 0
  %909 = vmatprep.subr.bf16.mxu0 0
  %910 = vmatpush2.bf16.msra.mxu0 0
  %911 = vmatprep.subr.bf16.mxu0 0
  %912 = vmatpush2.bf16.msra.mxu0 0
  %913 = vmatprep.mubr.bf16.mxu0 0
  %914 = vmatmul.mubr.bf16.gmra.mxu0 %v864
  %v915 = vpop.f32.mrf.mxu0
  %v916 = vadd.f32 %v843, %v915
  %v917 = vpop.f32.mrf.mxu0
  %v918 = vadd.f32 %v843, %v917
  %v919 = vpop.f32.mrf.mxu0
  %v920 = vadd.f32 %v848, %v919
  %v921 = vpop.f32.mrf.mxu0
  %v922 = vadd.f32 %v848, %v921
  %923 = vmatprep.mubr.bf16.mxu0 0
  %924 = vmatmul.mubr.bf16.gmra.mxu0 %v867
  %v925 = vpop.f32.mrf.mxu0
  %v926 = vadd.f32 %v853, %v925
  %v927 = vpop.f32.mrf.mxu0
  %v928 = vadd.f32 %v853, %v927
  %v929 = vpop.f32.mrf.mxu0
  %v930 = vpop.f32.mrf.mxu0
  %931 = vdwg.mxu0
  %932 = vmatprep.subr.bf16.mxu0 0
  %933 = vmatpush1.bf16.msra.mxu0 0
  %934 = vmatprep.subr.bf16.mxu0 0
  %935 = vmatpush1.bf16.msra.mxu0 0
  %936 = vmatprep.subr.bf16.mxu0 0
  %937 = vmatpush1.bf16.msra.mxu0 0
  %938 = vmatprep.subr.bf16.mxu0 %v879
  %939 = vmatpush1.bf16.msra.mxu0 %v876
  %940 = vmatprep.subr.bf16.mxu0 %v830
  %941 = vmatpush1.bf16.msra.mxu0 %v826
  %942 = vmatprep.subr.bf16.mxu0 %v814
  %943 = vmatpush1.bf16.msra.mxu0 %v810
  %944 = vmatprep.subr.bf16.mxu0 %v798
  %945 = vmatpush1.bf16.msra.mxu0 %v794
  %946 = vmatprep.subr.bf16.mxu0 %v782
  %947 = vmatpush1.bf16.msra.mxu0 %v778
  %948 = vmatprep.subr.bf16.mxu0 0
  %949 = vmatpush2.bf16.msra.mxu0 0
  %950 = vmatprep.subr.bf16.mxu0 0
  %951 = vmatpush2.bf16.msra.mxu0 0
  %952 = vmatprep.subr.bf16.mxu0 0
  %953 = vmatpush2.bf16.msra.mxu0 0
  %954 = vmatprep.subr.bf16.mxu0 0
  %955 = vmatpush2.bf16.msra.mxu0 0
  %956 = vmatprep.subr.bf16.mxu0 0
  %957 = vmatpush2.bf16.msra.mxu0 0
  %958 = vmatprep.subr.bf16.mxu0 0
  %959 = vmatpush2.bf16.msra.mxu0 0
  %960 = vmatprep.subr.bf16.mxu0 0
  %961 = vmatpush2.bf16.msra.mxu0 0
  %962 = vmatprep.subr.bf16.mxu0 0
  %963 = vmatpush2.bf16.msra.mxu0 0
  %964 = vmatprep.mubr.bf16.mxu0 0
  %965 = vmatmul.mubr.bf16.gmra.mxu0 %v864
  %v966 = vpop.f32.mrf.mxu0
  %v967 = vadd.f32 %v843, %v966
  %v968 = vpop.f32.mrf.mxu0
  %v969 = vadd.f32 %v843, %v968
  %v970 = vpop.f32.mrf.mxu0
  %v971 = vadd.f32 %v848, %v970
  %v972 = vpop.f32.mrf.mxu0
  %v973 = vadd.f32 %v848, %v972
  %974 = vmatprep.mubr.bf16.mxu0 0
  %975 = vmatmul.mubr.bf16.gmra.mxu0 %v867
  %v976 = vpop.f32.mrf.mxu0
  %v977 = vadd.f32 %v853, %v976
  %v978 = vpop.f32.mrf.mxu0
  %v979 = vadd.f32 %v853, %v978
  %v980 = vpop.f32.mrf.mxu0
  %v981 = vpop.f32.mrf.mxu0
  %982 = vdwg.mxu0
  %v983 = vxor.u32 %v916, 2147483648
  %v984 = vxor.u32 %v918, 2147483648
  %v985 = vxor.u32 %v967, 2147483648
  %v986 = vxor.u32 %v969, 2147483648
  %v987 = vmul.f32 %v983, 1.442695
  %v988 = vpow.pop %v987
  %v989 = vmul.f32 %v984, 1.442695
  %v990 = vpow.pop %v989
  %v991 = vmul.f32 %v985, 1.442695
  %v992 = vpow.pop %v991
  %v993 = vmul.f32 %v986, 1.442695
  %v994 = vpow.pop %v993
  %v995 = vadd.f32 %v988, 1.0
  %v996 = vadd.f32 %v990, 1.0
  %v997 = vadd.f32 %v992, 1.0
  %v998 = vadd.f32 %v994, 1.0
  %v999 = vrcp.pop %v995
  %v1000 = vmul.f32 1.0, %v999
  %v1001 = vrcp.pop %v996
  %v1002 = vmul.f32 1.0, %v1001
  %v1003 = vrcp.pop %v997
  %v1004 = vmul.f32 1.0, %v1003
  %v1005 = vrcp.pop %v998
  %v1006 = vmul.f32 1.0, %v1005
  %v1007 = vxor.u32 %v920, 2147483648
  %v1008 = vxor.u32 %v922, 2147483648
  %v1009 = vxor.u32 %v971, 2147483648
  %v1010 = vxor.u32 %v973, 2147483648
  %v1011 = vmul.f32 %v1007, 1.442695
  %v1012 = vpow.pop %v1011
  %v1013 = vmul.f32 %v1008, 1.442695
  %v1014 = vpow.pop %v1013
  %v1015 = vmul.f32 %v1009, 1.442695
  %v1016 = vpow.pop %v1015
  %v1017 = vmul.f32 %v1010, 1.442695
  %v1018 = vpow.pop %v1017
  %v1019 = vadd.f32 %v1012, 1.0
  %v1020 = vadd.f32 %v1014, 1.0
  %v1021 = vadd.f32 %v1016, 1.0
  %v1022 = vadd.f32 %v1018, 1.0
  %v1023 = vrcp.pop %v1019
  %v1024 = vmul.f32 1.0, %v1023
  %v1025 = vrcp.pop %v1020
  %v1026 = vmul.f32 1.0, %v1025
  %v1027 = vrcp.pop %v1021
  %v1028 = vmul.f32 1.0, %v1027
  %v1029 = vrcp.pop %v1022
  %v1030 = vmul.f32 1.0, %v1029
  %v1031 = vtanh.pop %v926
  %v1032 = vtanh.pop %v928
  %v1033 = vtanh.pop %v977
  %v1034 = vtanh.pop %v979
  %v1035 = vmul.f32 %v1000, %v1031
  %v1036 = vmul.f32 %v1002, %v1032
  %v1037 = vmul.f32 %v1004, %v1033
  %v1038 = vmul.f32 %v1006, %v1034
  %v1039 = vtanh.pop %v1035
  %v1040 = vtanh.pop %v1036
  %v1041 = vtanh.pop %v1037
  %v1042 = vtanh.pop %v1038
  %v1043 = vmul.f32 %v1024, %v1039
  %v1044 = vmul.f32 %v1026, %v1040
  %v1045 = vmul.f32 %v1028, %v1041
  %v1046 = vmul.f32 %v1030, %v1042
  %s1047 = scalar_lea.vmem %s4, 8
  %v1048 = vld [vmem:[%s1047] sm:$0xff]
  %1050 = vset.pattern.permute.xlu0 0
  %1051 = vperm.xlu0 %1050, %v1048
  %v1052 = vpop.permute.xlu0 %1051
  %v1054 = vadd.f32 %v1043, %v1052
  %v1055 = vadd.f32 %v1044, %v1052
  %v1056 = vadd.f32 %v1045, %v1052
  %v1057 = vadd.f32 %v1046, %v1052
  %1058 = vrot.lane.b32.xlu0 %v1054, 17
  %v1059 = vpop.permute.xlu0 %1058
  %1060 = vrot.lane.b32.xlu0 %v1055, 17
  %v1061 = vpop.permute.xlu0 %1060
  %1062 = vrot.lane.b32.xlu0 %v1056, 17
  %v1063 = vpop.permute.xlu0 %1062
  %1064 = vrot.lane.b32.xlu0 %v1057, 17
  %v1065 = vpop.permute.xlu0 %1064
  %v1066 = vsel %vm87, %v1063, %v1065
  %v1067 = vsel %vm87, %v1061, %v1063
  %v1068 = vsel %vm87, %v1059, %v1061
  %v1069 = vsel %vm87, %v1065, %v1059
  %v1070 = vsel %vm59, %v1069, 0.0
  %v1071 = vsel %vm60, %v1068, 0.0
  %v1072 = vsel %vm61, %v1067, 0.0
  %v1073 = vsel %vm62, %v1066, 0.0
  %v1074 = vpack.c.bf16 %v1070, %v1070
  %v1075 = vpack.c.bf16 %v1071, %v1071
  %v1076 = vpack.c.bf16 %v1072, %v1072
  %v1077 = vpack.c.bf16 %v1073, %v1073
  %1078 = vrot.lane.b32.xlu0 %v1054, 16
  %v1079 = vpop.permute.xlu0 %1078
  %1080 = vrot.lane.b32.xlu0 %v1055, 16
  %v1081 = vpop.permute.xlu0 %1080
  %1082 = vrot.lane.b32.xlu0 %v1056, 16
  %v1083 = vpop.permute.xlu0 %1082
  %1084 = vrot.lane.b32.xlu0 %v1057, 16
  %v1085 = vpop.permute.xlu0 %1084
  %v1086 = vsel %vm108, %v1083, %v1085
  %v1087 = vsel %vm108, %v1081, %v1083
  %v1088 = vsel %vm108, %v1079, %v1081
  %v1089 = vsel %vm108, %v1085, %v1079
  %v1090 = vsel %vm43, %v1089, 0.0
  %v1091 = vsel %vm44, %v1088, 0.0
  %v1092 = vsel %vm45, %v1087, 0.0
  %v1093 = vsel %vm46, %v1086, 0.0
  %v1094 = vpack.c.bf16 %v1090, %v1090
  %v1095 = vpack.c.bf16 %v1091, %v1091
  %v1096 = vpack.c.bf16 %v1092, %v1092
  %v1097 = vpack.c.bf16 %v1093, %v1093
  %1098 = vrot.lane.b32.xlu0 %v1054, 15
  %v1099 = vpop.permute.xlu0 %1098
  %1100 = vrot.lane.b32.xlu0 %v1055, 15
  %v1101 = vpop.permute.xlu0 %1100
  %1102 = vrot.lane.b32.xlu0 %v1056, 15
  %v1103 = vpop.permute.xlu0 %1102
  %1104 = vrot.lane.b32.xlu0 %v1057, 15
  %v1105 = vpop.permute.xlu0 %1104
  %v1106 = vsel %vm129, %v1103, %v1105
  %v1107 = vsel %vm129, %v1101, %v1103
  %v1108 = vsel %vm129, %v1099, %v1101
  %v1109 = vsel %vm129, %v1105, %v1099
  %v1110 = vsel %vm63, %v1109, 0.0
  %v1111 = vsel %vm64, %v1108, 0.0
  %v1112 = vsel %vm65, %v1107, 0.0
  %v1113 = vsel %vm66, %v1106, 0.0
  %v1114 = vpack.c.bf16 %v1110, %v1110
  %v1115 = vpack.c.bf16 %v1111, %v1111
  %v1116 = vpack.c.bf16 %v1112, %v1112
  %v1117 = vpack.c.bf16 %v1113, %v1113
  %1118 = vrot.lane.b32.xlu0 %v1054, 1
  %v1119 = vpop.permute.xlu0 %1118
  %1120 = vrot.lane.b32.xlu0 %v1055, 1
  %v1121 = vpop.permute.xlu0 %1120
  %1122 = vrot.lane.b32.xlu0 %v1056, 1
  %v1123 = vpop.permute.xlu0 %1122
  %1124 = vrot.lane.b32.xlu0 %v1057, 1
  %v1125 = vpop.permute.xlu0 %1124
  %v1126 = vsel %vm150, %v1123, %v1125
  %v1127 = vsel %vm150, %v1121, %v1123
  %v1128 = vsel %vm150, %v1119, %v1121
  %v1129 = vsel %vm150, %v1125, %v1119
  %v1130 = vsel %vm51, %v1129, 0.0
  %v1131 = vsel %vm52, %v1128, 0.0
  %v1132 = vsel %vm53, %v1127, 0.0
  %v1133 = vsel %vm54, %v1126, 0.0
  %v1134 = vpack.c.bf16 %v1130, %v1130
  %v1135 = vpack.c.bf16 %v1131, %v1131
  %v1136 = vpack.c.bf16 %v1132, %v1132
  %v1137 = vpack.c.bf16 %v1133, %v1133
  %v1138 = vpack.c.bf16 %v1054, %v1054
  %v1139 = vpack.c.bf16 %v1055, %v1055
  %v1140 = vpack.c.bf16 %v1056, %v1056
  %v1141 = vpack.c.bf16 %v1057, %v1057
  %1142 = vrot.lane.b32.xlu0 %v1054, 127
  %v1143 = vpop.permute.xlu0 %1142
  %1144 = vrot.lane.b32.xlu0 %v1055, 127
  %v1145 = vpop.permute.xlu0 %1144
  %1146 = vrot.lane.b32.xlu0 %v1056, 127
  %v1147 = vpop.permute.xlu0 %1146
  %1148 = vrot.lane.b32.xlu0 %v1057, 127
  %v1149 = vpop.permute.xlu0 %1148
  %v1150 = vsel %vm175, %v1147, %v1149
  %v1151 = vsel %vm175, %v1145, %v1147
  %v1152 = vsel %vm175, %v1143, %v1145
  %v1153 = vsel %vm175, %v1149, %v1143
  %v1154 = vsel %vm55, %v1152, 0.0
  %v1155 = vsel %vm56, %v1151, 0.0
  %v1156 = vsel %vm57, %v1150, 0.0
  %v1157 = vsel %vm58, %v1153, 0.0
  %v1158 = vpack.c.bf16 %v1154, %v1154
  %v1159 = vpack.c.bf16 %v1155, %v1155
  %v1160 = vpack.c.bf16 %v1156, %v1156
  %v1161 = vpack.c.bf16 %v1157, %v1157
  %1162 = vrot.lane.b32.xlu0 %v1054, 113
  %v1163 = vpop.permute.xlu0 %1162
  %1164 = vrot.lane.b32.xlu0 %v1055, 113
  %v1165 = vpop.permute.xlu0 %1164
  %1166 = vrot.lane.b32.xlu0 %v1056, 113
  %v1167 = vpop.permute.xlu0 %1166
  %1168 = vrot.lane.b32.xlu0 %v1057, 113
  %v1169 = vpop.permute.xlu0 %1168
  %v1170 = vsel %vm196, %v1167, %v1169
  %v1171 = vsel %vm196, %v1165, %v1167
  %v1172 = vsel %vm196, %v1163, %v1165
  %v1173 = vsel %vm196, %v1169, %v1163
  %v1174 = vsel %vm67, %v1172, 0.0
  %v1175 = vsel %vm68, %v1171, 0.0
  %v1176 = vsel %vm69, %v1170, 0.0
  %v1177 = vsel %vm70, %v1173, 0.0
  %v1178 = vpack.c.bf16 %v1174, %v1174
  %v1179 = vpack.c.bf16 %v1175, %v1175
  %v1180 = vpack.c.bf16 %v1176, %v1176
  %v1181 = vpack.c.bf16 %v1177, %v1177
  %1182 = vrot.lane.b32.xlu0 %v1054, 112
  %v1183 = vpop.permute.xlu0 %1182
  %1184 = vrot.lane.b32.xlu0 %v1055, 112
  %v1185 = vpop.permute.xlu0 %1184
  %1186 = vrot.lane.b32.xlu0 %v1056, 112
  %v1187 = vpop.permute.xlu0 %1186
  %1188 = vrot.lane.b32.xlu0 %v1057, 112
  %v1189 = vpop.permute.xlu0 %1188
  %v1190 = vsel %vm217, %v1187, %v1189
  %v1191 = vsel %vm217, %v1185, %v1187
  %v1192 = vsel %vm217, %v1183, %v1185
  %v1193 = vsel %vm217, %v1189, %v1183
  %v1194 = vsel %vm47, %v1192, 0.0
  %v1195 = vsel %vm48, %v1191, 0.0
  %v1196 = vsel %vm49, %v1190, 0.0
  %v1197 = vsel %vm50, %v1193, 0.0
  %v1198 = vpack.c.bf16 %v1194, %v1194
  %v1199 = vpack.c.bf16 %v1195, %v1195
  %v1200 = vpack.c.bf16 %v1196, %v1196
  %v1201 = vpack.c.bf16 %v1197, %v1197
  %1202 = vrot.lane.b32.xlu0 %v1054, 111
  %v1203 = vpop.permute.xlu0 %1202
  %1204 = vrot.lane.b32.xlu0 %v1055, 111
  %v1205 = vpop.permute.xlu0 %1204
  %1206 = vrot.lane.b32.xlu0 %v1056, 111
  %v1207 = vpop.permute.xlu0 %1206
  %1208 = vrot.lane.b32.xlu0 %v1057, 111
  %v1209 = vpop.permute.xlu0 %1208
  %v1210 = vsel %vm238, %v1207, %v1209
  %v1211 = vsel %vm238, %v1205, %v1207
  %v1212 = vsel %vm238, %v1203, %v1205
  %v1213 = vsel %vm238, %v1209, %v1203
  %v1214 = vsel %vm71, %v1212, 0.0
  %v1215 = vsel %vm72, %v1211, 0.0
  %v1216 = vsel %vm73, %v1210, 0.0
  %v1217 = vsel %vm74, %v1213, 0.0
  %v1218 = vpack.c.bf16 %v1214, %v1214
  %v1219 = vpack.c.bf16 %v1215, %v1215
  %v1220 = vpack.c.bf16 %v1216, %v1216
  %v1221 = vpack.c.bf16 %v1217, %v1217
  %v1226 = vrot.slane %v1094, 4
  %v1227 = vrot.slane %v1095, 4
  %v1228 = vrot.slane %v1096, 4
  %v1229 = vrot.slane %v1097, 4
  %v1234 = vrot.slane %v1134, 4
  %v1235 = vrot.slane %v1135, 4
  %v1236 = vrot.slane %v1136, 4
  %v1237 = vrot.slane %v1137, 4
  %v1242 = vrot.slane %v1158, 4
  %v1243 = vrot.slane %v1159, 4
  %v1244 = vrot.slane %v1160, 4
  %v1245 = vrot.slane %v1161, 4
  %v1250 = vrot.slane %v1198, 4
  %v1251 = vrot.slane %v1199, 4
  %v1252 = vrot.slane %v1200, 4
  %v1253 = vrot.slane %v1201, 4
  %v1256 = vsel %vm283, %v1074, %v1226
  %v1260 = vsel %vm283, %v1075, %v1227
  %v1264 = vsel %vm283, %v1076, %v1228
  %v1268 = vsel %vm283, %v1077, %v1229
  %v1272 = vsel %vm283, %v1114, %v1234
  %v1276 = vsel %vm283, %v1115, %v1235
  %v1280 = vsel %vm283, %v1116, %v1236
  %v1284 = vsel %vm283, %v1117, %v1237
  %v1288 = vsel %vm283, %v1138, %v1242
  %v1292 = vsel %vm283, %v1139, %v1243
  %v1296 = vsel %vm283, %v1140, %v1244
  %v1300 = vsel %vm283, %v1141, %v1245
  %v1304 = vsel %vm283, %v1178, %v1250
  %v1308 = vsel %vm283, %v1179, %v1251
  %v1312 = vsel %vm283, %v1180, %v1252
  %v1316 = vsel %vm283, %v1181, %v1253
  %s1318 = scalar_lea.vmem %s2, 24
  %v1319 = vld [vmem:[%s1318] sm:$0xf]
  %v1320 = vld [vmem:[%s1318 + $0x4] sm:$0xf]
  %v1321 = vld [vmem:[%s1318 + $0x8] sm:$0xf]
  %s1322 = scalar_lea.vmem %s3, 48
  %v1323 = vld [vmem:[%s1322] sm:$0xff]
  %v1324 = vld [vmem:[%s1322 + $0x8] sm:$0xff]
  %v1325 = vld [vmem:[%s1322 + $0x10] sm:$0xff]
  %1327 = vset.pattern.permute.xlu0 0
  %1328 = vperm.xlu0 %1327, %v1323
  %v1329 = vpop.permute.xlu0 %1328
  %1332 = vset.pattern.permute.xlu0 0
  %1333 = vperm.xlu0 %1332, %v1324
  %v1334 = vpop.permute.xlu0 %1333
  %1337 = vset.pattern.permute.xlu0 0
  %1338 = vperm.xlu0 %1337, %v1325
  %v1339 = vpop.permute.xlu0 %1338
  %v1344 = vunpack.c.l.b16 %v1319
  %v1345 = vunpack.c.l.b16 %v1320
  %v1346 = vunpack.c.l.b16 %v1321
  %v1347 = vpack.c.b16 %v1345, %v1344
  %v1348 = vpack.c.b16 %v1346, %v1346
  %v1350 = vsel %vm377, %v1347, 0
  %v1353 = vsel %vm377, %v1348, 0
  %v1356 = vsel %vm283, %v1218, 0
  %v1359 = vsel %vm283, %v1219, 0
  %v1362 = vsel %vm283, %v1220, 0
  %v1365 = vsel %vm283, %v1221, 0
  %1367 = vmatprep.subr.bf16.mxu0 0
  %1368 = vmatpush1.bf16.msra.mxu0 0
  %1369 = vmatprep.subr.bf16.mxu0 0
  %1370 = vmatpush1.bf16.msra.mxu0 0
  %1371 = vmatprep.subr.bf16.mxu0 0
  %1372 = vmatpush1.bf16.msra.mxu0 0
  %1373 = vmatprep.subr.bf16.mxu0 %v1359
  %1374 = vmatpush1.bf16.msra.mxu0 %v1356
  %1375 = vmatprep.subr.bf16.mxu0 %v1308
  %1376 = vmatpush1.bf16.msra.mxu0 %v1304
  %1377 = vmatprep.subr.bf16.mxu0 %v1292
  %1378 = vmatpush1.bf16.msra.mxu0 %v1288
  %1379 = vmatprep.subr.bf16.mxu0 %v1276
  %1380 = vmatpush1.bf16.msra.mxu0 %v1272
  %1381 = vmatprep.subr.bf16.mxu0 %v1260
  %1382 = vmatpush1.bf16.msra.mxu0 %v1256
  %1383 = vmatprep.subr.bf16.mxu0 0
  %1384 = vmatpush2.bf16.msra.mxu0 0
  %1385 = vmatprep.subr.bf16.mxu0 0
  %1386 = vmatpush2.bf16.msra.mxu0 0
  %1387 = vmatprep.subr.bf16.mxu0 0
  %1388 = vmatpush2.bf16.msra.mxu0 0
  %1389 = vmatprep.subr.bf16.mxu0 0
  %1390 = vmatpush2.bf16.msra.mxu0 0
  %1391 = vmatprep.subr.bf16.mxu0 0
  %1392 = vmatpush2.bf16.msra.mxu0 0
  %1393 = vmatprep.subr.bf16.mxu0 0
  %1394 = vmatpush2.bf16.msra.mxu0 0
  %1395 = vmatprep.subr.bf16.mxu0 0
  %1396 = vmatpush2.bf16.msra.mxu0 0
  %1397 = vmatprep.subr.bf16.mxu0 0
  %1398 = vmatpush2.bf16.msra.mxu0 0
  %1399 = vmatprep.mubr.bf16.mxu0 0
  %1400 = vmatmul.mubr.bf16.gmra.mxu0 %v1350
  %v1401 = vpop.f32.mrf.mxu0
  %v1402 = vadd.f32 %v1329, %v1401
  %v1403 = vpop.f32.mrf.mxu0
  %v1404 = vadd.f32 %v1329, %v1403
  %v1405 = vpop.f32.mrf.mxu0
  %v1406 = vadd.f32 %v1334, %v1405
  %v1407 = vpop.f32.mrf.mxu0
  %v1408 = vadd.f32 %v1334, %v1407
  %1409 = vmatprep.mubr.bf16.mxu0 0
  %1410 = vmatmul.mubr.bf16.gmra.mxu0 %v1353
  %v1411 = vpop.f32.mrf.mxu0
  %v1412 = vadd.f32 %v1339, %v1411
  %v1413 = vpop.f32.mrf.mxu0
  %v1414 = vadd.f32 %v1339, %v1413
  %v1415 = vpop.f32.mrf.mxu0
  %v1416 = vpop.f32.mrf.mxu0
  %1417 = vdwg.mxu0
  %1418 = vmatprep.subr.bf16.mxu0 0
  %1419 = vmatpush1.bf16.msra.mxu0 0
  %1420 = vmatprep.subr.bf16.mxu0 0
  %1421 = vmatpush1.bf16.msra.mxu0 0
  %1422 = vmatprep.subr.bf16.mxu0 0
  %1423 = vmatpush1.bf16.msra.mxu0 0
  %1424 = vmatprep.subr.bf16.mxu0 %v1365
  %1425 = vmatpush1.bf16.msra.mxu0 %v1362
  %1426 = vmatprep.subr.bf16.mxu0 %v1316
  %1427 = vmatpush1.bf16.msra.mxu0 %v1312
  %1428 = vmatprep.subr.bf16.mxu0 %v1300
  %1429 = vmatpush1.bf16.msra.mxu0 %v1296
  %1430 = vmatprep.subr.bf16.mxu0 %v1284
  %1431 = vmatpush1.bf16.msra.mxu0 %v1280
  %1432 = vmatprep.subr.bf16.mxu0 %v1268
  %1433 = vmatpush1.bf16.msra.mxu0 %v1264
  %1434 = vmatprep.subr.bf16.mxu0 0
  %1435 = vmatpush2.bf16.msra.mxu0 0
  %1436 = vmatprep.subr.bf16.mxu0 0
  %1437 = vmatpush2.bf16.msra.mxu0 0
  %1438 = vmatprep.subr.bf16.mxu0 0
  %1439 = vmatpush2.bf16.msra.mxu0 0
  %1440 = vmatprep.subr.bf16.mxu0 0
  %1441 = vmatpush2.bf16.msra.mxu0 0
  %1442 = vmatprep.subr.bf16.mxu0 0
  %1443 = vmatpush2.bf16.msra.mxu0 0
  %1444 = vmatprep.subr.bf16.mxu0 0
  %1445 = vmatpush2.bf16.msra.mxu0 0
  %1446 = vmatprep.subr.bf16.mxu0 0
  %1447 = vmatpush2.bf16.msra.mxu0 0
  %1448 = vmatprep.subr.bf16.mxu0 0
  %1449 = vmatpush2.bf16.msra.mxu0 0
  %1450 = vmatprep.mubr.bf16.mxu0 0
  %1451 = vmatmul.mubr.bf16.gmra.mxu0 %v1350
  %v1452 = vpop.f32.mrf.mxu0
  %v1453 = vadd.f32 %v1329, %v1452
  %v1454 = vpop.f32.mrf.mxu0
  %v1455 = vadd.f32 %v1329, %v1454
  %v1456 = vpop.f32.mrf.mxu0
  %v1457 = vadd.f32 %v1334, %v1456
  %v1458 = vpop.f32.mrf.mxu0
  %v1459 = vadd.f32 %v1334, %v1458
  %1460 = vmatprep.mubr.bf16.mxu0 0
  %1461 = vmatmul.mubr.bf16.gmra.mxu0 %v1353
  %v1462 = vpop.f32.mrf.mxu0
  %v1463 = vadd.f32 %v1339, %v1462
  %v1464 = vpop.f32.mrf.mxu0
  %v1465 = vadd.f32 %v1339, %v1464
  %v1466 = vpop.f32.mrf.mxu0
  %v1467 = vpop.f32.mrf.mxu0
  %1468 = vdwg.mxu0
  %v1469 = vxor.u32 %v1402, 2147483648
  %v1470 = vxor.u32 %v1404, 2147483648
  %v1471 = vxor.u32 %v1453, 2147483648
  %v1472 = vxor.u32 %v1455, 2147483648
  %v1473 = vmul.f32 %v1469, 1.442695
  %v1474 = vpow.pop %v1473
  %v1475 = vmul.f32 %v1470, 1.442695
  %v1476 = vpow.pop %v1475
  %v1477 = vmul.f32 %v1471, 1.442695
  %v1478 = vpow.pop %v1477
  %v1479 = vmul.f32 %v1472, 1.442695
  %v1480 = vpow.pop %v1479
  %v1481 = vadd.f32 %v1474, 1.0
  %v1482 = vadd.f32 %v1476, 1.0
  %v1483 = vadd.f32 %v1478, 1.0
  %v1484 = vadd.f32 %v1480, 1.0
  %v1485 = vrcp.pop %v1481
  %v1486 = vmul.f32 1.0, %v1485
  %v1487 = vrcp.pop %v1482
  %v1488 = vmul.f32 1.0, %v1487
  %v1489 = vrcp.pop %v1483
  %v1490 = vmul.f32 1.0, %v1489
  %v1491 = vrcp.pop %v1484
  %v1492 = vmul.f32 1.0, %v1491
  %v1493 = vxor.u32 %v1406, 2147483648
  %v1494 = vxor.u32 %v1408, 2147483648
  %v1495 = vxor.u32 %v1457, 2147483648
  %v1496 = vxor.u32 %v1459, 2147483648
  %v1497 = vmul.f32 %v1493, 1.442695
  %v1498 = vpow.pop %v1497
  %v1499 = vmul.f32 %v1494, 1.442695
  %v1500 = vpow.pop %v1499
  %v1501 = vmul.f32 %v1495, 1.442695
  %v1502 = vpow.pop %v1501
  %v1503 = vmul.f32 %v1496, 1.442695
  %v1504 = vpow.pop %v1503
  %v1505 = vadd.f32 %v1498, 1.0
  %v1506 = vadd.f32 %v1500, 1.0
  %v1507 = vadd.f32 %v1502, 1.0
  %v1508 = vadd.f32 %v1504, 1.0
  %v1509 = vrcp.pop %v1505
  %v1510 = vmul.f32 1.0, %v1509
  %v1511 = vrcp.pop %v1506
  %v1512 = vmul.f32 1.0, %v1511
  %v1513 = vrcp.pop %v1507
  %v1514 = vmul.f32 1.0, %v1513
  %v1515 = vrcp.pop %v1508
  %v1516 = vmul.f32 1.0, %v1515
  %v1517 = vtanh.pop %v1412
  %v1518 = vtanh.pop %v1414
  %v1519 = vtanh.pop %v1463
  %v1520 = vtanh.pop %v1465
  %v1521 = vmul.f32 %v1486, %v1517
  %v1522 = vmul.f32 %v1488, %v1518
  %v1523 = vmul.f32 %v1490, %v1519
  %v1524 = vmul.f32 %v1492, %v1520
  %v1525 = vtanh.pop %v1521
  %v1526 = vtanh.pop %v1522
  %v1527 = vtanh.pop %v1523
  %v1528 = vtanh.pop %v1524
  %v1529 = vmul.f32 %v1510, %v1525
  %v1530 = vmul.f32 %v1512, %v1526
  %v1531 = vmul.f32 %v1514, %v1527
  %v1532 = vmul.f32 %v1516, %v1528
  %s1533 = scalar_lea.vmem %s4, 16
  %v1534 = vld [vmem:[%s1533] sm:$0xff]
  %1536 = vset.pattern.permute.xlu0 0
  %1537 = vperm.xlu0 %1536, %v1534
  %v1538 = vpop.permute.xlu0 %1537
  %v1540 = vadd.f32 %v1529, %v1538
  %v1541 = vadd.f32 %v1530, %v1538
  %v1542 = vadd.f32 %v1531, %v1538
  %v1543 = vadd.f32 %v1532, %v1538
  %1544 = vrot.lane.b32.xlu0 %v1540, 17
  %v1545 = vpop.permute.xlu0 %1544
  %1546 = vrot.lane.b32.xlu0 %v1541, 17
  %v1547 = vpop.permute.xlu0 %1546
  %1548 = vrot.lane.b32.xlu0 %v1542, 17
  %v1549 = vpop.permute.xlu0 %1548
  %1550 = vrot.lane.b32.xlu0 %v1543, 17
  %v1551 = vpop.permute.xlu0 %1550
  %v1552 = vsel %vm87, %v1549, %v1551
  %v1553 = vsel %vm87, %v1547, %v1549
  %v1554 = vsel %vm87, %v1545, %v1547
  %v1555 = vsel %vm87, %v1551, %v1545
  %v1556 = vsel %vm59, %v1555, 0.0
  %v1557 = vsel %vm60, %v1554, 0.0
  %v1558 = vsel %vm61, %v1553, 0.0
  %v1559 = vsel %vm62, %v1552, 0.0
  %v1560 = vpack.c.bf16 %v1556, %v1556
  %v1561 = vpack.c.bf16 %v1557, %v1557
  %v1562 = vpack.c.bf16 %v1558, %v1558
  %v1563 = vpack.c.bf16 %v1559, %v1559
  %1564 = vrot.lane.b32.xlu0 %v1540, 16
  %v1565 = vpop.permute.xlu0 %1564
  %1566 = vrot.lane.b32.xlu0 %v1541, 16
  %v1567 = vpop.permute.xlu0 %1566
  %1568 = vrot.lane.b32.xlu0 %v1542, 16
  %v1569 = vpop.permute.xlu0 %1568
  %1570 = vrot.lane.b32.xlu0 %v1543, 16
  %v1571 = vpop.permute.xlu0 %1570
  %v1572 = vsel %vm108, %v1569, %v1571
  %v1573 = vsel %vm108, %v1567, %v1569
  %v1574 = vsel %vm108, %v1565, %v1567
  %v1575 = vsel %vm108, %v1571, %v1565
  %v1576 = vsel %vm43, %v1575, 0.0
  %v1577 = vsel %vm44, %v1574, 0.0
  %v1578 = vsel %vm45, %v1573, 0.0
  %v1579 = vsel %vm46, %v1572, 0.0
  %v1580 = vpack.c.bf16 %v1576, %v1576
  %v1581 = vpack.c.bf16 %v1577, %v1577
  %v1582 = vpack.c.bf16 %v1578, %v1578
  %v1583 = vpack.c.bf16 %v1579, %v1579
  %1584 = vrot.lane.b32.xlu0 %v1540, 15
  %v1585 = vpop.permute.xlu0 %1584
  %1586 = vrot.lane.b32.xlu0 %v1541, 15
  %v1587 = vpop.permute.xlu0 %1586
  %1588 = vrot.lane.b32.xlu0 %v1542, 15
  %v1589 = vpop.permute.xlu0 %1588
  %1590 = vrot.lane.b32.xlu0 %v1543, 15
  %v1591 = vpop.permute.xlu0 %1590
  %v1592 = vsel %vm129, %v1589, %v1591
  %v1593 = vsel %vm129, %v1587, %v1589
  %v1594 = vsel %vm129, %v1585, %v1587
  %v1595 = vsel %vm129, %v1591, %v1585
  %v1596 = vsel %vm63, %v1595, 0.0
  %v1597 = vsel %vm64, %v1594, 0.0
  %v1598 = vsel %vm65, %v1593, 0.0
  %v1599 = vsel %vm66, %v1592, 0.0
  %v1600 = vpack.c.bf16 %v1596, %v1596
  %v1601 = vpack.c.bf16 %v1597, %v1597
  %v1602 = vpack.c.bf16 %v1598, %v1598
  %v1603 = vpack.c.bf16 %v1599, %v1599
  %1604 = vrot.lane.b32.xlu0 %v1540, 1
  %v1605 = vpop.permute.xlu0 %1604
  %1606 = vrot.lane.b32.xlu0 %v1541, 1
  %v1607 = vpop.permute.xlu0 %1606
  %1608 = vrot.lane.b32.xlu0 %v1542, 1
  %v1609 = vpop.permute.xlu0 %1608
  %1610 = vrot.lane.b32.xlu0 %v1543, 1
  %v1611 = vpop.permute.xlu0 %1610
  %v1612 = vsel %vm150, %v1609, %v1611
  %v1613 = vsel %vm150, %v1607, %v1609
  %v1614 = vsel %vm150, %v1605, %v1607
  %v1615 = vsel %vm150, %v1611, %v1605
  %v1616 = vsel %vm51, %v1615, 0.0
  %v1617 = vsel %vm52, %v1614, 0.0
  %v1618 = vsel %vm53, %v1613, 0.0
  %v1619 = vsel %vm54, %v1612, 0.0
  %v1620 = vpack.c.bf16 %v1616, %v1616
  %v1621 = vpack.c.bf16 %v1617, %v1617
  %v1622 = vpack.c.bf16 %v1618, %v1618
  %v1623 = vpack.c.bf16 %v1619, %v1619
  %v1624 = vpack.c.bf16 %v1540, %v1540
  %v1625 = vpack.c.bf16 %v1541, %v1541
  %v1626 = vpack.c.bf16 %v1542, %v1542
  %v1627 = vpack.c.bf16 %v1543, %v1543
  %1628 = vrot.lane.b32.xlu0 %v1540, 127
  %v1629 = vpop.permute.xlu0 %1628
  %1630 = vrot.lane.b32.xlu0 %v1541, 127
  %v1631 = vpop.permute.xlu0 %1630
  %1632 = vrot.lane.b32.xlu0 %v1542, 127
  %v1633 = vpop.permute.xlu0 %1632
  %1634 = vrot.lane.b32.xlu0 %v1543, 127
  %v1635 = vpop.permute.xlu0 %1634
  %v1636 = vsel %vm175, %v1633, %v1635
  %v1637 = vsel %vm175, %v1631, %v1633
  %v1638 = vsel %vm175, %v1629, %v1631
  %v1639 = vsel %vm175, %v1635, %v1629
  %v1640 = vsel %vm55, %v1638, 0.0
  %v1641 = vsel %vm56, %v1637, 0.0
  %v1642 = vsel %vm57, %v1636, 0.0
  %v1643 = vsel %vm58, %v1639, 0.0
  %v1644 = vpack.c.bf16 %v1640, %v1640
  %v1645 = vpack.c.bf16 %v1641, %v1641
  %v1646 = vpack.c.bf16 %v1642, %v1642
  %v1647 = vpack.c.bf16 %v1643, %v1643
  %1648 = vrot.lane.b32.xlu0 %v1540, 113
  %v1649 = vpop.permute.xlu0 %1648
  %1650 = vrot.lane.b32.xlu0 %v1541, 113
  %v1651 = vpop.permute.xlu0 %1650
  %1652 = vrot.lane.b32.xlu0 %v1542, 113
  %v1653 = vpop.permute.xlu0 %1652
  %1654 = vrot.lane.b32.xlu0 %v1543, 113
  %v1655 = vpop.permute.xlu0 %1654
  %v1656 = vsel %vm196, %v1653, %v1655
  %v1657 = vsel %vm196, %v1651, %v1653
  %v1658 = vsel %vm196, %v1649, %v1651
  %v1659 = vsel %vm196, %v1655, %v1649
  %v1660 = vsel %vm67, %v1658, 0.0
  %v1661 = vsel %vm68, %v1657, 0.0
  %v1662 = vsel %vm69, %v1656, 0.0
  %v1663 = vsel %vm70, %v1659, 0.0
  %v1664 = vpack.c.bf16 %v1660, %v1660
  %v1665 = vpack.c.bf16 %v1661, %v1661
  %v1666 = vpack.c.bf16 %v1662, %v1662
  %v1667 = vpack.c.bf16 %v1663, %v1663
  %1668 = vrot.lane.b32.xlu0 %v1540, 112
  %v1669 = vpop.permute.xlu0 %1668
  %1670 = vrot.lane.b32.xlu0 %v1541, 112
  %v1671 = vpop.permute.xlu0 %1670
  %1672 = vrot.lane.b32.xlu0 %v1542, 112
  %v1673 = vpop.permute.xlu0 %1672
  %1674 = vrot.lane.b32.xlu0 %v1543, 112
  %v1675 = vpop.permute.xlu0 %1674
  %v1676 = vsel %vm217, %v1673, %v1675
  %v1677 = vsel %vm217, %v1671, %v1673
  %v1678 = vsel %vm217, %v1669, %v1671
  %v1679 = vsel %vm217, %v1675, %v1669
  %v1680 = vsel %vm47, %v1678, 0.0
  %v1681 = vsel %vm48, %v1677, 0.0
  %v1682 = vsel %vm49, %v1676, 0.0
  %v1683 = vsel %vm50, %v1679, 0.0
  %v1684 = vpack.c.bf16 %v1680, %v1680
  %v1685 = vpack.c.bf16 %v1681, %v1681
  %v1686 = vpack.c.bf16 %v1682, %v1682
  %v1687 = vpack.c.bf16 %v1683, %v1683
  %1688 = vrot.lane.b32.xlu0 %v1540, 111
  %v1689 = vpop.permute.xlu0 %1688
  %1690 = vrot.lane.b32.xlu0 %v1541, 111
  %v1691 = vpop.permute.xlu0 %1690
  %1692 = vrot.lane.b32.xlu0 %v1542, 111
  %v1693 = vpop.permute.xlu0 %1692
  %1694 = vrot.lane.b32.xlu0 %v1543, 111
  %v1695 = vpop.permute.xlu0 %1694
  %v1696 = vsel %vm238, %v1693, %v1695
  %v1697 = vsel %vm238, %v1691, %v1693
  %v1698 = vsel %vm238, %v1689, %v1691
  %v1699 = vsel %vm238, %v1695, %v1689
  %v1700 = vsel %vm71, %v1698, 0.0
  %v1701 = vsel %vm72, %v1697, 0.0
  %v1702 = vsel %vm73, %v1696, 0.0
  %v1703 = vsel %vm74, %v1699, 0.0
  %v1704 = vpack.c.bf16 %v1700, %v1700
  %v1705 = vpack.c.bf16 %v1701, %v1701
  %v1706 = vpack.c.bf16 %v1702, %v1702
  %v1707 = vpack.c.bf16 %v1703, %v1703
  %v1712 = vrot.slane %v1580, 4
  %v1713 = vrot.slane %v1581, 4
  %v1714 = vrot.slane %v1582, 4
  %v1715 = vrot.slane %v1583, 4
  %v1720 = vrot.slane %v1620, 4
  %v1721 = vrot.slane %v1621, 4
  %v1722 = vrot.slane %v1622, 4
  %v1723 = vrot.slane %v1623, 4
  %v1728 = vrot.slane %v1644, 4
  %v1729 = vrot.slane %v1645, 4
  %v1730 = vrot.slane %v1646, 4
  %v1731 = vrot.slane %v1647, 4
  %v1736 = vrot.slane %v1684, 4
  %v1737 = vrot.slane %v1685, 4
  %v1738 = vrot.slane %v1686, 4
  %v1739 = vrot.slane %v1687, 4
  %v1742 = vsel %vm283, %v1560, %v1712
  %v1746 = vsel %vm283, %v1561, %v1713
  %v1750 = vsel %vm283, %v1562, %v1714
  %v1754 = vsel %vm283, %v1563, %v1715
  %v1758 = vsel %vm283, %v1600, %v1720
  %v1762 = vsel %vm283, %v1601, %v1721
  %v1766 = vsel %vm283, %v1602, %v1722
  %v1770 = vsel %vm283, %v1603, %v1723
  %v1774 = vsel %vm283, %v1624, %v1728
  %v1778 = vsel %vm283, %v1625, %v1729
  %v1782 = vsel %vm283, %v1626, %v1730
  %v1786 = vsel %vm283, %v1627, %v1731
  %v1790 = vsel %vm283, %v1664, %v1736
  %v1794 = vsel %vm283, %v1665, %v1737
  %v1798 = vsel %vm283, %v1666, %v1738
  %v1802 = vsel %vm283, %v1667, %v1739
  %s1804 = scalar_lea.vmem %s2, 36
  %v1805 = vld [vmem:[%s1804] sm:$0xf]
  %v1806 = vld [vmem:[%s1804 + $0x4] sm:$0xf]
  %v1807 = vld [vmem:[%s1804 + $0x8] sm:$0xf]
  %s1808 = scalar_lea.vmem %s3, 72
  %v1809 = vld [vmem:[%s1808] sm:$0xff]
  %v1810 = vld [vmem:[%s1808 + $0x8] sm:$0xff]
  %v1811 = vld [vmem:[%s1808 + $0x10] sm:$0xff]
  %1813 = vset.pattern.permute.xlu0 0
  %1814 = vperm.xlu0 %1813, %v1809
  %v1815 = vpop.permute.xlu0 %1814
  %1818 = vset.pattern.permute.xlu0 0
  %1819 = vperm.xlu0 %1818, %v1810
  %v1820 = vpop.permute.xlu0 %1819
  %1823 = vset.pattern.permute.xlu0 0
  %1824 = vperm.xlu0 %1823, %v1811
  %v1825 = vpop.permute.xlu0 %1824
  %v1830 = vunpack.c.l.b16 %v1805
  %v1831 = vunpack.c.l.b16 %v1806
  %v1832 = vunpack.c.l.b16 %v1807
  %v1833 = vpack.c.b16 %v1831, %v1830
  %v1834 = vpack.c.b16 %v1832, %v1832
  %v1836 = vsel %vm377, %v1833, 0
  %v1839 = vsel %vm377, %v1834, 0
  %v1842 = vsel %vm283, %v1704, 0
  %v1845 = vsel %vm283, %v1705, 0
  %v1848 = vsel %vm283, %v1706, 0
  %v1851 = vsel %vm283, %v1707, 0
  %1853 = vmatprep.subr.bf16.mxu0 0
  %1854 = vmatpush1.bf16.msra.mxu0 0
  %1855 = vmatprep.subr.bf16.mxu0 0
  %1856 = vmatpush1.bf16.msra.mxu0 0
  %1857 = vmatprep.subr.bf16.mxu0 0
  %1858 = vmatpush1.bf16.msra.mxu0 0
  %1859 = vmatprep.subr.bf16.mxu0 %v1845
  %1860 = vmatpush1.bf16.msra.mxu0 %v1842
  %1861 = vmatprep.subr.bf16.mxu0 %v1794
  %1862 = vmatpush1.bf16.msra.mxu0 %v1790
  %1863 = vmatprep.subr.bf16.mxu0 %v1778
  %1864 = vmatpush1.bf16.msra.mxu0 %v1774
  %1865 = vmatprep.subr.bf16.mxu0 %v1762
  %1866 = vmatpush1.bf16.msra.mxu0 %v1758
  %1867 = vmatprep.subr.bf16.mxu0 %v1746
  %1868 = vmatpush1.bf16.msra.mxu0 %v1742
  %1869 = vmatprep.subr.bf16.mxu0 0
  %1870 = vmatpush2.bf16.msra.mxu0 0
  %1871 = vmatprep.subr.bf16.mxu0 0
  %1872 = vmatpush2.bf16.msra.mxu0 0
  %1873 = vmatprep.subr.bf16.mxu0 0
  %1874 = vmatpush2.bf16.msra.mxu0 0
  %1875 = vmatprep.subr.bf16.mxu0 0
  %1876 = vmatpush2.bf16.msra.mxu0 0
  %1877 = vmatprep.subr.bf16.mxu0 0
  %1878 = vmatpush2.bf16.msra.mxu0 0
  %1879 = vmatprep.subr.bf16.mxu0 0
  %1880 = vmatpush2.bf16.msra.mxu0 0
  %1881 = vmatprep.subr.bf16.mxu0 0
  %1882 = vmatpush2.bf16.msra.mxu0 0
  %1883 = vmatprep.subr.bf16.mxu0 0
  %1884 = vmatpush2.bf16.msra.mxu0 0
  %1885 = vmatprep.mubr.bf16.mxu0 0
  %1886 = vmatmul.mubr.bf16.gmra.mxu0 %v1836
  %v1887 = vpop.f32.mrf.mxu0
  %v1888 = vadd.f32 %v1815, %v1887
  %v1889 = vpop.f32.mrf.mxu0
  %v1890 = vadd.f32 %v1815, %v1889
  %v1891 = vpop.f32.mrf.mxu0
  %v1892 = vadd.f32 %v1820, %v1891
  %v1893 = vpop.f32.mrf.mxu0
  %v1894 = vadd.f32 %v1820, %v1893
  %1895 = vmatprep.mubr.bf16.mxu0 0
  %1896 = vmatmul.mubr.bf16.gmra.mxu0 %v1839
  %v1897 = vpop.f32.mrf.mxu0
  %v1898 = vadd.f32 %v1825, %v1897
  %v1899 = vpop.f32.mrf.mxu0
  %v1900 = vadd.f32 %v1825, %v1899
  %v1901 = vpop.f32.mrf.mxu0
  %v1902 = vpop.f32.mrf.mxu0
  %1903 = vdwg.mxu0
  %1904 = vmatprep.subr.bf16.mxu0 0
  %1905 = vmatpush1.bf16.msra.mxu0 0
  %1906 = vmatprep.subr.bf16.mxu0 0
  %1907 = vmatpush1.bf16.msra.mxu0 0
  %1908 = vmatprep.subr.bf16.mxu0 0
  %1909 = vmatpush1.bf16.msra.mxu0 0
  %1910 = vmatprep.subr.bf16.mxu0 %v1851
  %1911 = vmatpush1.bf16.msra.mxu0 %v1848
  %1912 = vmatprep.subr.bf16.mxu0 %v1802
  %1913 = vmatpush1.bf16.msra.mxu0 %v1798
  %1914 = vmatprep.subr.bf16.mxu0 %v1786
  %1915 = vmatpush1.bf16.msra.mxu0 %v1782
  %1916 = vmatprep.subr.bf16.mxu0 %v1770
  %1917 = vmatpush1.bf16.msra.mxu0 %v1766
  %1918 = vmatprep.subr.bf16.mxu0 %v1754
  %1919 = vmatpush1.bf16.msra.mxu0 %v1750
  %1920 = vmatprep.subr.bf16.mxu0 0
  %1921 = vmatpush2.bf16.msra.mxu0 0
  %1922 = vmatprep.subr.bf16.mxu0 0
  %1923 = vmatpush2.bf16.msra.mxu0 0
  %1924 = vmatprep.subr.bf16.mxu0 0
  %1925 = vmatpush2.bf16.msra.mxu0 0
  %1926 = vmatprep.subr.bf16.mxu0 0
  %1927 = vmatpush2.bf16.msra.mxu0 0
  %1928 = vmatprep.subr.bf16.mxu0 0
  %1929 = vmatpush2.bf16.msra.mxu0 0
  %1930 = vmatprep.subr.bf16.mxu0 0
  %1931 = vmatpush2.bf16.msra.mxu0 0
  %1932 = vmatprep.subr.bf16.mxu0 0
  %1933 = vmatpush2.bf16.msra.mxu0 0
  %1934 = vmatprep.subr.bf16.mxu0 0
  %1935 = vmatpush2.bf16.msra.mxu0 0
  %1936 = vmatprep.mubr.bf16.mxu0 0
  %1937 = vmatmul.mubr.bf16.gmra.mxu0 %v1836
  %v1938 = vpop.f32.mrf.mxu0
  %v1939 = vadd.f32 %v1815, %v1938
  %v1940 = vpop.f32.mrf.mxu0
  %v1941 = vadd.f32 %v1815, %v1940
  %v1942 = vpop.f32.mrf.mxu0
  %v1943 = vadd.f32 %v1820, %v1942
  %v1944 = vpop.f32.mrf.mxu0
  %v1945 = vadd.f32 %v1820, %v1944
  %1946 = vmatprep.mubr.bf16.mxu0 0
  %1947 = vmatmul.mubr.bf16.gmra.mxu0 %v1839
  %v1948 = vpop.f32.mrf.mxu0
  %v1949 = vadd.f32 %v1825, %v1948
  %v1950 = vpop.f32.mrf.mxu0
  %v1951 = vadd.f32 %v1825, %v1950
  %v1952 = vpop.f32.mrf.mxu0
  %v1953 = vpop.f32.mrf.mxu0
  %1954 = vdwg.mxu0
  %v1955 = vxor.u32 %v1888, 2147483648
  %v1956 = vxor.u32 %v1890, 2147483648
  %v1957 = vxor.u32 %v1939, 2147483648
  %v1958 = vxor.u32 %v1941, 2147483648
  %v1959 = vmul.f32 %v1955, 1.442695
  %v1960 = vpow.pop %v1959
  %v1961 = vmul.f32 %v1956, 1.442695
  %v1962 = vpow.pop %v1961
  %v1963 = vmul.f32 %v1957, 1.442695
  %v1964 = vpow.pop %v1963
  %v1965 = vmul.f32 %v1958, 1.442695
  %v1966 = vpow.pop %v1965
  %v1967 = vadd.f32 %v1960, 1.0
  %v1968 = vadd.f32 %v1962, 1.0
  %v1969 = vadd.f32 %v1964, 1.0
  %v1970 = vadd.f32 %v1966, 1.0
  %v1971 = vrcp.pop %v1967
  %v1972 = vmul.f32 1.0, %v1971
  %v1973 = vrcp.pop %v1968
  %v1974 = vmul.f32 1.0, %v1973
  %v1975 = vrcp.pop %v1969
  %v1976 = vmul.f32 1.0, %v1975
  %v1977 = vrcp.pop %v1970
  %v1978 = vmul.f32 1.0, %v1977
  %v1979 = vxor.u32 %v1892, 2147483648
  %v1980 = vxor.u32 %v1894, 2147483648
  %v1981 = vxor.u32 %v1943, 2147483648
  %v1982 = vxor.u32 %v1945, 2147483648
  %v1983 = vmul.f32 %v1979, 1.442695
  %v1984 = vpow.pop %v1983
  %v1985 = vmul.f32 %v1980, 1.442695
  %v1986 = vpow.pop %v1985
  %v1987 = vmul.f32 %v1981, 1.442695
  %v1988 = vpow.pop %v1987
  %v1989 = vmul.f32 %v1982, 1.442695
  %v1990 = vpow.pop %v1989
  %v1991 = vadd.f32 %v1984, 1.0
  %v1992 = vadd.f32 %v1986, 1.0
  %v1993 = vadd.f32 %v1988, 1.0
  %v1994 = vadd.f32 %v1990, 1.0
  %v1995 = vrcp.pop %v1991
  %v1996 = vmul.f32 1.0, %v1995
  %v1997 = vrcp.pop %v1992
  %v1998 = vmul.f32 1.0, %v1997
  %v1999 = vrcp.pop %v1993
  %v2000 = vmul.f32 1.0, %v1999
  %v2001 = vrcp.pop %v1994
  %v2002 = vmul.f32 1.0, %v2001
  %v2003 = vtanh.pop %v1898
  %v2004 = vtanh.pop %v1900
  %v2005 = vtanh.pop %v1949
  %v2006 = vtanh.pop %v1951
  %v2007 = vmul.f32 %v1972, %v2003
  %v2008 = vmul.f32 %v1974, %v2004
  %v2009 = vmul.f32 %v1976, %v2005
  %v2010 = vmul.f32 %v1978, %v2006
  %v2011 = vtanh.pop %v2007
  %v2012 = vtanh.pop %v2008
  %v2013 = vtanh.pop %v2009
  %v2014 = vtanh.pop %v2010
  %v2015 = vmul.f32 %v1996, %v2011
  %v2016 = vmul.f32 %v1998, %v2012
  %v2017 = vmul.f32 %v2000, %v2013
  %v2018 = vmul.f32 %v2002, %v2014
  %s2019 = scalar_lea.vmem %s4, 24
  %v2020 = vld [vmem:[%s2019] sm:$0xff]
  %2022 = vset.pattern.permute.xlu0 0
  %2023 = vperm.xlu0 %2022, %v2020
  %v2024 = vpop.permute.xlu0 %2023
  %v2026 = vadd.f32 %v2015, %v2024
  %v2027 = vadd.f32 %v2016, %v2024
  %v2028 = vadd.f32 %v2017, %v2024
  %v2029 = vadd.f32 %v2018, %v2024
  %2030 = vrot.lane.b32.xlu0 %v2026, 17
  %v2031 = vpop.permute.xlu0 %2030
  %2032 = vrot.lane.b32.xlu0 %v2027, 17
  %v2033 = vpop.permute.xlu0 %2032
  %2034 = vrot.lane.b32.xlu0 %v2028, 17
  %v2035 = vpop.permute.xlu0 %2034
  %2036 = vrot.lane.b32.xlu0 %v2029, 17
  %v2037 = vpop.permute.xlu0 %2036
  %v2038 = vsel %vm87, %v2035, %v2037
  %v2039 = vsel %vm87, %v2033, %v2035
  %v2040 = vsel %vm87, %v2031, %v2033
  %v2041 = vsel %vm87, %v2037, %v2031
  %v2042 = vsel %vm59, %v2041, 0.0
  %v2043 = vsel %vm60, %v2040, 0.0
  %v2044 = vsel %vm61, %v2039, 0.0
  %v2045 = vsel %vm62, %v2038, 0.0
  %v2046 = vpack.c.bf16 %v2042, %v2042
  %v2047 = vpack.c.bf16 %v2043, %v2043
  %v2048 = vpack.c.bf16 %v2044, %v2044
  %v2049 = vpack.c.bf16 %v2045, %v2045
  %2050 = vrot.lane.b32.xlu0 %v2026, 16
  %v2051 = vpop.permute.xlu0 %2050
  %2052 = vrot.lane.b32.xlu0 %v2027, 16
  %v2053 = vpop.permute.xlu0 %2052
  %2054 = vrot.lane.b32.xlu0 %v2028, 16
  %v2055 = vpop.permute.xlu0 %2054
  %2056 = vrot.lane.b32.xlu0 %v2029, 16
  %v2057 = vpop.permute.xlu0 %2056
  %v2058 = vsel %vm108, %v2055, %v2057
  %v2059 = vsel %vm108, %v2053, %v2055
  %v2060 = vsel %vm108, %v2051, %v2053
  %v2061 = vsel %vm108, %v2057, %v2051
  %v2062 = vsel %vm43, %v2061, 0.0
  %v2063 = vsel %vm44, %v2060, 0.0
  %v2064 = vsel %vm45, %v2059, 0.0
  %v2065 = vsel %vm46, %v2058, 0.0
  %v2066 = vpack.c.bf16 %v2062, %v2062
  %v2067 = vpack.c.bf16 %v2063, %v2063
  %v2068 = vpack.c.bf16 %v2064, %v2064
  %v2069 = vpack.c.bf16 %v2065, %v2065
  %2070 = vrot.lane.b32.xlu0 %v2026, 15
  %v2071 = vpop.permute.xlu0 %2070
  %2072 = vrot.lane.b32.xlu0 %v2027, 15
  %v2073 = vpop.permute.xlu0 %2072
  %2074 = vrot.lane.b32.xlu0 %v2028, 15
  %v2075 = vpop.permute.xlu0 %2074
  %2076 = vrot.lane.b32.xlu0 %v2029, 15
  %v2077 = vpop.permute.xlu0 %2076
  %v2078 = vsel %vm129, %v2075, %v2077
  %v2079 = vsel %vm129, %v2073, %v2075
  %v2080 = vsel %vm129, %v2071, %v2073
  %v2081 = vsel %vm129, %v2077, %v2071
  %v2082 = vsel %vm63, %v2081, 0.0
  %v2083 = vsel %vm64, %v2080, 0.0
  %v2084 = vsel %vm65, %v2079, 0.0
  %v2085 = vsel %vm66, %v2078, 0.0
  %v2086 = vpack.c.bf16 %v2082, %v2082
  %v2087 = vpack.c.bf16 %v2083, %v2083
  %v2088 = vpack.c.bf16 %v2084, %v2084
  %v2089 = vpack.c.bf16 %v2085, %v2085
  %2090 = vrot.lane.b32.xlu0 %v2026, 1
  %v2091 = vpop.permute.xlu0 %2090
  %2092 = vrot.lane.b32.xlu0 %v2027, 1
  %v2093 = vpop.permute.xlu0 %2092
  %2094 = vrot.lane.b32.xlu0 %v2028, 1
  %v2095 = vpop.permute.xlu0 %2094
  %2096 = vrot.lane.b32.xlu0 %v2029, 1
  %v2097 = vpop.permute.xlu0 %2096
  %v2098 = vsel %vm150, %v2095, %v2097
  %v2099 = vsel %vm150, %v2093, %v2095
  %v2100 = vsel %vm150, %v2091, %v2093
  %v2101 = vsel %vm150, %v2097, %v2091
  %v2102 = vsel %vm51, %v2101, 0.0
  %v2103 = vsel %vm52, %v2100, 0.0
  %v2104 = vsel %vm53, %v2099, 0.0
  %v2105 = vsel %vm54, %v2098, 0.0
  %v2106 = vpack.c.bf16 %v2102, %v2102
  %v2107 = vpack.c.bf16 %v2103, %v2103
  %v2108 = vpack.c.bf16 %v2104, %v2104
  %v2109 = vpack.c.bf16 %v2105, %v2105
  %v2110 = vpack.c.bf16 %v2026, %v2026
  %v2111 = vpack.c.bf16 %v2027, %v2027
  %v2112 = vpack.c.bf16 %v2028, %v2028
  %v2113 = vpack.c.bf16 %v2029, %v2029
  %2114 = vrot.lane.b32.xlu0 %v2026, 127
  %v2115 = vpop.permute.xlu0 %2114
  %2116 = vrot.lane.b32.xlu0 %v2027, 127
  %v2117 = vpop.permute.xlu0 %2116
  %2118 = vrot.lane.b32.xlu0 %v2028, 127
  %v2119 = vpop.permute.xlu0 %2118
  %2120 = vrot.lane.b32.xlu0 %v2029, 127
  %v2121 = vpop.permute.xlu0 %2120
  %v2122 = vsel %vm175, %v2119, %v2121
  %v2123 = vsel %vm175, %v2117, %v2119
  %v2124 = vsel %vm175, %v2115, %v2117
  %v2125 = vsel %vm175, %v2121, %v2115
  %v2126 = vsel %vm55, %v2124, 0.0
  %v2127 = vsel %vm56, %v2123, 0.0
  %v2128 = vsel %vm57, %v2122, 0.0
  %v2129 = vsel %vm58, %v2125, 0.0
  %v2130 = vpack.c.bf16 %v2126, %v2126
  %v2131 = vpack.c.bf16 %v2127, %v2127
  %v2132 = vpack.c.bf16 %v2128, %v2128
  %v2133 = vpack.c.bf16 %v2129, %v2129
  %2134 = vrot.lane.b32.xlu0 %v2026, 113
  %v2135 = vpop.permute.xlu0 %2134
  %2136 = vrot.lane.b32.xlu0 %v2027, 113
  %v2137 = vpop.permute.xlu0 %2136
  %2138 = vrot.lane.b32.xlu0 %v2028, 113
  %v2139 = vpop.permute.xlu0 %2138
  %2140 = vrot.lane.b32.xlu0 %v2029, 113
  %v2141 = vpop.permute.xlu0 %2140
  %v2142 = vsel %vm196, %v2139, %v2141
  %v2143 = vsel %vm196, %v2137, %v2139
  %v2144 = vsel %vm196, %v2135, %v2137
  %v2145 = vsel %vm196, %v2141, %v2135
  %v2146 = vsel %vm67, %v2144, 0.0
  %v2147 = vsel %vm68, %v2143, 0.0
  %v2148 = vsel %vm69, %v2142, 0.0
  %v2149 = vsel %vm70, %v2145, 0.0
  %v2150 = vpack.c.bf16 %v2146, %v2146
  %v2151 = vpack.c.bf16 %v2147, %v2147
  %v2152 = vpack.c.bf16 %v2148, %v2148
  %v2153 = vpack.c.bf16 %v2149, %v2149
  %2154 = vrot.lane.b32.xlu0 %v2026, 112
  %v2155 = vpop.permute.xlu0 %2154
  %2156 = vrot.lane.b32.xlu0 %v2027, 112
  %v2157 = vpop.permute.xlu0 %2156
  %2158 = vrot.lane.b32.xlu0 %v2028, 112
  %v2159 = vpop.permute.xlu0 %2158
  %2160 = vrot.lane.b32.xlu0 %v2029, 112
  %v2161 = vpop.permute.xlu0 %2160
  %v2162 = vsel %vm217, %v2159, %v2161
  %v2163 = vsel %vm217, %v2157, %v2159
  %v2164 = vsel %vm217, %v2155, %v2157
  %v2165 = vsel %vm217, %v2161, %v2155
  %v2166 = vsel %vm47, %v2164, 0.0
  %v2167 = vsel %vm48, %v2163, 0.0
  %v2168 = vsel %vm49, %v2162, 0.0
  %v2169 = vsel %vm50, %v2165, 0.0
  %v2170 = vpack.c.bf16 %v2166, %v2166
  %v2171 = vpack.c.bf16 %v2167, %v2167
  %v2172 = vpack.c.bf16 %v2168, %v2168
  %v2173 = vpack.c.bf16 %v2169, %v2169
  %2174 = vrot.lane.b32.xlu0 %v2026, 111
  %v2175 = vpop.permute.xlu0 %2174
  %2176 = vrot.lane.b32.xlu0 %v2027, 111
  %v2177 = vpop.permute.xlu0 %2176
  %2178 = vrot.lane.b32.xlu0 %v2028, 111
  %v2179 = vpop.permute.xlu0 %2178
  %2180 = vrot.lane.b32.xlu0 %v2029, 111
  %v2181 = vpop.permute.xlu0 %2180
  %v2182 = vsel %vm238, %v2179, %v2181
  %v2183 = vsel %vm238, %v2177, %v2179
  %v2184 = vsel %vm238, %v2175, %v2177
  %v2185 = vsel %vm238, %v2181, %v2175
  %v2186 = vsel %vm71, %v2184, 0.0
  %v2187 = vsel %vm72, %v2183, 0.0
  %v2188 = vsel %vm73, %v2182, 0.0
  %v2189 = vsel %vm74, %v2185, 0.0
  %v2190 = vpack.c.bf16 %v2186, %v2186
  %v2191 = vpack.c.bf16 %v2187, %v2187
  %v2192 = vpack.c.bf16 %v2188, %v2188
  %v2193 = vpack.c.bf16 %v2189, %v2189
  %v2198 = vrot.slane %v2066, 4
  %v2199 = vrot.slane %v2067, 4
  %v2200 = vrot.slane %v2068, 4
  %v2201 = vrot.slane %v2069, 4
  %v2206 = vrot.slane %v2106, 4
  %v2207 = vrot.slane %v2107, 4
  %v2208 = vrot.slane %v2108, 4
  %v2209 = vrot.slane %v2109, 4
  %v2214 = vrot.slane %v2130, 4
  %v2215 = vrot.slane %v2131, 4
  %v2216 = vrot.slane %v2132, 4
  %v2217 = vrot.slane %v2133, 4
  %v2222 = vrot.slane %v2170, 4
  %v2223 = vrot.slane %v2171, 4
  %v2224 = vrot.slane %v2172, 4
  %v2225 = vrot.slane %v2173, 4
  %v2228 = vsel %vm283, %v2046, %v2198
  %v2232 = vsel %vm283, %v2047, %v2199
  %v2236 = vsel %vm283, %v2048, %v2200
  %v2240 = vsel %vm283, %v2049, %v2201
  %v2244 = vsel %vm283, %v2086, %v2206
  %v2248 = vsel %vm283, %v2087, %v2207
  %v2252 = vsel %vm283, %v2088, %v2208
  %v2256 = vsel %vm283, %v2089, %v2209
  %v2260 = vsel %vm283, %v2110, %v2214
  %v2264 = vsel %vm283, %v2111, %v2215
  %v2268 = vsel %vm283, %v2112, %v2216
  %v2272 = vsel %vm283, %v2113, %v2217
  %v2276 = vsel %vm283, %v2150, %v2222
  %v2280 = vsel %vm283, %v2151, %v2223
  %v2284 = vsel %vm283, %v2152, %v2224
  %v2288 = vsel %vm283, %v2153, %v2225
  %v2290 = vld [vmem:[%s5] sm:$0x1]
  %v2291 = vld [vmem:[%s6] sm:$0x3]
  %2293 = vset.pattern.permute.xlu0 0
  %2294 = vperm.xlu0 %2293, %v2291
  %v2295 = vpop.permute.xlu0 %2294
  %v2298 = vsel %vm377, %v2290, 0
  %v2301 = vsel %vm283, %v2190, 0
  %v2304 = vsel %vm283, %v2191, 0
  %v2307 = vsel %vm283, %v2192, 0
  %v2310 = vsel %vm283, %v2193, 0
  %2312 = vmatprep.subr.bf16.mxu0 0
  %2313 = vmatpush1.bf16.msra.mxu0 0
  %2314 = vmatprep.subr.bf16.mxu0 0
  %2315 = vmatpush1.bf16.msra.mxu0 0
  %2316 = vmatprep.subr.bf16.mxu0 0
  %2317 = vmatpush1.bf16.msra.mxu0 0
  %2318 = vmatprep.subr.bf16.mxu0 %v2304
  %2319 = vmatpush1.bf16.msra.mxu0 %v2301
  %2320 = vmatprep.subr.bf16.mxu0 %v2280
  %2321 = vmatpush1.bf16.msra.mxu0 %v2276
  %2322 = vmatprep.subr.bf16.mxu0 %v2264
  %2323 = vmatpush1.bf16.msra.mxu0 %v2260
  %2324 = vmatprep.subr.bf16.mxu0 %v2248
  %2325 = vmatpush1.bf16.msra.mxu0 %v2244
  %2326 = vmatprep.subr.bf16.mxu0 %v2232
  %2327 = vmatpush1.bf16.msra.mxu0 %v2228
  %2328 = vmatprep.subr.bf16.mxu0 0
  %2329 = vmatpush2.bf16.msra.mxu0 0
  %2330 = vmatprep.subr.bf16.mxu0 0
  %2331 = vmatpush2.bf16.msra.mxu0 0
  %2332 = vmatprep.subr.bf16.mxu0 0
  %2333 = vmatpush2.bf16.msra.mxu0 0
  %2334 = vmatprep.subr.bf16.mxu0 0
  %2335 = vmatpush2.bf16.msra.mxu0 0
  %2336 = vmatprep.subr.bf16.mxu0 0
  %2337 = vmatpush2.bf16.msra.mxu0 0
  %2338 = vmatprep.subr.bf16.mxu0 0
  %2339 = vmatpush2.bf16.msra.mxu0 0
  %2340 = vmatprep.subr.bf16.mxu0 0
  %2341 = vmatpush2.bf16.msra.mxu0 0
  %2342 = vmatprep.subr.bf16.mxu0 0
  %2343 = vmatpush2.bf16.msra.mxu0 0
  %2344 = vmatprep.mubr.bf16.mxu0 0
  %2345 = vmatmul.mubr.bf16.gmra.mxu0 %v2298
  %v2346 = vpop.f32.mrf.mxu0
  %v2347 = vadd.f32 %v2295, %v2346
  %v2348 = vpop.f32.mrf.mxu0
  %v2349 = vadd.f32 %v2295, %v2348
  %v2350 = vpop.f32.mrf.mxu0
  %v2351 = vpop.f32.mrf.mxu0
  %2352 = vdwg.mxu0
  %2353 = vmatprep.subr.bf16.mxu0 0
  %2354 = vmatpush1.bf16.msra.mxu0 0
  %2355 = vmatprep.subr.bf16.mxu0 0
  %2356 = vmatpush1.bf16.msra.mxu0 0
  %2357 = vmatprep.subr.bf16.mxu0 0
  %2358 = vmatpush1.bf16.msra.mxu0 0
  %2359 = vmatprep.subr.bf16.mxu0 %v2310
  %2360 = vmatpush1.bf16.msra.mxu0 %v2307
  %2361 = vmatprep.subr.bf16.mxu0 %v2288
  %2362 = vmatpush1.bf16.msra.mxu0 %v2284
  %2363 = vmatprep.subr.bf16.mxu0 %v2272
  %2364 = vmatpush1.bf16.msra.mxu0 %v2268
  %2365 = vmatprep.subr.bf16.mxu0 %v2256
  %2366 = vmatpush1.bf16.msra.mxu0 %v2252
  %2367 = vmatprep.subr.bf16.mxu0 %v2240
  %2368 = vmatpush1.bf16.msra.mxu0 %v2236
  %2369 = vmatprep.subr.bf16.mxu0 0
  %2370 = vmatpush2.bf16.msra.mxu0 0
  %2371 = vmatprep.subr.bf16.mxu0 0
  %2372 = vmatpush2.bf16.msra.mxu0 0
  %2373 = vmatprep.subr.bf16.mxu0 0
  %2374 = vmatpush2.bf16.msra.mxu0 0
  %2375 = vmatprep.subr.bf16.mxu0 0
  %2376 = vmatpush2.bf16.msra.mxu0 0
  %2377 = vmatprep.subr.bf16.mxu0 0
  %2378 = vmatpush2.bf16.msra.mxu0 0
  %2379 = vmatprep.subr.bf16.mxu0 0
  %2380 = vmatpush2.bf16.msra.mxu0 0
  %2381 = vmatprep.subr.bf16.mxu0 0
  %2382 = vmatpush2.bf16.msra.mxu0 0
  %2383 = vmatprep.subr.bf16.mxu0 0
  %2384 = vmatpush2.bf16.msra.mxu0 0
  %2385 = vmatprep.mubr.bf16.mxu0 0
  %2386 = vmatmul.mubr.bf16.gmra.mxu0 %v2298
  %v2387 = vpop.f32.mrf.mxu0
  %v2388 = vadd.f32 %v2295, %v2387
  %v2389 = vpop.f32.mrf.mxu0
  %v2390 = vadd.f32 %v2295, %v2389
  %v2391 = vpop.f32.mrf.mxu0
  %v2392 = vpop.f32.mrf.mxu0
  %2393 = vdwg.mxu0
  %v2396 = vrot.slane %v2347, 1
  %v2397 = vrot.slane %v2349, 1
  %v2402 = vrot.slane %v2388, 1
  %v2403 = vrot.slane %v2390, 1
  %v2404 = vrot.slane %v2388, 7
  %v2405 = vrot.slane %v2390, 7
  %v2406 = vrot.slane %v2402, 7
  %v2407 = vrot.slane %v2403, 7
  %vm2412 = vcmask 1040384
  %v2413 = vsel %vm2412, %v2347, %v2404
  %v2414 = vsel %vm2412, %v2349, %v2405
  %v2415 = vsel %vm2412, %v2396, %v2406
  %v2416 = vsel %vm2412, %v2397, %v2407
  %v2417 = vpack.c.bf16 %v2413, %v2413
  %v2418 = vpack.c.bf16 %v2414, %v2414
  %v2419 = vpack.c.bf16 %v2415, %v2415
  %v2420 = vpack.c.bf16 %v2416, %v2416
  %v2421 = vld [vmem:[%s7] sm:$0xff]
  %v2422 = vld [vmem:[%s7 + $0x8] sm:$0xff]
  %v2423 = vld [vmem:[%s7 + $0x10] sm:$0xff]
  %v2424 = vld [vmem:[%s7 + $0x18] sm:$0xff]
  %v2425 = vld [vmem:[%s7 + $0x20] sm:$0xff]
  %v2426 = vld [vmem:[%s7 + $0x28] sm:$0xff]
  %v2427 = vld [vmem:[%s7 + $0x30] sm:$0xff]
  %v2428 = vld [vmem:[%s7 + $0x38] sm:$0xff]
  %v2429 = vld [vmem:[%s7 + $0x40] sm:$0xff]
  %v2430 = vld [vmem:[%s7 + $0x48] sm:$0xff]
  %v2431 = vld [vmem:[%s7 + $0x50] sm:$0xff]
  %v2432 = vld [vmem:[%s7 + $0x58] sm:$0xff]
  %v2433 = vld [vmem:[%s7 + $0x60] sm:$0xff]
  %v2434 = vld [vmem:[%s7 + $0x68] sm:$0xff]
  %v2435 = vld [vmem:[%s7 + $0x70] sm:$0xff]
  %v2436 = vld [vmem:[%s7 + $0x78] sm:$0xff]
  %v2437 = vld [vmem:[%s7 + $0x80] sm:$0xff]
  %v2438 = vld [vmem:[%s7 + $0x88] sm:$0xff]
  %v2439 = vld [vmem:[%s7 + $0x90] sm:$0xff]
  %v2440 = vld [vmem:[%s7 + $0x98] sm:$0xff]
  %v2441 = vld [vmem:[%s7 + $0xa0] sm:$0xff]
  %v2442 = vld [vmem:[%s7 + $0xa8] sm:$0xff]
  %v2443 = vld [vmem:[%s7 + $0xb0] sm:$0xff]
  %v2444 = vld [vmem:[%s7 + $0xb8] sm:$0xff]
  %v2445 = vld [vmem:[%s7 + $0xc0] sm:$0xff]
  %v2446 = vld [vmem:[%s7 + $0xc8] sm:$0xff]
  %v2447 = vld [vmem:[%s7 + $0xd0] sm:$0xff]
  %v2448 = vld [vmem:[%s7 + $0xd8] sm:$0xff]
  %v2449 = vld [vmem:[%s7 + $0xe0] sm:$0xff]
  %v2450 = vld [vmem:[%s7 + $0xe8] sm:$0xff]
  %v2451 = vld [vmem:[%s7 + $0xf0] sm:$0xff]
  %v2452 = vld [vmem:[%s7 + $0xf8] sm:$0xff]
  %v2453 = vld [vmem:[%s7 + $0x100] sm:$0xff]
  %v2454 = vld [vmem:[%s7 + $0x108] sm:$0xff]
  %v2455 = vld [vmem:[%s7 + $0x110] sm:$0xff]
  %v2456 = vld [vmem:[%s7 + $0x118] sm:$0xff]
  %v2457 = vld [vmem:[%s7 + $0x120] sm:$0xff]
  %v2458 = vld [vmem:[%s7 + $0x128] sm:$0xff]
  %v2459 = vld [vmem:[%s7 + $0x130] sm:$0xff]
  %v2460 = vld [vmem:[%s7 + $0x138] sm:$0xff]
  %v2461 = vld [vmem:[%s7 + $0x140] sm:$0xff]
  %v2462 = vld [vmem:[%s7 + $0x148] sm:$0xff]
  %v2463 = vld [vmem:[%s7 + $0x150] sm:$0xff]
  %v2464 = vld [vmem:[%s7 + $0x158] sm:$0xff]
  %v2465 = vld [vmem:[%s7 + $0x160] sm:$0xff]
  %v2466 = vld [vmem:[%s7 + $0x168] sm:$0xff]
  %v2467 = vld [vmem:[%s7 + $0x170] sm:$0xff]
  %v2468 = vld [vmem:[%s7 + $0x178] sm:$0xff]
  %v2469 = vld [vmem:[%s7 + $0x180] sm:$0xff]
  %v2470 = vld [vmem:[%s7 + $0x188] sm:$0xff]
  %v2471 = vld [vmem:[%s7 + $0x190] sm:$0xff]
  %v2472 = vld [vmem:[%s7 + $0x198] sm:$0xff]
  %v2473 = vld [vmem:[%s7 + $0x1a0] sm:$0xff]
  %v2474 = vld [vmem:[%s7 + $0x1a8] sm:$0xff]
  %v2475 = vld [vmem:[%s7 + $0x1b0] sm:$0xff]
  %v2476 = vld [vmem:[%s7 + $0x1b8] sm:$0xff]
  %v2477 = vld [vmem:[%s7 + $0x1c0] sm:$0xff]
  %v2478 = vld [vmem:[%s7 + $0x1c8] sm:$0xff]
  %v2479 = vld [vmem:[%s7 + $0x1d0] sm:$0xff]
  %v2480 = vld [vmem:[%s7 + $0x1d8] sm:$0xff]
  %v2481 = vld [vmem:[%s7 + $0x1e0] sm:$0xff]
  %v2482 = vld [vmem:[%s7 + $0x1e8] sm:$0xff]
  %v2483 = vld [vmem:[%s7 + $0x1f0] sm:$0xff]
  %v2484 = vld [vmem:[%s7 + $0x1f8] sm:$0xff]
  %v2485 = vld [vmem:[%s1] sm:$0xf]
  %v2550 = vunpack.c.l.b16 %v2421
  %v2551 = vunpack.c.h.b16 %v2421
  %v2552 = vunpack.c.l.b16 %v2422
  %v2553 = vunpack.c.h.b16 %v2422
  %v2554 = vunpack.c.l.b16 %v2423
  %v2555 = vunpack.c.h.b16 %v2423
  %v2556 = vunpack.c.l.b16 %v2424
  %v2557 = vunpack.c.h.b16 %v2424
  %v2558 = vunpack.c.l.b16 %v2425
  %v2559 = vunpack.c.h.b16 %v2425
  %v2560 = vunpack.c.l.b16 %v2426
  %v2561 = vunpack.c.h.b16 %v2426
  %v2562 = vunpack.c.l.b16 %v2427
  %v2563 = vunpack.c.h.b16 %v2427
  %v2564 = vunpack.c.l.b16 %v2428
  %v2565 = vunpack.c.h.b16 %v2428
  %v2566 = vunpack.c.l.b16 %v2429
  %v2567 = vunpack.c.h.b16 %v2429
  %v2568 = vunpack.c.l.b16 %v2430
  %v2569 = vunpack.c.h.b16 %v2430
  %v2570 = vunpack.c.l.b16 %v2431
  %v2571 = vunpack.c.h.b16 %v2431
  %v2572 = vunpack.c.l.b16 %v2432
  %v2573 = vunpack.c.h.b16 %v2432
  %v2574 = vunpack.c.l.b16 %v2433
  %v2575 = vunpack.c.h.b16 %v2433
  %v2576 = vunpack.c.l.b16 %v2434
  %v2577 = vunpack.c.h.b16 %v2434
  %v2578 = vunpack.c.l.b16 %v2435
  %v2579 = vunpack.c.h.b16 %v2435
  %v2580 = vunpack.c.l.b16 %v2436
  %v2581 = vunpack.c.h.b16 %v2436
  %v2582 = vunpack.c.l.b16 %v2437
  %v2583 = vunpack.c.h.b16 %v2437
  %v2584 = vunpack.c.l.b16 %v2438
  %v2585 = vunpack.c.h.b16 %v2438
  %v2586 = vunpack.c.l.b16 %v2439
  %v2587 = vunpack.c.h.b16 %v2439
  %v2588 = vunpack.c.l.b16 %v2440
  %v2589 = vunpack.c.h.b16 %v2440
  %v2590 = vunpack.c.l.b16 %v2441
  %v2591 = vunpack.c.h.b16 %v2441
  %v2592 = vunpack.c.l.b16 %v2442
  %v2593 = vunpack.c.h.b16 %v2442
  %v2594 = vunpack.c.l.b16 %v2443
  %v2595 = vunpack.c.h.b16 %v2443
  %v2596 = vunpack.c.l.b16 %v2444
  %v2597 = vunpack.c.h.b16 %v2444
  %v2598 = vunpack.c.l.b16 %v2445
  %v2599 = vunpack.c.h.b16 %v2445
  %v2600 = vunpack.c.l.b16 %v2446
  %v2601 = vunpack.c.h.b16 %v2446
  %v2602 = vunpack.c.l.b16 %v2447
  %v2603 = vunpack.c.h.b16 %v2447
  %v2604 = vunpack.c.l.b16 %v2448
  %v2605 = vunpack.c.h.b16 %v2448
  %v2606 = vunpack.c.l.b16 %v2449
  %v2607 = vunpack.c.h.b16 %v2449
  %v2608 = vunpack.c.l.b16 %v2450
  %v2609 = vunpack.c.h.b16 %v2450
  %v2610 = vunpack.c.l.b16 %v2451
  %v2611 = vunpack.c.h.b16 %v2451
  %v2612 = vunpack.c.l.b16 %v2452
  %v2613 = vunpack.c.h.b16 %v2452
  %v2614 = vunpack.c.l.b16 %v2453
  %v2615 = vunpack.c.h.b16 %v2453
  %v2616 = vunpack.c.l.b16 %v2454
  %v2617 = vunpack.c.h.b16 %v2454
  %v2618 = vunpack.c.l.b16 %v2455
  %v2619 = vunpack.c.h.b16 %v2455
  %v2620 = vunpack.c.l.b16 %v2456
  %v2621 = vunpack.c.h.b16 %v2456
  %v2622 = vunpack.c.l.b16 %v2457
  %v2623 = vunpack.c.h.b16 %v2457
  %v2624 = vunpack.c.l.b16 %v2458
  %v2625 = vunpack.c.h.b16 %v2458
  %v2626 = vunpack.c.l.b16 %v2459
  %v2627 = vunpack.c.h.b16 %v2459
  %v2628 = vunpack.c.l.b16 %v2460
  %v2629 = vunpack.c.h.b16 %v2460
  %v2630 = vunpack.c.l.b16 %v2461
  %v2631 = vunpack.c.h.b16 %v2461
  %v2632 = vunpack.c.l.b16 %v2462
  %v2633 = vunpack.c.h.b16 %v2462
  %v2634 = vunpack.c.l.b16 %v2463
  %v2635 = vunpack.c.h.b16 %v2463
  %v2636 = vunpack.c.l.b16 %v2464
  %v2637 = vunpack.c.h.b16 %v2464
  %v2638 = vunpack.c.l.b16 %v2465
  %v2639 = vunpack.c.h.b16 %v2465
  %v2640 = vunpack.c.l.b16 %v2466
  %v2641 = vunpack.c.h.b16 %v2466
  %v2642 = vunpack.c.l.b16 %v2467
  %v2643 = vunpack.c.h.b16 %v2467
  %v2644 = vunpack.c.l.b16 %v2468
  %v2645 = vunpack.c.h.b16 %v2468
  %v2646 = vunpack.c.l.b16 %v2469
  %v2647 = vunpack.c.h.b16 %v2469
  %v2648 = vunpack.c.l.b16 %v2470
  %v2649 = vunpack.c.h.b16 %v2470
  %v2650 = vunpack.c.l.b16 %v2471
  %v2651 = vunpack.c.h.b16 %v2471
  %v2652 = vunpack.c.l.b16 %v2472
  %v2653 = vunpack.c.h.b16 %v2472
  %v2654 = vunpack.c.l.b16 %v2473
  %v2655 = vunpack.c.h.b16 %v2473
  %v2656 = vunpack.c.l.b16 %v2474
  %v2657 = vunpack.c.h.b16 %v2474
  %v2658 = vunpack.c.l.b16 %v2475
  %v2659 = vunpack.c.h.b16 %v2475
  %v2660 = vunpack.c.l.b16 %v2476
  %v2661 = vunpack.c.h.b16 %v2476
  %v2662 = vunpack.c.l.b16 %v2477
  %v2663 = vunpack.c.h.b16 %v2477
  %v2664 = vunpack.c.l.b16 %v2478
  %v2665 = vunpack.c.h.b16 %v2478
  %v2666 = vunpack.c.l.b16 %v2479
  %v2667 = vunpack.c.h.b16 %v2479
  %v2668 = vunpack.c.l.b16 %v2480
  %v2669 = vunpack.c.h.b16 %v2480
  %v2670 = vunpack.c.l.b16 %v2481
  %v2671 = vunpack.c.h.b16 %v2481
  %v2672 = vunpack.c.l.b16 %v2482
  %v2673 = vunpack.c.h.b16 %v2482
  %v2674 = vunpack.c.l.b16 %v2483
  %v2675 = vunpack.c.h.b16 %v2483
  %v2676 = vunpack.c.l.b16 %v2484
  %v2677 = vunpack.c.h.b16 %v2484
  %v2678 = vpack.c.b16 %v2552, %v2550
  %v2679 = vpack.c.b16 %v2553, %v2551
  %v2680 = vpack.c.b16 %v2556, %v2554
  %v2681 = vpack.c.b16 %v2557, %v2555
  %v2682 = vpack.c.b16 %v2560, %v2558
  %v2683 = vpack.c.b16 %v2561, %v2559
  %v2684 = vpack.c.b16 %v2564, %v2562
  %v2685 = vpack.c.b16 %v2565, %v2563
  %v2686 = vpack.c.b16 %v2568, %v2566
  %v2687 = vpack.c.b16 %v2569, %v2567
  %v2688 = vpack.c.b16 %v2572, %v2570
  %v2689 = vpack.c.b16 %v2573, %v2571
  %v2690 = vpack.c.b16 %v2576, %v2574
  %v2691 = vpack.c.b16 %v2577, %v2575
  %v2692 = vpack.c.b16 %v2580, %v2578
  %v2693 = vpack.c.b16 %v2581, %v2579
  %v2694 = vpack.c.b16 %v2584, %v2582
  %v2695 = vpack.c.b16 %v2585, %v2583
  %v2696 = vpack.c.b16 %v2588, %v2586
  %v2697 = vpack.c.b16 %v2589, %v2587
  %v2698 = vpack.c.b16 %v2592, %v2590
  %v2699 = vpack.c.b16 %v2593, %v2591
  %v2700 = vpack.c.b16 %v2596, %v2594
  %v2701 = vpack.c.b16 %v2597, %v2595
  %v2702 = vpack.c.b16 %v2600, %v2598
  %v2703 = vpack.c.b16 %v2601, %v2599
  %v2704 = vpack.c.b16 %v2604, %v2602
  %v2705 = vpack.c.b16 %v2605, %v2603
  %v2706 = vpack.c.b16 %v2608, %v2606
  %v2707 = vpack.c.b16 %v2609, %v2607
  %v2708 = vpack.c.b16 %v2612, %v2610
  %v2709 = vpack.c.b16 %v2613, %v2611
  %v2710 = vpack.c.b16 %v2616, %v2614
  %v2711 = vpack.c.b16 %v2617, %v2615
  %v2712 = vpack.c.b16 %v2620, %v2618
  %v2713 = vpack.c.b16 %v2621, %v2619
  %v2714 = vpack.c.b16 %v2624, %v2622
  %v2715 = vpack.c.b16 %v2625, %v2623
  %v2716 = vpack.c.b16 %v2628, %v2626
  %v2717 = vpack.c.b16 %v2629, %v2627
  %v2718 = vpack.c.b16 %v2632, %v2630
  %v2719 = vpack.c.b16 %v2633, %v2631
  %v2720 = vpack.c.b16 %v2636, %v2634
  %v2721 = vpack.c.b16 %v2637, %v2635
  %v2722 = vpack.c.b16 %v2640, %v2638
  %v2723 = vpack.c.b16 %v2641, %v2639
  %v2724 = vpack.c.b16 %v2644, %v2642
  %v2725 = vpack.c.b16 %v2645, %v2643
  %v2726 = vpack.c.b16 %v2648, %v2646
  %v2727 = vpack.c.b16 %v2649, %v2647
  %v2728 = vpack.c.b16 %v2652, %v2650
  %v2729 = vpack.c.b16 %v2653, %v2651
  %v2730 = vpack.c.b16 %v2656, %v2654
  %v2731 = vpack.c.b16 %v2657, %v2655
  %v2732 = vpack.c.b16 %v2660, %v2658
  %v2733 = vpack.c.b16 %v2661, %v2659
  %v2734 = vpack.c.b16 %v2664, %v2662
  %v2735 = vpack.c.b16 %v2665, %v2663
  %v2736 = vpack.c.b16 %v2668, %v2666
  %v2737 = vpack.c.b16 %v2669, %v2667
  %v2738 = vpack.c.b16 %v2672, %v2670
  %v2739 = vpack.c.b16 %v2673, %v2671
  %v2740 = vpack.c.b16 %v2676, %v2674
  %v2741 = vpack.c.b16 %v2677, %v2675
  %v2808 = vunpack.c.l.s4 1983009808
  %v2809 = vunpack.c.0.s8 %v2808
  %v2810 = vlaneseq
  %v2811 = vshrl.u32 %v2810, 7
  %v2812 = vsub.s32 %v2809, %v2811
  %v2813 = vrot.slane %v2485, %v2812
  %v2814 = vcombine.high %v2813, %v2813
  %2817 = vmatprep.subr.bf16.mxu0 %v2693
  %2818 = vmatpush1.bf16.msra.mxu0 %v2692
  %2819 = vmatprep.subr.bf16.mxu0 %v2691
  %2820 = vmatpush1.bf16.msra.mxu0 %v2690
  %2821 = vmatprep.subr.bf16.mxu0 %v2689
  %2822 = vmatpush1.bf16.msra.mxu0 %v2688
  %2823 = vmatprep.subr.bf16.mxu0 %v2687
  %2824 = vmatpush1.bf16.msra.mxu0 %v2686
  %2825 = vmatprep.subr.bf16.mxu0 %v2685
  %2826 = vmatpush1.bf16.msra.mxu0 %v2684
  %2827 = vmatprep.subr.bf16.mxu0 %v2683
  %2828 = vmatpush1.bf16.msra.mxu0 %v2682
  %2829 = vmatprep.subr.bf16.mxu0 %v2681
  %2830 = vmatpush1.bf16.msra.mxu0 %v2680
  %2831 = vmatprep.subr.bf16.mxu0 %v2679
  %2832 = vmatpush1.bf16.msra.mxu0 %v2678
  %2833 = vmatprep.subr.bf16.mxu0 %v2709
  %2834 = vmatpush2.bf16.msra.mxu0 %v2708
  %2835 = vmatprep.subr.bf16.mxu0 %v2707
  %2836 = vmatpush2.bf16.msra.mxu0 %v2706
  %2837 = vmatprep.subr.bf16.mxu0 %v2705
  %2838 = vmatpush2.bf16.msra.mxu0 %v2704
  %2839 = vmatprep.subr.bf16.mxu0 %v2703
  %2840 = vmatpush2.bf16.msra.mxu0 %v2702
  %2841 = vmatprep.subr.bf16.mxu0 %v2701
  %2842 = vmatpush2.bf16.msra.mxu0 %v2700
  %2843 = vmatprep.subr.bf16.mxu0 %v2699
  %2844 = vmatpush2.bf16.msra.mxu0 %v2698
  %2845 = vmatprep.subr.bf16.mxu0 %v2697
  %2846 = vmatpush2.bf16.msra.mxu0 %v2696
  %2847 = vmatprep.subr.bf16.mxu0 %v2695
  %2848 = vmatpush2.bf16.msra.mxu0 %v2694
  %2849 = vmatprep.mubr.bf16.mxu0 %v2418
  %2850 = vmatmul.mubr.bf16.gmra.mxu0 %v2417
  %v2851 = vpop.f32.mrf.mxu0
  %v2852 = vadd.f32 %v2813, %v2851
  %v2853 = vpop.f32.mrf.mxu0
  %v2854 = vadd.f32 %v2814, %v2853
  %v2855 = vpop.f32.mrf.mxu0
  %v2856 = vpop.f32.mrf.mxu0
  %2857 = vdwg.mxu0
  %2858 = vmatprep.subr.bf16.mxu0 %v2725
  %2859 = vmatpush1.bf16.msra.mxu0 %v2724
  %2860 = vmatprep.subr.bf16.mxu0 %v2723
  %2861 = vmatpush1.bf16.msra.mxu0 %v2722
  %2862 = vmatprep.subr.bf16.mxu0 %v2721
  %2863 = vmatpush1.bf16.msra.mxu0 %v2720
  %2864 = vmatprep.subr.bf16.mxu0 %v2719
  %2865 = vmatpush1.bf16.msra.mxu0 %v2718
  %2866 = vmatprep.subr.bf16.mxu0 %v2717
  %2867 = vmatpush1.bf16.msra.mxu0 %v2716
  %2868 = vmatprep.subr.bf16.mxu0 %v2715
  %2869 = vmatpush1.bf16.msra.mxu0 %v2714
  %2870 = vmatprep.subr.bf16.mxu0 %v2713
  %2871 = vmatpush1.bf16.msra.mxu0 %v2712
  %2872 = vmatprep.subr.bf16.mxu0 %v2711
  %2873 = vmatpush1.bf16.msra.mxu0 %v2710
  %2874 = vmatprep.subr.bf16.mxu0 %v2741
  %2875 = vmatpush2.bf16.msra.mxu0 %v2740
  %2876 = vmatprep.subr.bf16.mxu0 %v2739
  %2877 = vmatpush2.bf16.msra.mxu0 %v2738
  %2878 = vmatprep.subr.bf16.mxu0 %v2737
  %2879 = vmatpush2.bf16.msra.mxu0 %v2736
  %2880 = vmatprep.subr.bf16.mxu0 %v2735
  %2881 = vmatpush2.bf16.msra.mxu0 %v2734
  %2882 = vmatprep.subr.bf16.mxu0 %v2733
  %2883 = vmatpush2.bf16.msra.mxu0 %v2732
  %2884 = vmatprep.subr.bf16.mxu0 %v2731
  %2885 = vmatpush2.bf16.msra.mxu0 %v2730
  %2886 = vmatprep.subr.bf16.mxu0 %v2729
  %2887 = vmatpush2.bf16.msra.mxu0 %v2728
  %2888 = vmatprep.subr.bf16.mxu0 %v2727
  %2889 = vmatpush2.bf16.msra.mxu0 %v2726
  %2890 = vmatprep.mubr.bf16.mxu0 %v2420
  %2891 = vmatmul.mubr.bf16.gmra.mxu0 %v2419
  %v2892 = vpop.f32.mrf.mxu0
  %v2893 = vadd.f32 %v2852, %v2892
  %v2894 = vpop.f32.mrf.mxu0
  %v2895 = vadd.f32 %v2854, %v2894
  %v2896 = vpop.f32.mrf.mxu0
  %v2897 = vpop.f32.mrf.mxu0
  %2898 = vdwg.mxu0
  %v2899 = vxor.u32 %v2893, 2147483648
  %v2900 = vxor.u32 %v2895, 2147483648
  %v2901 = vmul.f32 %v2899, 1.442695
  %v2902 = vpow.pop %v2901
  %v2903 = vmul.f32 %v2900, 1.442695
  %v2904 = vpow.pop %v2903
  %v2905 = vadd.f32 %v2902, 1.0
  %v2906 = vadd.f32 %v2904, 1.0
  %v2907 = vrcp.pop %v2905
  %v2908 = vmul.f32 1.0, %v2907
  %v2909 = vrcp.pop %v2906
  %v2910 = vmul.f32 1.0, %v2909
  %v2913 = vcombine.low %v2908, %v2910
  %v2915 = vunpack.c.l.s4 1983009808
  %v2916 = vunpack.c.0.s8 %v2915
  %v2917 = vlaneseq
  %v2918 = vshrl.u32 %v2917, 7
  %v2919 = vsub.s32 %v2916, %v2918
  %v2920 = vrot.slane %v2913, %v2919
  %2922 = vst [vmem:[%s8] sm:$0xf] %v2920
  // Predicated region
  $region34: #{hotspot_predictor_forward.1} parent=0 // pred_check
    _
  $region35: #{hotspot_predictor_forward.1} parent=0 // pred_check_branch
    %2924 = sbr.rel (0) target = $region37
  $region36: #{hotspot_predictor_forward.1} parent=0 // pred_region
    _
  $region37: #{hotspot_predictor_forward.1} parent=0 // pred_fallthru
    _
  // Predicated region
  $region38: #{hotspot_predictor_forward.1} parent=0 // pred_check
    _
  $region39: #{hotspot_predictor_forward.1} parent=0 // pred_check_branch
    %2926 = sbr.rel (0) target = $region41
  $region40: #{hotspot_predictor_forward.1} parent=0 // pred_region
    _
  $region41: #{hotspot_predictor_forward.1} parent=0 // pred_fallthru
    _

</llo_original>
